<compile_context>
chip_gen: v7x
topology: tpu7x:2x2x1
jax: 0.10.0
libtpu: 0.0.40
codegen_flags: <defaults>
</compile_context>

<pallas_src>
import functools

import numpy as np
import jax
import jax.numpy as jnp
from jax.experimental import pallas as pl
from jax.experimental.pallas import tpu as pltpu


# ------------------------------ configuration --------------------------------

EXPANSION = 4
DIM_IN = 256                      # block input channels
DIM_OUT = DIM_IN // EXPANSION     # dim_out arg; output channels = DIM_OUT*4 == DIM_IN
WIDTH = DIM_IN // EXPANSION       # conv1 output channels (logical)
WIDTH_P = 128                     # conv1 output channels padded to a full lane tile
HEADS = 4
DIM_HEAD = 32
WINDOW = 4
BN_EPS = 1e-5

BATCH, HEIGHT, WIDTH_SP = 2, 16, 16

VMEM_LIMIT = 32 * 1024 * 1024     # explicit, safe on v5e/v6e (128 MiB) and v7x (64 MiB)


# ------------------------- K1: per-channel sum / sumsq ------------------------

def _channel_stats_kernel(x_ref, s_ref, q_ref):
    # Accumulate directly into the (8, tc) output blocks (resident across the
    # reduction axis); keep accumulation on full (8,128) vregs, defer the final
    # cross-sublane reduce to XLA.
    @pl.when(pl.program_id(1) == 0)
    def _():
        s_ref[...] = jnp.zeros_like(s_ref)
        q_ref[...] = jnp.zeros_like(q_ref)

    x = x_ref[...].astype(jnp.float32)                       # (tm, tc)
    xr = x.reshape(x.shape[0] // 8, 8, x.shape[1])           # sublane-grouping view
    s_ref[...] += jnp.sum(xr, axis=0)
    q_ref[...] += jnp.sum(xr * xr, axis=0)


def channel_stats(x2d, *, tm=256, tc=128):
    """Returns (8, C) partial sums / sums-of-squares; reduce over axis 0 in XLA."""
    M, C = x2d.shape
    tm = tm if M % tm == 0 else M
    tc = tc if C % tc == 0 else C
    assert tm % 8 == 0
    grid = (C // tc, M // tm)                                # reduction axis last
    return pl.pallas_call(
        _channel_stats_kernel,
        out_shape=(jax.ShapeDtypeStruct((8, C), jnp.float32),
                   jax.ShapeDtypeStruct((8, C), jnp.float32)),
        grid=grid,
        in_specs=[pl.BlockSpec((tm, tc), lambda j, i: (i, j))],
        out_specs=(pl.BlockSpec((8, tc), lambda j, i: (0, j)),
                   pl.BlockSpec((8, tc), lambda j, i: (0, j))),
        compiler_params=pltpu.CompilerParams(
            dimension_semantics=("parallel", "arbitrary"),
            vmem_limit_bytes=VMEM_LIMIT),
    )(x2d)


# ------------- K2: conv1 (BN1 + GELU prologue) with fused BN2 stats ------------

def _conv1_kernel(x_ref, sc_ref, sh_ref, w_ref, h_ref, s_ref, q_ref, acc_ref):
    @pl.when(pl.program_id(1) == 0)
    def _():
        acc_ref[...] = jnp.zeros_like(acc_ref)

    # BN1 affine prologue (per-channel scale/shift folded from batch stats) + GELU.
    a = x_ref[...].astype(jnp.float32) * sc_ref[...] + sh_ref[...]
    a = jax.nn.gelu(a, approximate=True)   # TODO(synk): exact-erf GELU not used
    acc_ref[...] += jnp.dot(a.astype(jnp.bfloat16), w_ref[...],
                            preferred_element_type=jnp.float32)

    @pl.when(pl.program_id(1) == pl.num_programs(1) - 1)
    def _():
        r = acc_ref[...]
        h_ref[...] = r.astype(h_ref.dtype)                   # bf16 activation to HBM
        rr = r.reshape(r.shape[0] // 8, 8, r.shape[1])       # per-tile BN2 partials
        s_ref[...] = jnp.sum(rr, axis=0)
        q_ref[...] = jnp.sum(rr * rr, axis=0)


def conv1_bn_gelu(x2d, sc1, sh1, w_conv_p, *, tm=256, tk=256):
    """h = GELU(x*sc1+sh1) @ w_conv_p  (bf16), plus (8*n_i, Np) BN2 stat partials."""
    M, K = x2d.shape
    Kw, Np = w_conv_p.shape
    assert K == Kw
    tm = tm if M % tm == 0 else M
    tk = tk if K % tk == 0 else K
    assert tm % 8 == 0
    n_i = M // tm
    grid = (n_i, K // tk)
    return pl.pallas_call(
        _conv1_kernel,
        out_shape=(jax.ShapeDtypeStruct((M, Np), jnp.bfloat16),
                   jax.ShapeDtypeStruct((n_i * 8, Np), jnp.float32),
                   jax.ShapeDtypeStruct((n_i * 8, Np), jnp.float32)),
        grid=grid,
        in_specs=[pl.BlockSpec((tm, tk), lambda i, k: (i, k)),
                  pl.BlockSpec((1, tk), lambda i, k: (0, k)),
                  pl.BlockSpec((1, tk), lambda i, k: (0, k)),
                  pl.BlockSpec((tk, Np), lambda i, k: (k, 0))],
        out_specs=(pl.BlockSpec((tm, Np), lambda i, k: (i, 0)),
                   pl.BlockSpec((8, Np), lambda i, k: (i, 0)),
                   pl.BlockSpec((8, Np), lambda i, k: (i, 0))),
        scratch_shapes=[pltpu.VMEM((tm, Np), jnp.float32)],
        compiler_params=pltpu.CompilerParams(
            dimension_semantics=("parallel", "arbitrary"),
            vmem_limit_bytes=VMEM_LIMIT),
    )(x2d, sc1, sh1, w_conv_p)


# --------- K3: fused qkv proj + window attention + out-proj + residual ---------

def _fused_window_attn_kernel(h_ref, skip_ref, wqkv_ref, bqkv_ref, wout_ref,
                              bout_ref, bias_ref, o_ref, *, heads, dh, n2, p):
    N = p * p
    inner = heads * dh
    c_out = o_ref.shape[-1]
    cp = h_ref.shape[-1]

    # The block is one row-strip of windows: rows ordered (p1, j, p2).
    hs = h_ref[...]                                          # (p*n2*p, cp) bf16
    # Window partition in-register: (p1, j, p2) -> (j, p1, p2).
    hw2d = (hs.reshape(p, n2, p, cp)
              .transpose(1, 0, 2, 3)
              .reshape(n2 * N, cp))                          # window-ordered rows

    # qkv projection: BN2 affine and the 1/sqrt(dh) q-scale are pre-folded into
    # wqkv/bqkv, so this is a plain matmul + bias.
    qkv2d = jnp.dot(hw2d, wqkv_ref[...],
                    preferred_element_type=jnp.float32) + bqkv_ref[...]
    qkv = qkv2d.astype(jnp.bfloat16).reshape(n2, N, 3 * inner)

    bias = bias_ref[...][None, :, :]                         # (1, N, N) rel-pos bias

    acc = jnp.zeros((n2 * N, c_out), jnp.float32)            # out-proj accumulator
    for hh in range(heads):                                  # static unroll over heads
        q = qkv[:, :, hh * dh:(hh + 1) * dh]
        k = qkv[:, :, inner + hh * dh:inner + (hh + 1) * dh]
        v = qkv[:, :, 2 * inner + hh * dh:2 * inner + (hh + 1) * dh]
        s = jnp.einsum("gnd,gmd->gnm", q, k,
                       preferred_element_type=jnp.float32) + bias
        m = jnp.max(s, axis=-1, keepdims=True)
        e = jnp.exp(s - m)                                   # softmax math in f32
        pattn = (e * pl.reciprocal(jnp.sum(e, axis=-1, keepdims=True),
                                   approx=True)).astype(jnp.bfloat16)
        pv = jnp.einsum("gnm,gmd->gnd", pattn, v,
                        preferred_element_type=jnp.float32)  # (n2, N, dh)
        # Fused out-projection: accumulate this head's slice of to_out.
        acc = acc + jnp.dot(pv.reshape(n2 * N, dh).astype(jnp.bfloat16),
                            wout_ref[hh * dh:(hh + 1) * dh, :],
                            preferred_element_type=jnp.float32)

    # Un-window back to image row order, add out-proj bias and the residual.
    y = (acc.reshape(n2, p, p, c_out)
            .transpose(1, 0, 2, 3)
            .reshape(p * n2 * p, c_out))
    o_ref[...] = (y + bout_ref[...] + skip_ref[...].astype(jnp.float32)
                  ).astype(o_ref.dtype)


def fused_window_attention(h2d, skip2d, w_qkv, b_qkv, w_out, b_out, bias, *,
                           batch, n1, n2, p, heads, dim_head):
    M, cp = h2d.shape
    _, c_out = skip2d.shape
    inner = heads * dim_head
    rows_per_strip = p * n2 * p                              # one row of windows
    n_strips = batch * n1
    assert M == n_strips * rows_per_strip
    kern = functools.partial(_fused_window_attn_kernel,
                             heads=heads, dh=dim_head, n2=n2, p=p)
    return pl.pallas_call(
        kern,
        out_shape=jax.ShapeDtypeStruct((M, c_out), jnp.float32),
        grid=(n_strips,),
        in_specs=[
            pl.BlockSpec((rows_per_strip, cp), lambda g: (g, 0)),
            pl.BlockSpec((rows_per_strip, c_out), lambda g: (g, 0)),
            pl.BlockSpec((cp, 3 * inner), lambda g: (0, 0)),
            pl.BlockSpec((1, 3 * inner), lambda g: (0, 0)),
            pl.BlockSpec((inner, c_out), lambda g: (0, 0)),
            pl.BlockSpec((1, c_out), lambda g: (0, 0)),
            pl.BlockSpec((p * p, p * p), lambda g: (0, 0)),
        ],
        out_specs=pl.BlockSpec((rows_per_strip, c_out), lambda g: (g, 0)),
        compiler_params=pltpu.CompilerParams(
            dimension_semantics=("parallel",),
            vmem_limit_bytes=VMEM_LIMIT),
    )(h2d, skip2d, w_qkv, b_qkv, w_out, b_out, bias)


# ------------------------------ parameters ------------------------------------

def rel_pos_bias(pos_embedding, window):
    """mask = pos_embedding[rel_index[:,:,0], rel_index[:,:,1]]  (LocalAttention)."""
    coords = np.array([[i, j] for i in range(window) for j in range(window)])
    rel = coords[None, :, :] - coords[:, None, :] + window - 1      # (N, N, 2)
    return pos_embedding[rel[:, :, 0], rel[:, :, 1]]                # (N, N)


def init_params(key):
    inner = HEADS * DIM_HEAD
    c_out = DIM_OUT * EXPANSION
    ks = jax.random.split(key, 4)

    def lin(k, cin, cout):                                   # f32 masters; cast at use
        return jax.random.normal(k, (cin, cout), jnp.float32) * (1.0 / cin) ** 0.5

    return {
        "bn1_gamma": jnp.ones((DIM_IN,), jnp.float32),
        "bn1_beta": jnp.zeros((DIM_IN,), jnp.float32),
        "w_conv": lin(ks[0], DIM_IN, WIDTH),                 # self.conv (1x1, no bias)
        "bn2_gamma": jnp.ones((WIDTH,), jnp.float32),
        "bn2_beta": jnp.zeros((WIDTH,), jnp.float32),
        "w_qkv": lin(ks[1], WIDTH, 3 * inner),               # [to_q | to_k | to_v], no bias
        "w_out": lin(ks[2], inner, c_out),                   # attn to_out conv1x1
        "b_out": jnp.zeros((c_out,), jnp.float32),           # to_out bias
        "pos_embedding": jax.random.normal(ks[3], (2 * WINDOW - 1, 2 * WINDOW - 1),
                                           jnp.float32) * 0.02,
    }


def _fold_bn(s, q, gamma, beta, count):
    mean = s / count
    var = jnp.maximum(q / count - mean * mean, 0.0)          # biased (train-mode) variance
    scale = gamma * jax.lax.rsqrt(var + BN_EPS)
    shift = beta - mean * scale
    return scale, shift


# ------------------------------ forward pass ----------------------------------

def attention_block_b_forward(params, x_nchw):
    B, C, H, W = x_nchw.shape
    p = WINDOW
    n1, n2 = H // p, W // p
    inner = HEADS * DIM_HEAD
    c_out = DIM_OUT * EXPANSION
    M = B * H * W

    x = jnp.transpose(x_nchw, (0, 2, 3, 1)).astype(jnp.float32)     # NHWC: channels -> lanes
    x2d = x.reshape(M, C)                                            # also the residual (skip)

    # ---- BN1 batch statistics (K1) ---------------------------------------------
    s1p, q1p = channel_stats(x2d)
    sc1, sh1 = _fold_bn(jnp.sum(s1p, axis=0), jnp.sum(q1p, axis=0),
                        params["bn1_gamma"], params["bn1_beta"], M)

    # ---- conv1 with BN1+GELU prologue; BN2 stats fused in the epilogue (K2) -----
    pad = WIDTH_P - WIDTH
    w_conv_p = jnp.pad(params["w_conv"], ((0, 0), (0, pad))).astype(jnp.bfloat16)
    h2d, hsp, hqp = conv1_bn_gelu(x2d, sc1.reshape(1, C), sh1.reshape(1, C), w_conv_p)

    gamma2_p = jnp.pad(params["bn2_gamma"], (0, pad), constant_values=1.0)
    beta2_p = jnp.pad(params["bn2_beta"], (0, pad))
    sc2, sh2 = _fold_bn(jnp.sum(hsp, axis=0), jnp.sum(hqp, axis=0),
                        gamma2_p, beta2_p, M)

    # ---- fold BN2 + attention scale into the qkv projection (trace-time, XLA) ---
    w_qkv_p = jnp.pad(params["w_qkv"], ((0, pad), (0, 0)))            # padded rows are zero
    w_qkv_f = sc2[:, None] * w_qkv_p
    b_qkv_f = sh2 @ w_qkv_p                                           # (3*inner,)
    col_scale = jnp.concatenate([jnp.full((inner,), DIM_HEAD ** -0.5, jnp.float32),
                                 jnp.ones((2 * inner,), jnp.float32)])
    w_qkv_f = (w_qkv_f * col_scale).astype(jnp.bfloat16)
    b_qkv_f = (b_qkv_f * col_scale).reshape(1, 3 * inner)

    bias = rel_pos_bias(params["pos_embedding"], p)                   # (N, N) rel-pos bias

    # ---- fused qkv + window MSA + out-projection + residual (K3) ----------------
    y2d = fused_window_attention(
        h2d, x2d, w_qkv_f, b_qkv_f,
        params["w_out"].astype(jnp.bfloat16),
        params["b_out"].reshape(1, c_out),
        bias, batch=B, n1=n1, n2=n2, p=p, heads=HEADS, dim_head=DIM_HEAD)

    y = y2d.reshape(B, H, W, c_out)                                   # image row order already
    return jnp.transpose(y, (0, 3, 1, 2))                             # back to NCHW


# ------------------------------ main -------------------------------------------

if __name__ == "__main__":
    key = jax.random.PRNGKey(0)
    pkey, xkey = jax.random.split(key)
    params = init_params(pkey)
    x = jax.random.normal(xkey, (BATCH, DIM_IN, HEIGHT, WIDTH_SP), jnp.float32)  # NCHW

    fwd = jax.jit(attention_block_b_forward)
    y = jax.block_until_ready(fwd(params, x))

    assert y.shape == (BATCH, DIM_OUT * EXPANSION, HEIGHT, WIDTH_SP)
    assert bool(jnp.all(jnp.isfinite(y)))
    print("KERNEL_OK")
</pallas_src>

<mosaic_0001>
module attributes {stable_mosaic.version = 11 : i64} {
  func.func @_channel_stats_kernel(%arg0: i32, %arg1: i32, %arg2: memref<256x128xf32, #tpu.memory_space<vmem>>, %arg3: memref<8x128xf32, #tpu.memory_space<vmem>>, %arg4: memref<8x128xf32, #tpu.memory_space<vmem>>) attributes {dimension_semantics = [#tpu.dimension_semantics<parallel>, #tpu.dimension_semantics<arbitrary>], iteration_bounds = array<i64: 2, 2>, scalar_prefetch = 0 : i64, scratch_operands = 0 : i64, tpu.core_type = #tpu.core_type<tc>, window_params = [{transform_indices = @transform_0, window_bounds = array<i64: 256, 128>}, {transform_indices = @transform_1, window_bounds = array<i64: 8, 128>}, {transform_indices = @transform_2, window_bounds = array<i64: 8, 128>}]} {
    %c0_i32 = arith.constant 0 : i32
    %0 = arith.cmpi eq, %arg1, %c0_i32 : i32
    %1 = arith.extui %0 : i1 to i32
    %c0_i32_0 = arith.constant 0 : i32
    %2 = arith.cmpi ne, %1, %c0_i32_0 : i32
    scf.if %2 {
      %cst_11 = arith.constant 0.000000e+00 : f32
      %14 = vector.broadcast %cst_11 : f32 to vector<8x128xf32>
      %c0_12 = arith.constant 0 : index
      %c0_13 = arith.constant 0 : index
      %15 = vector.load %arg3[%c0_12, %c0_13] : memref<8x128xf32, #tpu.memory_space<vmem>>, vector<8x128xf32>
      tpu.vector_store %arg3[%c0_12, %c0_13], %14 {strides = array<i32>} : memref<8x128xf32, #tpu.memory_space<vmem>>, vector<8x128xf32>,
      %cst_14 = arith.constant 0.000000e+00 : f32
      %16 = vector.broadcast %cst_14 : f32 to vector<8x128xf32>
      %c0_15 = arith.constant 0 : index
      %c0_16 = arith.constant 0 : index
      %17 = vector.load %arg4[%c0_15, %c0_16] : memref<8x128xf32, #tpu.memory_space<vmem>>, vector<8x128xf32>
      tpu.vector_store %arg4[%c0_15, %c0_16], %16 {strides = array<i32>} : memref<8x128xf32, #tpu.memory_space<vmem>>, vector<8x128xf32>,
    } else {
    }
    %c0 = arith.constant 0 : index
    %c0_1 = arith.constant 0 : index
    %3 = vector.load %arg2[%c0, %c0_1] : memref<256x128xf32, #tpu.memory_space<vmem>>, vector<256x128xf32>
    %4 = vector.shape_cast %3 : vector<256x128xf32> to vector<32x8x128xf32>
    %c0_2 = arith.constant 0 : index
    %c0_3 = arith.constant 0 : index
    %5 = vector.load %arg3[%c0_2, %c0_3] : memref<8x128xf32, #tpu.memory_space<vmem>>, vector<8x128xf32>
    %cst = arith.constant dense<0.000000e+00> : vector<8x128xf32>
    %6 = vector.multi_reduction <add>, %4, %cst [0] : vector<32x8x128xf32> to vector<8x128xf32>
    %7 = arith.addf %5, %6 : vector<8x128xf32>
    %c0_4 = arith.constant 0 : index
    %c0_5 = arith.constant 0 : index
    %8 = vector.load %arg3[%c0_4, %c0_5] : memref<8x128xf32, #tpu.memory_space<vmem>>, vector<8x128xf32>
    tpu.vector_store %arg3[%c0_4, %c0_5], %7 {strides = array<i32>} : memref<8x128xf32, #tpu.memory_space<vmem>>, vector<8x128xf32>,
    %c0_6 = arith.constant 0 : index
    %c0_7 = arith.constant 0 : index
    %9 = vector.load %arg4[%c0_6, %c0_7] : memref<8x128xf32, #tpu.memory_space<vmem>>, vector<8x128xf32>
    %10 = arith.mulf %4, %4 : vector<32x8x128xf32>
    %cst_8 = arith.constant dense<0.000000e+00> : vector<8x128xf32>
    %11 = vector.multi_reduction <add>, %10, %cst_8 [0] : vector<32x8x128xf32> to vector<8x128xf32>
    %12 = arith.addf %9, %11 : vector<8x128xf32>
    %c0_9 = arith.constant 0 : index
    %c0_10 = arith.constant 0 : index
    %13 = vector.load %arg4[%c0_9, %c0_10] : memref<8x128xf32, #tpu.memory_space<vmem>>, vector<8x128xf32>
    tpu.vector_store %arg4[%c0_9, %c0_10], %12 {strides = array<i32>} : memref<8x128xf32, #tpu.memory_space<vmem>>, vector<8x128xf32>,
    return
  }
  func.func @transform_0(%arg0: i32, %arg1: i32) -> (i32, i32) {
    %c0_i32 = arith.constant 0 : i32
    return %arg1, %arg0 : i32, i32
  }
  func.func @transform_1(%arg0: i32, %arg1: i32) -> (i32, i32) {
    %c0_i32 = arith.constant 0 : i32
    %c0_i32_0 = arith.constant 0 : i32
    return %c0_i32, %arg0 : i32, i32
  }
  func.func @transform_2(%arg0: i32, %arg1: i32) -> (i32, i32) {
    %c0_i32 = arith.constant 0 : i32
    %c0_i32_0 = arith.constant 0 : i32
    return %c0_i32, %arg0 : i32, i32
  }
}

module attributes {stable_mosaic.version = 11 : i64} {
  func.func @_conv1_kernel(%arg0: i32, %arg1: i32, %arg2: memref<256x256xf32, #tpu.memory_space<vmem>>, %arg3: memref<1x256xf32, #tpu.memory_space<vmem>>, %arg4: memref<1x256xf32, #tpu.memory_space<vmem>>, %arg5: memref<256x128xbf16, #tpu.memory_space<vmem>>, %arg6: memref<256x128xbf16, #tpu.memory_space<vmem>>, %arg7: memref<8x128xf32, #tpu.memory_space<vmem>>, %arg8: memref<8x128xf32, #tpu.memory_space<vmem>>, %arg9: memref<256x128xf32, #tpu.memory_space<vmem>>) attributes {dimension_semantics = [#tpu.dimension_semantics<parallel>, #tpu.dimension_semantics<arbitrary>], iteration_bounds = array<i64: 2, 1>, scalar_prefetch = 0 : i64, scratch_operands = 1 : i64, tpu.core_type = #tpu.core_type<tc>, window_params = [{transform_indices = @transform_0, window_bounds = array<i64: 256, 256>}, {transform_indices = @transform_1, window_bounds = array<i64: 1, 256>}, {transform_indices = @transform_2, window_bounds = array<i64: 1, 256>}, {transform_indices = @transform_3, window_bounds = array<i64: 256, 128>}, {transform_indices = @transform_4, window_bounds = array<i64: 256, 128>}, {transform_indices = @transform_5, window_bounds = array<i64: 8, 128>}, {transform_indices = @transform_6, window_bounds = array<i64: 8, 128>}]} {
    %c0_i32 = arith.constant 0 : i32
    %0 = arith.cmpi eq, %arg1, %c0_i32 : i32
    %1 = arith.extui %0 : i1 to i32
    %c0_i32_0 = arith.constant 0 : i32
    %2 = arith.cmpi ne, %1, %c0_i32_0 : i32
    scf.if %2 {
      %cst_18 = arith.constant 0.000000e+00 : f32
      %32 = vector.broadcast %cst_18 : f32 to vector<256x128xf32>
      %c0_19 = arith.constant 0 : index
      %c0_20 = arith.constant 0 : index
      %33 = vector.load %arg9[%c0_19, %c0_20] : memref<256x128xf32, #tpu.memory_space<vmem>>, vector<256x128xf32>
      tpu.vector_store %arg9[%c0_19, %c0_20], %32 {strides = array<i32>} : memref<256x128xf32, #tpu.memory_space<vmem>>, vector<256x128xf32>,
    } else {
    }
    %c0 = arith.constant 0 : index
    %c0_1 = arith.constant 0 : index
    %3 = vector.load %arg2[%c0, %c0_1] : memref<256x256xf32, #tpu.memory_space<vmem>>, vector<256x256xf32>
    %c0_2 = arith.constant 0 : index
    %c0_3 = arith.constant 0 : index
    %4 = vector.load %arg3[%c0_2, %c0_3] : memref<1x256xf32, #tpu.memory_space<vmem>>, vector<1x256xf32>
    %5 = vector.broadcast %4 : vector<1x256xf32> to vector<256x256xf32>
    %6 = arith.mulf %3, %5 : vector<256x256xf32>
    %c0_4 = arith.constant 0 : index
    %c0_5 = arith.constant 0 : index
    %7 = vector.load %arg4[%c0_4, %c0_5] : memref<1x256xf32, #tpu.memory_space<vmem>>, vector<1x256xf32>
    %8 = vector.broadcast %7 : vector<1x256xf32> to vector<256x256xf32>
    %9 = arith.addf %6, %8 : vector<256x256xf32>
    %10 = arith.mulf %9, %9 : vector<256x256xf32>
    %11 = arith.mulf %9, %10 : vector<256x256xf32>
    %cst = arith.constant 4.471500e-02 : f32
    %12 = vector.broadcast %cst : f32 to vector<256x256xf32>
    %13 = arith.mulf %12, %11 : vector<256x256xf32>
    %14 = arith.addf %9, %13 : vector<256x256xf32>
    %cst_6 = arith.constant 0.797884583 : f32
    %15 = vector.broadcast %cst_6 : f32 to vector<256x256xf32>
    %16 = arith.mulf %15, %14 : vector<256x256xf32>
    %17 = math.tanh %16 : vector<256x256xf32>
    %cst_7 = arith.constant 1.000000e+00 : f32
    %18 = vector.broadcast %cst_7 : f32 to vector<256x256xf32>
    %19 = arith.addf %18, %17 : vector<256x256xf32>
    %cst_8 = arith.constant 5.000000e-01 : f32
    %20 = vector.broadcast %cst_8 : f32 to vector<256x256xf32>
    %21 = arith.mulf %20, %19 : vector<256x256xf32>
    %22 = arith.mulf %9, %21 : vector<256x256xf32>
    %c0_9 = arith.constant 0 : index
    %c0_10 = arith.constant 0 : index
    %23 = vector.load %arg9[%c0_9, %c0_10] : memref<256x128xf32, #tpu.memory_space<vmem>>, vector<256x128xf32>
    %24 = arith.truncf %22 : vector<256x256xf32> to vector<256x256xbf16>
    %c0_11 = arith.constant 0 : index
    %c0_12 = arith.constant 0 : index
    %25 = vector.load %arg5[%c0_11, %c0_12] : memref<256x128xbf16, #tpu.memory_space<vmem>>, vector<256x128xbf16>
    %cst_13 = arith.constant dense<0.000000e+00> : vector<256x128xf32>
    %26 = tpu.matmul %24, %25, %cst_13 {dimension_numbers = #tpu.dot_dimension_numbers<[1], [0], [0], [1], [0, 0, 1, 1], [], []>} : vector<256x256xbf16>, vector<256x128xbf16>, vector<256x128xf32> -> vector<256x128xf32>
    %27 = arith.addf %23, %26 : vector<256x128xf32>
    %c0_14 = arith.constant 0 : index
    %c0_15 = arith.constant 0 : index
    %28 = vector.load %arg9[%c0_14, %c0_15] : memref<256x128xf32, #tpu.memory_space<vmem>>, vector<256x128xf32>
    tpu.vector_store %arg9[%c0_14, %c0_15], %27 {strides = array<i32>} : memref<256x128xf32, #tpu.memory_space<vmem>>, vector<256x128xf32>,
    %c0_i32_16 = arith.constant 0 : i32
    %29 = arith.cmpi eq, %arg1, %c0_i32_16 : i32
    %30 = arith.extui %29 : i1 to i32
    %c0_i32_17 = arith.constant 0 : i32
    %31 = arith.cmpi ne, %30, %c0_i32_17 : i32
    scf.if %31 {
      %c0_18 = arith.constant 0 : index
      %c0_19 = arith.constant 0 : index
      %32 = vector.load %arg9[%c0_18, %c0_19] : memref<256x128xf32, #tpu.memory_space<vmem>>, vector<256x128xf32>
      %33 = arith.truncf %32 : vector<256x128xf32> to vector<256x128xbf16>
      %c0_20 = arith.constant 0 : index
      %c0_21 = arith.constant 0 : index
      %34 = vector.load %arg6[%c0_20, %c0_21] : memref<256x128xbf16, #tpu.memory_space<vmem>>, vector<256x128xbf16>
      tpu.vector_store %arg6[%c0_20, %c0_21], %33 {strides = array<i32>} : memref<256x128xbf16, #tpu.memory_space<vmem>>, vector<256x128xbf16>,
      %35 = vector.shape_cast %32 : vector<256x128xf32> to vector<32x8x128xf32>
      %cst_22 = arith.constant dense<0.000000e+00> : vector<8x128xf32>
      %36 = vector.multi_reduction <add>, %35, %cst_22 [0] : vector<32x8x128xf32> to vector<8x128xf32>
      %c0_23 = arith.constant 0 : index
      %c0_24 = arith.constant 0 : index
      %37 = vector.load %arg7[%c0_23, %c0_24] : memref<8x128xf32, #tpu.memory_space<vmem>>, vector<8x128xf32>
      tpu.vector_store %arg7[%c0_23, %c0_24], %36 {strides = array<i32>} : memref<8x128xf32, #tpu.memory_space<vmem>>, vector<8x128xf32>,
      %38 = arith.mulf %35, %35 : vector<32x8x128xf32>
      %cst_25 = arith.constant dense<0.000000e+00> : vector<8x128xf32>
      %39 = vector.multi_reduction <add>, %38, %cst_25 [0] : vector<32x8x128xf32> to vector<8x128xf32>
      %c0_26 = arith.constant 0 : index
      %c0_27 = arith.constant 0 : index
      %40 = vector.load %arg8[%c0_26, %c0_27] : memref<8x128xf32, #tpu.memory_space<vmem>>, vector<8x128xf32>
      tpu.vector_store %arg8[%c0_26, %c0_27], %39 {strides = array<i32>} : memref<8x128xf32, #tpu.memory_space<vmem>>, vector<8x128xf32>,
    } else {
    }
    return
  }
  func.func @transform_0(%arg0: i32, %arg1: i32) -> (i32, i32) {
    %c0_i32 = arith.constant 0 : i32
    return %arg0, %arg1 : i32, i32
  }
  func.func @transform_1(%arg0: i32, %arg1: i32) -> (i32, i32) {
    %c0_i32 = arith.constant 0 : i32
    %c0_i32_0 = arith.constant 0 : i32
    return %c0_i32, %arg1 : i32, i32
  }
  func.func @transform_2(%arg0: i32, %arg1: i32) -> (i32, i32) {
    %c0_i32 = arith.constant 0 : i32
    %c0_i32_0 = arith.constant 0 : i32
    return %c0_i32, %arg1 : i32, i32
  }
  func.func @transform_3(%arg0: i32, %arg1: i32) -> (i32, i32) {
    %c0_i32 = arith.constant 0 : i32
    %c0_i32_0 = arith.constant 0 : i32
    return %arg1, %c0_i32 : i32, i32
  }
  func.func @transform_4(%arg0: i32, %arg1: i32) -> (i32, i32) {
    %c0_i32 = arith.constant 0 : i32
    %c0_i32_0 = arith.constant 0 : i32
    return %arg0, %c0_i32 : i32, i32
  }
  func.func @transform_5(%arg0: i32, %arg1: i32) -> (i32, i32) {
    %c0_i32 = arith.constant 0 : i32
    %c0_i32_0 = arith.constant 0 : i32
    return %arg0, %c0_i32 : i32, i32
  }
  func.func @transform_6(%arg0: i32, %arg1: i32) -> (i32, i32) {
    %c0_i32 = arith.constant 0 : i32
    %c0_i32_0 = arith.constant 0 : i32
    return %arg0, %c0_i32 : i32, i32
  }
}

module attributes {stable_mosaic.version = 11 : i64} {
  func.func @_fused_window_attn_kernel(%arg0: i32, %arg1: memref<64x128xbf16, #tpu.memory_space<vmem>>, %arg2: memref<64x256xf32, #tpu.memory_space<vmem>>, %arg3: memref<128x384xbf16, #tpu.memory_space<vmem>>, %arg4: memref<1x384xf32, #tpu.memory_space<vmem>>, %arg5: memref<128x256xbf16, #tpu.memory_space<vmem>>, %arg6: memref<1x256xf32, #tpu.memory_space<vmem>>, %arg7: memref<16x16xf32, #tpu.memory_space<vmem>>, %arg8: memref<64x256xf32, #tpu.memory_space<vmem>>) attributes {dimension_semantics = [#tpu.dimension_semantics<parallel>], iteration_bounds = array<i64: 8>, scalar_prefetch = 0 : i64, scratch_operands = 0 : i64, tpu.core_type = #tpu.core_type<tc>, window_params = [{transform_indices = @transform_0, window_bounds = array<i64: 64, 128>}, {transform_indices = @transform_1, window_bounds = array<i64: 64, 256>}, {pipeline_mode = #tpu.pipeline_mode<synchronous>, transform_indices = @transform_2, window_bounds = array<i64: 128, 384>}, {pipeline_mode = #tpu.pipeline_mode<synchronous>, transform_indices = @transform_3, window_bounds = array<i64: 1, 384>}, {pipeline_mode = #tpu.pipeline_mode<synchronous>, transform_indices = @transform_4, window_bounds = array<i64: 128, 256>}, {pipeline_mode = #tpu.pipeline_mode<synchronous>, transform_indices = @transform_5, window_bounds = array<i64: 1, 256>}, {pipeline_mode = #tpu.pipeline_mode<synchronous>, transform_indices = @transform_6, window_bounds = array<i64: 16, 16>}, {transform_indices = @transform_7, window_bounds = array<i64: 64, 256>}]} {
    %c0 = arith.constant 0 : index
    %c0_0 = arith.constant 0 : index
    %0 = vector.load %arg1[%c0, %c0_0] : memref<64x128xbf16, #tpu.memory_space<vmem>>, vector<64x128xbf16>
    %1 = vector.shape_cast %0 : vector<64x128xbf16> to vector<4x4x4x128xbf16>
    %2 = tpu.transpose %1, [1, 0, 2, 3] : vector<4x4x4x128xbf16> -> vector<4x4x4x128xbf16>
    %3 = vector.shape_cast %2 : vector<4x4x4x128xbf16> to vector<64x128xbf16>
    %c0_1 = arith.constant 0 : index
    %c0_2 = arith.constant 0 : index
    %4 = vector.load %arg3[%c0_1, %c0_2] : memref<128x384xbf16, #tpu.memory_space<vmem>>, vector<128x384xbf16>
    %cst = arith.constant dense<0.000000e+00> : vector<64x384xf32>
    %5 = tpu.matmul %3, %4, %cst {dimension_numbers = #tpu.dot_dimension_numbers<[1], [0], [0], [1], [0, 0, 1, 1], [], []>} : vector<64x128xbf16>, vector<128x384xbf16>, vector<64x384xf32> -> vector<64x384xf32>
    %c0_3 = arith.constant 0 : index
    %c0_4 = arith.constant 0 : index
    %6 = vector.load %arg4[%c0_3, %c0_4] : memref<1x384xf32, #tpu.memory_space<vmem>>, vector<1x384xf32>
    %7 = vector.broadcast %6 : vector<1x384xf32> to vector<64x384xf32>
    %8 = arith.addf %5, %7 : vector<64x384xf32>
    %9 = arith.truncf %8 : vector<64x384xf32> to vector<64x384xbf16>
    %10 = vector.shape_cast %9 : vector<64x384xbf16> to vector<4x16x384xbf16>
    %c0_5 = arith.constant 0 : index
    %c0_6 = arith.constant 0 : index
    %11 = vector.load %arg7[%c0_5, %c0_6] : memref<16x16xf32, #tpu.memory_space<vmem>>, vector<16x16xf32>
    %12 = vector.shape_cast %11 : vector<16x16xf32> to vector<1x16x16xf32>
    %cst_7 = arith.constant 0.000000e+00 : f32
    %13 = vector.broadcast %cst_7 : f32 to vector<64x256xf32>
    %14 = vector.extract_strided_slice %10 {offsets = [0, 0, 0], sizes = [4, 16, 32], strides = [1, 1, 1]} : vector<4x16x384xbf16> to vector<4x16x32xbf16>
    %15 = vector.extract_strided_slice %10 {offsets = [0, 0, 128], sizes = [4, 16, 32], strides = [1, 1, 1]} : vector<4x16x384xbf16> to vector<4x16x32xbf16>
    %16 = vector.extract_strided_slice %10 {offsets = [0, 0, 256], sizes = [4, 16, 32], strides = [1, 1, 1]} : vector<4x16x384xbf16> to vector<4x16x32xbf16>
    "tpu.trace_start"() <{level = 10 : i32, message = "gnd,gmd->gnm"}> : () -> ()
    %cst_8 = arith.constant dense<0.000000e+00> : vector<4x16x16xf32>
    %17 = tpu.matmul %14, %15, %cst_8 {dimension_numbers = #tpu.dot_dimension_numbers<[2], [2], [1], [1], [0, 0, 0, 1, 1, 1], [0], [0]>} : vector<4x16x32xbf16>, vector<4x16x32xbf16>, vector<4x16x16xf32> -> vector<4x16x16xf32>
    "tpu.trace_stop"() : () -> ()
    %18 = vector.broadcast %12 : vector<1x16x16xf32> to vector<4x16x16xf32>
    %19 = arith.addf %17, %18 : vector<4x16x16xf32>
    %cst_9 = arith.constant dense<0xFF800000> : vector<4x16xf32>
    %20 = vector.multi_reduction <maximumf>, %19, %cst_9 [2] : vector<4x16x16xf32> to vector<4x16xf32>
    %21 = vector.shape_cast %20 : vector<4x16xf32> to vector<4x16x1xf32>
    %22 = vector.broadcast %21 : vector<4x16x1xf32> to vector<4x16x16xf32>
    %23 = arith.subf %19, %22 : vector<4x16x16xf32>
    %24 = math.exp %23 : vector<4x16x16xf32>
    %cst_10 = arith.constant dense<0.000000e+00> : vector<4x16xf32>
    %25 = vector.multi_reduction <add>, %24, %cst_10 [2] : vector<4x16x16xf32> to vector<4x16xf32>
    %26 = vector.shape_cast %25 : vector<4x16xf32> to vector<4x16x1xf32>
    %27 = tpu.reciprocal %26 {approx = true} : vector<4x16x1xf32> -> vector<4x16x1xf32>
    %28 = vector.broadcast %27 : vector<4x16x1xf32> to vector<4x16x16xf32>
    %29 = arith.mulf %24, %28 : vector<4x16x16xf32>
    %30 = arith.truncf %29 : vector<4x16x16xf32> to vector<4x16x16xbf16>
    "tpu.trace_start"() <{level = 10 : i32, message = "gnm,gmd->gnd"}> : () -> ()
    %cst_11 = arith.constant dense<0.000000e+00> : vector<4x16x32xf32>
    %31 = tpu.matmul %30, %16, %cst_11 {dimension_numbers = #tpu.dot_dimension_numbers<[2], [1], [1], [2], [0, 0, 0, 1, 1, 2], [0], [0]>} : vector<4x16x16xbf16>, vector<4x16x32xbf16>, vector<4x16x32xf32> -> vector<4x16x32xf32>
    "tpu.trace_stop"() : () -> ()
    %32 = vector.shape_cast %31 : vector<4x16x32xf32> to vector<64x32xf32>
    %33 = arith.truncf %32 : vector<64x32xf32> to vector<64x32xbf16>
    %c0_12 = arith.constant 0 : index
    %c0_13 = arith.constant 0 : index
    %34 = vector.load %arg5[%c0_12, %c0_13] : memref<128x256xbf16, #tpu.memory_space<vmem>>, vector<32x256xbf16>
    %cst_14 = arith.constant dense<0.000000e+00> : vector<64x256xf32>
    %35 = tpu.matmul %33, %34, %cst_14 {dimension_numbers = #tpu.dot_dimension_numbers<[1], [0], [0], [1], [0, 0, 1, 1], [], []>} : vector<64x32xbf16>, vector<32x256xbf16>, vector<64x256xf32> -> vector<64x256xf32>
    %36 = arith.addf %13, %35 : vector<64x256xf32>
    %37 = vector.extract_strided_slice %10 {offsets = [0, 0, 32], sizes = [4, 16, 32], strides = [1, 1, 1]} : vector<4x16x384xbf16> to vector<4x16x32xbf16>
    %38 = vector.extract_strided_slice %10 {offsets = [0, 0, 160], sizes = [4, 16, 32], strides = [1, 1, 1]} : vector<4x16x384xbf16> to vector<4x16x32xbf16>
    %39 = vector.extract_strided_slice %10 {offsets = [0, 0, 288], sizes = [4, 16, 32], strides = [1, 1, 1]} : vector<4x16x384xbf16> to vector<4x16x32xbf16>
    "tpu.trace_start"() <{level = 10 : i32, message = "gnd,gmd->gnm"}> : () -> ()
    %cst_15 = arith.constant dense<0.000000e+00> : vector<4x16x16xf32>
    %40 = tpu.matmul %37, %38, %cst_15 {dimension_numbers = #tpu.dot_dimension_numbers<[2], [2], [1], [1], [0, 0, 0, 1, 1, 1], [0], [0]>} : vector<4x16x32xbf16>, vector<4x16x32xbf16>, vector<4x16x16xf32> -> vector<4x16x16xf32>
    "tpu.trace_stop"() : () -> ()
    %41 = vector.broadcast %12 : vector<1x16x16xf32> to vector<4x16x16xf32>
    %42 = arith.addf %40, %41 : vector<4x16x16xf32>
    %cst_16 = arith.constant dense<0xFF800000> : vector<4x16xf32>
    %43 = vector.multi_reduction <maximumf>, %42, %cst_16 [2] : vector<4x16x16xf32> to vector<4x16xf32>
    %44 = vector.shape_cast %43 : vector<4x16xf32> to vector<4x16x1xf32>
    %45 = vector.broadcast %44 : vector<4x16x1xf32> to vector<4x16x16xf32>
    %46 = arith.subf %42, %45 : vector<4x16x16xf32>
    %47 = math.exp %46 : vector<4x16x16xf32>
    %cst_17 = arith.constant dense<0.000000e+00> : vector<4x16xf32>
    %48 = vector.multi_reduction <add>, %47, %cst_17 [2] : vector<4x16x16xf32> to vector<4x16xf32>
    %49 = vector.shape_cast %48 : vector<4x16xf32> to vector<4x16x1xf32>
    %50 = tpu.reciprocal %49 {approx = true} : vector<4x16x1xf32> -> vector<4x16x1xf32>
    %51 = vector.broadcast %50 : vector<4x16x1xf32> to vector<4x16x16xf32>
    %52 = arith.mulf %47, %51 : vector<4x16x16xf32>
    %53 = arith.truncf %52 : vector<4x16x16xf32> to vector<4x16x16xbf16>
    "tpu.trace_start"() <{level = 10 : i32, message = "gnm,gmd->gnd"}> : () -> ()
    %cst_18 = arith.constant dense<0.000000e+00> : vector<4x16x32xf32>
    %54 = tpu.matmul %53, %39, %cst_18 {dimension_numbers = #tpu.dot_dimension_numbers<[2], [1], [1], [2], [0, 0, 0, 1, 1, 2], [0], [0]>} : vector<4x16x16xbf16>, vector<4x16x32xbf16>, vector<4x16x32xf32> -> vector<4x16x32xf32>
    "tpu.trace_stop"() : () -> ()
    %55 = vector.shape_cast %54 : vector<4x16x32xf32> to vector<64x32xf32>
    %56 = arith.truncf %55 : vector<64x32xf32> to vector<64x32xbf16>
    %c32 = arith.constant 32 : index
    %c0_19 = arith.constant 0 : index
    %57 = vector.load %arg5[%c32, %c0_19] : memref<128x256xbf16, #tpu.memory_space<vmem>>, vector<32x256xbf16>
    %cst_20 = arith.constant dense<0.000000e+00> : vector<64x256xf32>
    %58 = tpu.matmul %56, %57, %cst_20 {dimension_numbers = #tpu.dot_dimension_numbers<[1], [0], [0], [1], [0, 0, 1, 1], [], []>} : vector<64x32xbf16>, vector<32x256xbf16>, vector<64x256xf32> -> vector<64x256xf32>
    %59 = arith.addf %36, %58 : vector<64x256xf32>
    %60 = vector.extract_strided_slice %10 {offsets = [0, 0, 64], sizes = [4, 16, 32], strides = [1, 1, 1]} : vector<4x16x384xbf16> to vector<4x16x32xbf16>
    %61 = vector.extract_strided_slice %10 {offsets = [0, 0, 192], sizes = [4, 16, 32], strides = [1, 1, 1]} : vector<4x16x384xbf16> to vector<4x16x32xbf16>
    %62 = vector.extract_strided_slice %10 {offsets = [0, 0, 320], sizes = [4, 16, 32], strides = [1, 1, 1]} : vector<4x16x384xbf16> to vector<4x16x32xbf16>
    "tpu.trace_start"() <{level = 10 : i32, message = "gnd,gmd->gnm"}> : () -> ()
    %cst_21 = arith.constant dense<0.000000e+00> : vector<4x16x16xf32>
    %63 = tpu.matmul %60, %61, %cst_21 {dimension_numbers = #tpu.dot_dimension_numbers<[2], [2], [1], [1], [0, 0, 0, 1, 1, 1], [0], [0]>} : vector<4x16x32xbf16>, vector<4x16x32xbf16>, vector<4x16x16xf32> -> vector<4x16x16xf32>
    "tpu.trace_stop"() : () -> ()
    %64 = vector.broadcast %12 : vector<1x16x16xf32> to vector<4x16x16xf32>
    %65 = arith.addf %63, %64 : vector<4x16x16xf32>
    %cst_22 = arith.constant dense<0xFF800000> : vector<4x16xf32>
    %66 = vector.multi_reduction <maximumf>, %65, %cst_22 [2] : vector<4x16x16xf32> to vector<4x16xf32>
    %67 = vector.shape_cast %66 : vector<4x16xf32> to vector<4x16x1xf32>
    %68 = vector.broadcast %67 : vector<4x16x1xf32> to vector<4x16x16xf32>
    %69 = arith.subf %65, %68 : vector<4x16x16xf32>
    %70 = math.exp %69 : vector<4x16x16xf32>
    %cst_23 = arith.constant dense<0.000000e+00> : vector<4x16xf32>
    %71 = vector.multi_reduction <add>, %70, %cst_23 [2] : vector<4x16x16xf32> to vector<4x16xf32>
    %72 = vector.shape_cast %71 : vector<4x16xf32> to vector<4x16x1xf32>
    %73 = tpu.reciprocal %72 {approx = true} : vector<4x16x1xf32> -> vector<4x16x1xf32>
    %74 = vector.broadcast %73 : vector<4x16x1xf32> to vector<4x16x16xf32>
    %75 = arith.mulf %70, %74 : vector<4x16x16xf32>
    %76 = arith.truncf %75 : vector<4x16x16xf32> to vector<4x16x16xbf16>
    "tpu.trace_start"() <{level = 10 : i32, message = "gnm,gmd->gnd"}> : () -> ()
    %cst_24 = arith.constant dense<0.000000e+00> : vector<4x16x32xf32>
    %77 = tpu.matmul %76, %62, %cst_24 {dimension_numbers = #tpu.dot_dimension_numbers<[2], [1], [1], [2], [0, 0, 0, 1, 1, 2], [0], [0]>} : vector<4x16x16xbf16>, vector<4x16x32xbf16>, vector<4x16x32xf32> -> vector<4x16x32xf32>
    "tpu.trace_stop"() : () -> ()
    %78 = vector.shape_cast %77 : vector<4x16x32xf32> to vector<64x32xf32>
    %79 = arith.truncf %78 : vector<64x32xf32> to vector<64x32xbf16>
    %c64 = arith.constant 64 : index
    %c0_25 = arith.constant 0 : index
    %80 = vector.load %arg5[%c64, %c0_25] : memref<128x256xbf16, #tpu.memory_space<vmem>>, vector<32x256xbf16>
    %cst_26 = arith.constant dense<0.000000e+00> : vector<64x256xf32>
    %81 = tpu.matmul %79, %80, %cst_26 {dimension_numbers = #tpu.dot_dimension_numbers<[1], [0], [0], [1], [0, 0, 1, 1], [], []>} : vector<64x32xbf16>, vector<32x256xbf16>, vector<64x256xf32> -> vector<64x256xf32>
    %82 = arith.addf %59, %81 : vector<64x256xf32>
    %83 = vector.extract_strided_slice %10 {offsets = [0, 0, 96], sizes = [4, 16, 32], strides = [1, 1, 1]} : vector<4x16x384xbf16> to vector<4x16x32xbf16>
    %84 = vector.extract_strided_slice %10 {offsets = [0, 0, 224], sizes = [4, 16, 32], strides = [1, 1, 1]} : vector<4x16x384xbf16> to vector<4x16x32xbf16>
    %85 = vector.extract_strided_slice %10 {offsets = [0, 0, 352], sizes = [4, 16, 32], strides = [1, 1, 1]} : vector<4x16x384xbf16> to vector<4x16x32xbf16>
    "tpu.trace_start"() <{level = 10 : i32, message = "gnd,gmd->gnm"}> : () -> ()
    %cst_27 = arith.constant dense<0.000000e+00> : vector<4x16x16xf32>
    %86 = tpu.matmul %83, %84, %cst_27 {dimension_numbers = #tpu.dot_dimension_numbers<[2], [2], [1], [1], [0, 0, 0, 1, 1, 1], [0], [0]>} : vector<4x16x32xbf16>, vector<4x16x32xbf16>, vector<4x16x16xf32> -> vector<4x16x16xf32>
    "tpu.trace_stop"() : () -> ()
    %87 = vector.broadcast %12 : vector<1x16x16xf32> to vector<4x16x16xf32>
    %88 = arith.addf %86, %87 : vector<4x16x16xf32>
    %cst_28 = arith.constant dense<0xFF800000> : vector<4x16xf32>
    %89 = vector.multi_reduction <maximumf>, %88, %cst_28 [2] : vector<4x16x16xf32> to vector<4x16xf32>
    %90 = vector.shape_cast %89 : vector<4x16xf32> to vector<4x16x1xf32>
    %91 = vector.broadcast %90 : vector<4x16x1xf32> to vector<4x16x16xf32>
    %92 = arith.subf %88, %91 : vector<4x16x16xf32>
    %93 = math.exp %92 : vector<4x16x16xf32>
    %cst_29 = arith.constant dense<0.000000e+00> : vector<4x16xf32>
    %94 = vector.multi_reduction <add>, %93, %cst_29 [2] : vector<4x16x16xf32> to vector<4x16xf32>
    %95 = vector.shape_cast %94 : vector<4x16xf32> to vector<4x16x1xf32>
    %96 = tpu.reciprocal %95 {approx = true} : vector<4x16x1xf32> -> vector<4x16x1xf32>
    %97 = vector.broadcast %96 : vector<4x16x1xf32> to vector<4x16x16xf32>
    %98 = arith.mulf %93, %97 : vector<4x16x16xf32>
    %99 = arith.truncf %98 : vector<4x16x16xf32> to vector<4x16x16xbf16>
    "tpu.trace_start"() <{level = 10 : i32, message = "gnm,gmd->gnd"}> : () -> ()
    %cst_30 = arith.constant dense<0.000000e+00> : vector<4x16x32xf32>
    %100 = tpu.matmul %99, %85, %cst_30 {dimension_numbers = #tpu.dot_dimension_numbers<[2], [1], [1], [2], [0, 0, 0, 1, 1, 2], [0], [0]>} : vector<4x16x16xbf16>, vector<4x16x32xbf16>, vector<4x16x32xf32> -> vector<4x16x32xf32>
    "tpu.trace_stop"() : () -> ()
    %101 = vector.shape_cast %100 : vector<4x16x32xf32> to vector<64x32xf32>
    %102 = arith.truncf %101 : vector<64x32xf32> to vector<64x32xbf16>
    %c96 = arith.constant 96 : index
    %c0_31 = arith.constant 0 : index
    %103 = vector.load %arg5[%c96, %c0_31] : memref<128x256xbf16, #tpu.memory_space<vmem>>, vector<32x256xbf16>
    %cst_32 = arith.constant dense<0.000000e+00> : vector<64x256xf32>
    %104 = tpu.matmul %102, %103, %cst_32 {dimension_numbers = #tpu.dot_dimension_numbers<[1], [0], [0], [1], [0, 0, 1, 1], [], []>} : vector<64x32xbf16>, vector<32x256xbf16>, vector<64x256xf32> -> vector<64x256xf32>
    %105 = arith.addf %82, %104 : vector<64x256xf32>
    %106 = vector.shape_cast %105 : vector<64x256xf32> to vector<4x4x4x256xf32>
    %107 = tpu.transpose %106, [1, 0, 2, 3] : vector<4x4x4x256xf32> -> vector<4x4x4x256xf32>
    %108 = vector.shape_cast %107 : vector<4x4x4x256xf32> to vector<64x256xf32>
    %c0_33 = arith.constant 0 : index
    %c0_34 = arith.constant 0 : index
    %109 = vector.load %arg6[%c0_33, %c0_34] : memref<1x256xf32, #tpu.memory_space<vmem>>, vector<1x256xf32>
    %110 = vector.broadcast %109 : vector<1x256xf32> to vector<64x256xf32>
    %111 = arith.addf %108, %110 : vector<64x256xf32>
    %c0_35 = arith.constant 0 : index
    %c0_36 = arith.constant 0 : index
    %112 = vector.load %arg2[%c0_35, %c0_36] : memref<64x256xf32, #tpu.memory_space<vmem>>, vector<64x256xf32>
    %113 = arith.addf %111, %112 : vector<64x256xf32>
    %c0_37 = arith.constant 0 : index
    %c0_38 = arith.constant 0 : index
    %114 = vector.load %arg8[%c0_37, %c0_38] : memref<64x256xf32, #tpu.memory_space<vmem>>, vector<64x256xf32>
    tpu.vector_store %arg8[%c0_37, %c0_38], %113 {strides = array<i32>} : memref<64x256xf32, #tpu.memory_space<vmem>>, vector<64x256xf32>,
    return
  }
  func.func @transform_0(%arg0: i32) -> (i32, i32) {
    %c0_i32 = arith.constant 0 : i32
    %c0_i32_0 = arith.constant 0 : i32
    return %arg0, %c0_i32 : i32, i32
  }
  func.func @transform_1(%arg0: i32) -> (i32, i32) {
    %c0_i32 = arith.constant 0 : i32
    %c0_i32_0 = arith.constant 0 : i32
    return %arg0, %c0_i32 : i32, i32
  }
  func.func @transform_2(%arg0: i32) -> (i32, i32) {
    %c0_i32 = arith.constant 0 : i32
    %c0_i32_0 = arith.constant 0 : i32
    %c0_i32_1 = arith.constant 0 : i32
    return %c0_i32, %c0_i32_0 : i32, i32
  }
  func.func @transform_3(%arg0: i32) -> (i32, i32) {
    %c0_i32 = arith.constant 0 : i32
    %c0_i32_0 = arith.constant 0 : i32
    %c0_i32_1 = arith.constant 0 : i32
    return %c0_i32, %c0_i32_0 : i32, i32
  }
  func.func @transform_4(%arg0: i32) -> (i32, i32) {
    %c0_i32 = arith.constant 0 : i32
    %c0_i32_0 = arith.constant 0 : i32
    %c0_i32_1 = arith.constant 0 : i32
    return %c0_i32, %c0_i32_0 : i32, i32
  }
  func.func @transform_5(%arg0: i32) -> (i32, i32) {
    %c0_i32 = arith.constant 0 : i32
    %c0_i32_0 = arith.constant 0 : i32
    %c0_i32_1 = arith.constant 0 : i32
    return %c0_i32, %c0_i32_0 : i32, i32
  }
  func.func @transform_6(%arg0: i32) -> (i32, i32) {
    %c0_i32 = arith.constant 0 : i32
    %c0_i32_0 = arith.constant 0 : i32
    %c0_i32_1 = arith.constant 0 : i32
    return %c0_i32, %c0_i32_0 : i32, i32
  }
  func.func @transform_7(%arg0: i32) -> (i32, i32) {
    %c0_i32 = arith.constant 0 : i32
    %c0_i32_0 = arith.constant 0 : i32
    return %arg0, %c0_i32 : i32, i32
  }
}

</mosaic_0001>

<llo_original>
// kernel: attention_block_b_forward.3
$region0: #{attention_block_b_forward.3}
  #allocation0 [shape = 'u32[]', space=smem, size = 0x4, offset = 0x4, fixed_abs, tag = 'smem constant byte address 0x4 - core index']
  #allocation1 [shape = 'u32[144,128]{1,0:T(1,128)}', space=vmem, size = 0x12000, scoped, tag = 'internal scratch']
  %s0 = inlined_call_operand.vmem [shape: f32[512,256], index: 0, kind: input, shape index: {}]
  %s1 = inlined_call_operand.vmem [shape: f32[8,256], index: 1, kind: output, shape index: {0}]
  %s2 = inlined_call_operand.vmem [shape: f32[8,256], index: 2, kind: output, shape index: {1}]
  %3 = xla_tuple %s1, %s2
  %s4 = sld [smem:[#allocation0]]
  $region87: #{attention_block_b_forward.3} parent=0
    _
  %s6 = ssub.s32 1, %s4
  %s7 = scalar_select 0, %s6, %s4
  $region1: #{attention_block_b_forward.3} parent=0
    #allocation2 [shape = 'u8[262144]{0}', space=vmem, size = 0x40000, scoped, tag = 'input window, operand 0']
    loop: start=0, step=1, limit=6
    $region2: #{attention_block_b_forward.3} parent=1 // loop_pre_header
      _
    $region3: #{attention_block_b_forward.3} parent=1 // loop_header
      %s9 = sphi 0, %s13
      %p10 = scmp.ge.s32.totalorder %s9, 6
      %s16 = sphi 0, %s28
      %s17 = sphi 0, %s24
      %s18 = sphi 0, %s16
      %s19 = sphi 0, %s17
      %s20 = sphi 0, %s18
      %s21 = sphi 0, %s19
      %s33 = sphi 0, %s35
      %s36 = sphi 0, %s33
      %s37 = sphi 0, %s36
      %s53 = sphi 0, %s37
      %s59 = sphi 0, %s61
      %s62 = sphi 0, %s59
      %s63 = sphi 0, %s62
      %s79 = sphi 0, %s63
      %s85 = sphi 0, %s87
      %s88 = sphi 0, %s85
      %s89 = sphi 0, %s88
      %s105 = sphi 0, %s89
    $region4: #{attention_block_b_forward.3} parent=1 // loop_header_branch
      %12 = sbr.rel (%p10) target = $region8
    $region5: #{attention_block_b_forward.3} parent=1 // loop_body
      %s14 = ssub.s32 %s9, 1
      %s15 = ssub.s32 %s9, 2
      %s22 = sadd.s32 1, %s17
      %p23 = scmp.ge.s32.totalorder %s22, 2
      %s24 = scalar_select %p23, 0, %s22
      %s25 = sadd.s32 1, %s16
      %s26 = scalar_select %p23, %s25, %s16
      %p27 = scmp.ge.s32.totalorder %s26, 2
      %s28 = scalar_select %p27, 0, %s26
      %s29 = ssub.s32 %s17, %s24
      %s30 = ssub.s32 %s16, %s28
      %s31 = sor.u32 %s29, %s30
      %p32 = scmp.eq.s32.totalorder %s31, 0
      %s34 = sadd.s32 %s33, 1
      %s35 = scalar_select %p32, %s33, %s34
      %p38 = pneg %p32
      %p39 = scmp.eq.s32.totalorder %s9, 3
      %p40 = por %p38, %p39
      %p41 = scmp.ne.s32.totalorder %s33, %s36
      %p42 = scmp.eq.s32.totalorder %s9, 0
      %p43 = por %p41, %p42
      %p44 = scmp.ne.s32.totalorder %s33, %s36
      %p45 = scmp.eq.s32.totalorder %s14, 3
      %p46 = por %p44, %p45
      %p47 = scmp.ne.s32.totalorder %s36, %s37
      %p48 = scmp.eq.s32.totalorder %s14, 0
      %p49 = por %p47, %p48
      %p50 = scmp.ne.s32.totalorder %s36, %s37
      %p51 = scmp.eq.s32.totalorder %s15, 3
      %p52 = por %p50, %p51
      %p54 = scmp.ne.s32.totalorder %s37, %s53
      %p55 = scmp.eq.s32.totalorder %s15, 0
      %p56 = por %p54, %p55
      %s57 = ssub.s32 %s16, %s28
      %p58 = scmp.eq.s32.totalorder %s57, 0
      %s60 = sadd.s32 %s59, 1
      %s61 = scalar_select %p58, %s59, %s60
      %p64 = pneg %p58
      %p65 = scmp.eq.s32.totalorder %s9, 3
      %p66 = por %p64, %p65
      %p67 = scmp.ne.s32.totalorder %s59, %s62
      %p68 = scmp.eq.s32.totalorder %s9, 0
      %p69 = por %p67, %p68
      %p70 = scmp.ne.s32.totalorder %s59, %s62
      %p71 = scmp.eq.s32.totalorder %s14, 3
      %p72 = por %p70, %p71
      %p73 = scmp.ne.s32.totalorder %s62, %s63
      %p74 = scmp.eq.s32.totalorder %s14, 0
      %p75 = por %p73, %p74
      %p76 = scmp.ne.s32.totalorder %s62, %s63
      %p77 = scmp.eq.s32.totalorder %s15, 3
      %p78 = por %p76, %p77
      %p80 = scmp.ne.s32.totalorder %s63, %s79
      %p81 = scmp.eq.s32.totalorder %s15, 0
      %p82 = por %p80, %p81
      %s83 = ssub.s32 %s16, %s28
      %p84 = scmp.eq.s32.totalorder %s83, 0
      %s86 = sadd.s32 %s85, 1
      %s87 = scalar_select %p84, %s85, %s86
      %p90 = pneg %p84
      %p91 = scmp.eq.s32.totalorder %s9, 3
      %p92 = por %p90, %p91
      %p93 = scmp.ne.s32.totalorder %s85, %s88
      %p94 = scmp.eq.s32.totalorder %s9, 0
      %p95 = por %p93, %p94
      %p96 = scmp.ne.s32.totalorder %s85, %s88
      %p97 = scmp.eq.s32.totalorder %s14, 3
      %p98 = por %p96, %p97
      %p99 = scmp.ne.s32.totalorder %s88, %s89
      %p100 = scmp.eq.s32.totalorder %s14, 0
      %p101 = por %p99, %p100
      %p102 = scmp.ne.s32.totalorder %s88, %s89
      %p103 = scmp.eq.s32.totalorder %s15, 3
      %p104 = por %p102, %p103
      %p106 = scmp.ne.s32.totalorder %s89, %s105
      %p107 = scmp.eq.s32.totalorder %s15, 0
      %p108 = por %p106, %p107
      %p109 = scmp.le.s32.totalorder 1, %s9
      %p110 = scmp.lt.s32.totalorder %s9, 5
      %p111 = pnand %p109, %p110
      %p112 = pneg %p111
      // Predicated region
      $region9: #{attention_block_b_forward.3} parent=5 // pred_check
        _
      $region10: #{attention_block_b_forward.3} parent=5 // pred_check_branch
        %114 = sbr.rel (%p111) target = $region12
      $region11: #{attention_block_b_forward.3} parent=5 // pred_region
        %s115 = ssub.s32 %s9, 1
      $region12: #{attention_block_b_forward.3} parent=5 // pred_fallthru
        _
      %p116 = scmp.lt.s32.totalorder %s9, 4
      // Predicated region
      $region13: #{attention_block_b_forward.3} parent=5 // pred_check
        %p117 = pneg %p116
      $region14: #{attention_block_b_forward.3} parent=5 // pred_check_branch
        %119 = sbr.rel (%p117) target = $region16
      $region15: #{attention_block_b_forward.3} parent=5 // pred_region
        // Predicated region
        $region17: #{attention_block_b_forward.3} parent=15 // pred_check
          %p120 = pneg %p43
        $region18: #{attention_block_b_forward.3} parent=15 // pred_check_branch
          %122 = sbr.rel (%p120) target = $region20
        $region19: #{attention_block_b_forward.3} parent=15 // pred_region
          %s123 = sand.u32 %s33, 1
          %s124 = sand.u32 %s33, 1
          %s125 = smul.addr %s124, 256
          %s126 = scalar_lea.vmem [#allocation2], %s125
          %s127 = smul.u32 32, %s17
          %s128 = smul.addr %s127, 2
          %s129 = sadd.s32 %s16, %s128
          %s130 = smul.addr %s129, 8
          %s131 = scalar_lea.vmem %s0, %s130
          // Predicated region
          $region21: #{attention_block_b_forward.3} parent=19 // pred_check
            _
          $region22: #{attention_block_b_forward.3} parent=19 // pred_check_branch
            %133 = sbr.rel (0) target = $region24
          $region23: #{attention_block_b_forward.3} parent=19 // pred_region
            // Predicated region
            $region25: #{attention_block_b_forward.3} parent=23 // pred_check
              _
            $region26: #{attention_block_b_forward.3} parent=23 // pred_check_branch
              %135 = sbr.rel (0) target = $region28
            $region27: #{attention_block_b_forward.3} parent=23 // pred_region
              // Predicated region
              $region40: #{attention_block_b_forward.3} parent=27 // pred_check
                _
              $region41: #{attention_block_b_forward.3} parent=27 // pred_check_branch
                %212 = sbr.rel (0) target = $region43
              $region42: #{attention_block_b_forward.3} parent=27 // pred_region
                loop: start=0, step=1, limit=1
                $region44: #{attention_block_b_forward.3} parent=42 // loop_pre_header
                  _
                $region45: #{attention_block_b_forward.3} parent=42 // loop_header
                  %s214 = sphi 0, %s218
                  %p215 = scmp.ge.s32.totalorder %s214, 1
                  %s219 = sphi %s131, %s131
                  %s220 = sphi %s126, %s126
                $region46: #{attention_block_b_forward.3} parent=42 // loop_header_branch
                  %217 = sbr.rel (%p215) target = $region50
                $region47: #{attention_block_b_forward.3} parent=42 // loop_body
                  %v221 = vld [vmem:[%s219] sm:$0xff]
                  %222 = vst [vmem:[%s220] sm:$0xff] %v221
                  %v223 = vld [vmem:[%s219 + $0x10] sm:$0xff]
                  %224 = vst [vmem:[%s220 + $0x8] sm:$0xff] %v223
                  %v225 = vld [vmem:[%s219 + $0x20] sm:$0xff]
                  %226 = vst [vmem:[%s220 + $0x10] sm:$0xff] %v225
                  %v227 = vld [vmem:[%s219 + $0x30] sm:$0xff]
                  %228 = vst [vmem:[%s220 + $0x18] sm:$0xff] %v227
                  %v229 = vld [vmem:[%s219 + $0x40] sm:$0xff]
                  %230 = vst [vmem:[%s220 + $0x20] sm:$0xff] %v229
                  %v231 = vld [vmem:[%s219 + $0x50] sm:$0xff]
                  %232 = vst [vmem:[%s220 + $0x28] sm:$0xff] %v231
                  %v233 = vld [vmem:[%s219 + $0x60] sm:$0xff]
                  %234 = vst [vmem:[%s220 + $0x30] sm:$0xff] %v233
                  %v235 = vld [vmem:[%s219 + $0x70] sm:$0xff]
                  %236 = vst [vmem:[%s220 + $0x38] sm:$0xff] %v235
                  %v237 = vld [vmem:[%s219 + $0x80] sm:$0xff]
                  %238 = vst [vmem:[%s220 + $0x40] sm:$0xff] %v237
                  %v239 = vld [vmem:[%s219 + $0x90] sm:$0xff]
                  %240 = vst [vmem:[%s220 + $0x48] sm:$0xff] %v239
                  %v241 = vld [vmem:[%s219 + $0xa0] sm:$0xff]
                  %242 = vst [vmem:[%s220 + $0x50] sm:$0xff] %v241
                  %v243 = vld [vmem:[%s219 + $0xb0] sm:$0xff]
                  %244 = vst [vmem:[%s220 + $0x58] sm:$0xff] %v243
                  %v245 = vld [vmem:[%s219 + $0xc0] sm:$0xff]
                  %246 = vst [vmem:[%s220 + $0x60] sm:$0xff] %v245
                  %v247 = vld [vmem:[%s219 + $0xd0] sm:$0xff]
                  %248 = vst [vmem:[%s220 + $0x68] sm:$0xff] %v247
                  %v249 = vld [vmem:[%s219 + $0xe0] sm:$0xff]
                  %250 = vst [vmem:[%s220 + $0x70] sm:$0xff] %v249
                  %v251 = vld [vmem:[%s219 + $0xf0] sm:$0xff]
                  %252 = vst [vmem:[%s220 + $0x78] sm:$0xff] %v251
                  %v253 = vld [vmem:[%s219 + $0x100] sm:$0xff]
                  %254 = vst [vmem:[%s220 + $0x80] sm:$0xff] %v253
                  %v255 = vld [vmem:[%s219 + $0x110] sm:$0xff]
                  %256 = vst [vmem:[%s220 + $0x88] sm:$0xff] %v255
                  %v257 = vld [vmem:[%s219 + $0x120] sm:$0xff]
                  %258 = vst [vmem:[%s220 + $0x90] sm:$0xff] %v257
                  %v259 = vld [vmem:[%s219 + $0x130] sm:$0xff]
                  %260 = vst [vmem:[%s220 + $0x98] sm:$0xff] %v259
                  %v261 = vld [vmem:[%s219 + $0x140] sm:$0xff]
                  %262 = vst [vmem:[%s220 + $0xa0] sm:$0xff] %v261
                  %v263 = vld [vmem:[%s219 + $0x150] sm:$0xff]
                  %264 = vst [vmem:[%s220 + $0xa8] sm:$0xff] %v263
                  %v265 = vld [vmem:[%s219 + $0x160] sm:$0xff]
                  %266 = vst [vmem:[%s220 + $0xb0] sm:$0xff] %v265
                  %v267 = vld [vmem:[%s219 + $0x170] sm:$0xff]
                  %268 = vst [vmem:[%s220 + $0xb8] sm:$0xff] %v267
                  %v269 = vld [vmem:[%s219 + $0x180] sm:$0xff]
                  %270 = vst [vmem:[%s220 + $0xc0] sm:$0xff] %v269
                  %v271 = vld [vmem:[%s219 + $0x190] sm:$0xff]
                  %272 = vst [vmem:[%s220 + $0xc8] sm:$0xff] %v271
                  %v273 = vld [vmem:[%s219 + $0x1a0] sm:$0xff]
                  %274 = vst [vmem:[%s220 + $0xd0] sm:$0xff] %v273
                  %v275 = vld [vmem:[%s219 + $0x1b0] sm:$0xff]
                  %276 = vst [vmem:[%s220 + $0xd8] sm:$0xff] %v275
                  %v277 = vld [vmem:[%s219 + $0x1c0] sm:$0xff]
                  %278 = vst [vmem:[%s220 + $0xe0] sm:$0xff] %v277
                  %v279 = vld [vmem:[%s219 + $0x1d0] sm:$0xff]
                  %280 = vst [vmem:[%s220 + $0xe8] sm:$0xff] %v279
                  %v281 = vld [vmem:[%s219 + $0x1e0] sm:$0xff]
                  %282 = vst [vmem:[%s220 + $0xf0] sm:$0xff] %v281
                  %v283 = vld [vmem:[%s219 + $0x1f0] sm:$0xff]
                  %284 = vst [vmem:[%s220 + $0xf8] sm:$0xff] %v283
                $region48: #{attention_block_b_forward.3} parent=42 // loop_footer
                  %s218 = sadd.s32 1, %s214
                $region49: #{attention_block_b_forward.3} parent=42 // loop_footer_branch
                  %213 = sbr.rel target = $region45
                $region50: #{attention_block_b_forward.3} parent=42 // loop_exit
                  _
              $region43: #{attention_block_b_forward.3} parent=27 // pred_fallthru
                _
              // Predicated region
              $region51: #{attention_block_b_forward.3} parent=27 // pred_check
                _
              $region52: #{attention_block_b_forward.3} parent=27 // pred_check_branch
                %286 = sbr.rel target = $region54
              $region53: #{attention_block_b_forward.3} parent=27 // pred_region
                _
              $region54: #{attention_block_b_forward.3} parent=27 // pred_fallthru
                _
            $region28: #{attention_block_b_forward.3} parent=23 // pred_fallthru
              _
            // Predicated region
            $region29: #{attention_block_b_forward.3} parent=23 // pred_check
              _
            $region30: #{attention_block_b_forward.3} parent=23 // pred_check_branch
              %137 = sbr.rel target = $region32
            $region31: #{attention_block_b_forward.3} parent=23 // pred_region
              loop: start=0, step=1, limit=1
              $region33: #{attention_block_b_forward.3} parent=31 // loop_pre_header
                _
              $region34: #{attention_block_b_forward.3} parent=31 // loop_header
                %s140 = sphi 0, %s144
                %p141 = scmp.ge.s32.totalorder %s140, 1
                %s145 = sphi %s131, %s131
                %s146 = sphi %s126, %s126
              $region35: #{attention_block_b_forward.3} parent=31 // loop_header_branch
                %143 = sbr.rel (%p141) target = $region39
              $region36: #{attention_block_b_forward.3} parent=31 // loop_body
                %v147 = vld [vmem:[%s145] sm:$0xff]
                %148 = vst [vmem:[%s146] sm:$0xff] %v147
                %v149 = vld [vmem:[%s145 + $0x10] sm:$0xff]
                %150 = vst [vmem:[%s146 + $0x8] sm:$0xff] %v149
                %v151 = vld [vmem:[%s145 + $0x20] sm:$0xff]
                %152 = vst [vmem:[%s146 + $0x10] sm:$0xff] %v151
                %v153 = vld [vmem:[%s145 + $0x30] sm:$0xff]
                %154 = vst [vmem:[%s146 + $0x18] sm:$0xff] %v153
                %v155 = vld [vmem:[%s145 + $0x40] sm:$0xff]
                %156 = vst [vmem:[%s146 + $0x20] sm:$0xff] %v155
                %v157 = vld [vmem:[%s145 + $0x50] sm:$0xff]
                %158 = vst [vmem:[%s146 + $0x28] sm:$0xff] %v157
                %v159 = vld [vmem:[%s145 + $0x60] sm:$0xff]
                %160 = vst [vmem:[%s146 + $0x30] sm:$0xff] %v159
                %v161 = vld [vmem:[%s145 + $0x70] sm:$0xff]
                %162 = vst [vmem:[%s146 + $0x38] sm:$0xff] %v161
                %v163 = vld [vmem:[%s145 + $0x80] sm:$0xff]
                %164 = vst [vmem:[%s146 + $0x40] sm:$0xff] %v163
                %v165 = vld [vmem:[%s145 + $0x90] sm:$0xff]
                %166 = vst [vmem:[%s146 + $0x48] sm:$0xff] %v165
                %v167 = vld [vmem:[%s145 + $0xa0] sm:$0xff]
                %168 = vst [vmem:[%s146 + $0x50] sm:$0xff] %v167
                %v169 = vld [vmem:[%s145 + $0xb0] sm:$0xff]
                %170 = vst [vmem:[%s146 + $0x58] sm:$0xff] %v169
                %v171 = vld [vmem:[%s145 + $0xc0] sm:$0xff]
                %172 = vst [vmem:[%s146 + $0x60] sm:$0xff] %v171
                %v173 = vld [vmem:[%s145 + $0xd0] sm:$0xff]
                %174 = vst [vmem:[%s146 + $0x68] sm:$0xff] %v173
                %v175 = vld [vmem:[%s145 + $0xe0] sm:$0xff]
                %176 = vst [vmem:[%s146 + $0x70] sm:$0xff] %v175
                %v177 = vld [vmem:[%s145 + $0xf0] sm:$0xff]
                %178 = vst [vmem:[%s146 + $0x78] sm:$0xff] %v177
                %v179 = vld [vmem:[%s145 + $0x100] sm:$0xff]
                %180 = vst [vmem:[%s146 + $0x80] sm:$0xff] %v179
                %v181 = vld [vmem:[%s145 + $0x110] sm:$0xff]
                %182 = vst [vmem:[%s146 + $0x88] sm:$0xff] %v181
                %v183 = vld [vmem:[%s145 + $0x120] sm:$0xff]
                %184 = vst [vmem:[%s146 + $0x90] sm:$0xff] %v183
                %v185 = vld [vmem:[%s145 + $0x130] sm:$0xff]
                %186 = vst [vmem:[%s146 + $0x98] sm:$0xff] %v185
                %v187 = vld [vmem:[%s145 + $0x140] sm:$0xff]
                %188 = vst [vmem:[%s146 + $0xa0] sm:$0xff] %v187
                %v189 = vld [vmem:[%s145 + $0x150] sm:$0xff]
                %190 = vst [vmem:[%s146 + $0xa8] sm:$0xff] %v189
                %v191 = vld [vmem:[%s145 + $0x160] sm:$0xff]
                %192 = vst [vmem:[%s146 + $0xb0] sm:$0xff] %v191
                %v193 = vld [vmem:[%s145 + $0x170] sm:$0xff]
                %194 = vst [vmem:[%s146 + $0xb8] sm:$0xff] %v193
                %v195 = vld [vmem:[%s145 + $0x180] sm:$0xff]
                %196 = vst [vmem:[%s146 + $0xc0] sm:$0xff] %v195
                %v197 = vld [vmem:[%s145 + $0x190] sm:$0xff]
                %198 = vst [vmem:[%s146 + $0xc8] sm:$0xff] %v197
                %v199 = vld [vmem:[%s145 + $0x1a0] sm:$0xff]
                %200 = vst [vmem:[%s146 + $0xd0] sm:$0xff] %v199
                %v201 = vld [vmem:[%s145 + $0x1b0] sm:$0xff]
                %202 = vst [vmem:[%s146 + $0xd8] sm:$0xff] %v201
                %v203 = vld [vmem:[%s145 + $0x1c0] sm:$0xff]
                %204 = vst [vmem:[%s146 + $0xe0] sm:$0xff] %v203
                %v205 = vld [vmem:[%s145 + $0x1d0] sm:$0xff]
                %206 = vst [vmem:[%s146 + $0xe8] sm:$0xff] %v205
                %v207 = vld [vmem:[%s145 + $0x1e0] sm:$0xff]
                %208 = vst [vmem:[%s146 + $0xf0] sm:$0xff] %v207
                %v209 = vld [vmem:[%s145 + $0x1f0] sm:$0xff]
                %210 = vst [vmem:[%s146 + $0xf8] sm:$0xff] %v209
              $region37: #{attention_block_b_forward.3} parent=31 // loop_footer
                %s144 = sadd.s32 1, %s140
              $region38: #{attention_block_b_forward.3} parent=31 // loop_footer_branch
                %139 = sbr.rel target = $region34
              $region39: #{attention_block_b_forward.3} parent=31 // loop_exit
                _
            $region32: #{attention_block_b_forward.3} parent=23 // pred_fallthru
              _
          $region24: #{attention_block_b_forward.3} parent=19 // pred_fallthru
            _
          %287 = vnop
        $region20: #{attention_block_b_forward.3} parent=15 // pred_fallthru
          _
      $region16: #{attention_block_b_forward.3} parent=5 // pred_fallthru
        _
      %p288 = scmp.le.s32.totalorder 1, %s9
      %p289 = scmp.lt.s32.totalorder %s9, 5
      %p290 = pnand %p288, %p289
      %p291 = pneg %p290
      // Predicated region
      $region55: #{attention_block_b_forward.3} parent=5 // pred_check
        _
      $region56: #{attention_block_b_forward.3} parent=5 // pred_check_branch
        %293 = sbr.rel (%p290) target = $region58
      $region57: #{attention_block_b_forward.3} parent=5 // pred_region
        %s294 = ssub.s32 %s9, 1
        %s295 = sand.u32 %s36, 1
        %s296 = sand.u32 %s36, 1
        %s297 = smul.addr %s296, 256
        %s298 = scalar_lea.vmem [#allocation2], %s297
        // Predicated region
        $region59: #{attention_block_b_forward.3} parent=57 // pred_check
          %p299 = pneg %p49
        $region60: #{attention_block_b_forward.3} parent=57 // pred_check_branch
          %301 = sbr.rel (%p299) target = $region62
        $region61: #{attention_block_b_forward.3} parent=57 // pred_region
          _
        $region62: #{attention_block_b_forward.3} parent=57 // pred_fallthru
          _
        %s302 = sand.u32 %s36, 1
        %s303 = sand.u32 %s36, 1
        %s304 = smul.addr %s303, 256
        %s305 = scalar_lea.vmem [#allocation2], %s304
        %p306 = pneg %p49
        %p307 = pneg %p46
        %p308 = pneg %p75
        %p309 = pneg %p72
        %p310 = scmp.lt.s32.totalorder %s18, 1
        %s311 = scalar_select %p310, %s18, 1
        %s312 = smul.addr %s311, 8
        %s313 = scalar_lea.vmem %s1, %s312
        %p314 = pneg %p101
        %p315 = pneg %p98
        %p316 = scmp.lt.s32.totalorder %s18, 1
        %s317 = scalar_select %p316, %s18, 1
        %s318 = smul.addr %s317, 8
        %s319 = scalar_lea.vmem %s2, %s318
        %s320 = smul.u32 32, %s19
        %p321 = scmp.lt.s32.totalorder %s18, 1
        %s322 = scalar_select %p321, %s18, 1
        %s323 = smul.addr %s322, 8
        %s324 = scalar_lea.vmem %s1, %s323
        %p325 = scmp.lt.s32.totalorder %s18, 1
        %s326 = scalar_select %p325, %s18, 1
        %s327 = smul.addr %s326, 8
        %s328 = scalar_lea.vmem %s2, %s327
        %p329 = scmp.eq.s32.totalorder %s19, 0
        // Predicated region
        $region63: #{attention_block_b_forward.3} parent=57 // pred_check
          %p330 = pneg %p329
        $region64: #{attention_block_b_forward.3} parent=57 // pred_check_branch
          %332 = sbr.rel (%p330) target = $region66
        $region65: #{attention_block_b_forward.3} parent=57 // pred_region
          %333 = vst [vmem:[%s324] sm:$0xff] 0.0
          %334 = vst [vmem:[%s328] sm:$0xff] 0.0
        $region66: #{attention_block_b_forward.3} parent=57 // pred_fallthru
          _
        %v335 = vld [vmem:[%s298] sm:$0xff]
        %v336 = vld [vmem:[%s298 + $0x8] sm:$0xff]
        %v337 = vld [vmem:[%s298 + $0x10] sm:$0xff]
        %v338 = vld [vmem:[%s298 + $0x18] sm:$0xff]
        %v339 = vld [vmem:[%s298 + $0x20] sm:$0xff]
        %v340 = vld [vmem:[%s298 + $0x28] sm:$0xff]
        %v341 = vld [vmem:[%s298 + $0x30] sm:$0xff]
        %v342 = vld [vmem:[%s298 + $0x38] sm:$0xff]
        %v343 = vld [vmem:[%s298 + $0x40] sm:$0xff]
        %v344 = vld [vmem:[%s298 + $0x48] sm:$0xff]
        %v345 = vld [vmem:[%s298 + $0x50] sm:$0xff]
        %v346 = vld [vmem:[%s298 + $0x58] sm:$0xff]
        %v347 = vld [vmem:[%s298 + $0x60] sm:$0xff]
        %v348 = vld [vmem:[%s298 + $0x68] sm:$0xff]
        %v349 = vld [vmem:[%s298 + $0x70] sm:$0xff]
        %v350 = vld [vmem:[%s298 + $0x78] sm:$0xff]
        %v351 = vld [vmem:[%s298 + $0x80] sm:$0xff]
        %v352 = vld [vmem:[%s298 + $0x88] sm:$0xff]
        %v353 = vld [vmem:[%s298 + $0x90] sm:$0xff]
        %v354 = vld [vmem:[%s298 + $0x98] sm:$0xff]
        %v355 = vld [vmem:[%s298 + $0xa0] sm:$0xff]
        %v356 = vld [vmem:[%s298 + $0xa8] sm:$0xff]
        %v357 = vld [vmem:[%s298 + $0xb0] sm:$0xff]
        %v358 = vld [vmem:[%s298 + $0xb8] sm:$0xff]
        %v359 = vld [vmem:[%s298 + $0xc0] sm:$0xff]
        %v360 = vld [vmem:[%s298 + $0xc8] sm:$0xff]
        %v361 = vld [vmem:[%s298 + $0xd0] sm:$0xff]
        %v362 = vld [vmem:[%s298 + $0xd8] sm:$0xff]
        %v363 = vld [vmem:[%s298 + $0xe0] sm:$0xff]
        %v364 = vld [vmem:[%s298 + $0xe8] sm:$0xff]
        %v365 = vld [vmem:[%s298 + $0xf0] sm:$0xff]
        %v366 = vld [vmem:[%s298 + $0xf8] sm:$0xff]
        %v367 = vld [vmem:[%s324] sm:$0xff]
        %v368 = vadd.f32 %v335, %v336
        %v369 = vadd.f32 %v368, %v337
        %v370 = vadd.f32 %v369, %v338
        %v371 = vadd.f32 %v370, %v339
        %v372 = vadd.f32 %v371, %v340
        %v373 = vadd.f32 %v372, %v341
        %v374 = vadd.f32 %v373, %v342
        %v375 = vadd.f32 %v374, %v343
        %v376 = vadd.f32 %v375, %v344
        %v377 = vadd.f32 %v376, %v345
        %v378 = vadd.f32 %v377, %v346
        %v379 = vadd.f32 %v378, %v347
        %v380 = vadd.f32 %v379, %v348
        %v381 = vadd.f32 %v380, %v349
        %v382 = vadd.f32 %v381, %v350
        %v383 = vadd.f32 %v382, %v351
        %v384 = vadd.f32 %v383, %v352
        %v385 = vadd.f32 %v384, %v353
        %v386 = vadd.f32 %v385, %v354
        %v387 = vadd.f32 %v386, %v355
        %v388 = vadd.f32 %v387, %v356
        %v389 = vadd.f32 %v388, %v357
        %v390 = vadd.f32 %v389, %v358
        %v391 = vadd.f32 %v390, %v359
        %v392 = vadd.f32 %v391, %v360
        %v393 = vadd.f32 %v392, %v361
        %v394 = vadd.f32 %v393, %v362
        %v395 = vadd.f32 %v394, %v363
        %v396 = vadd.f32 %v395, %v364
        %v397 = vadd.f32 %v396, %v365
        %v398 = vadd.f32 %v397, %v366
        %v399 = vadd.f32 %v367, %v398
        %400 = vst [vmem:[%s324] sm:$0xff] %v399
        %v401 = vld [vmem:[%s328] sm:$0xff]
        %v402 = vmul.f32 %v335, %v335
        %v403 = vmul.f32 %v336, %v336
        %v404 = vmul.f32 %v337, %v337
        %v405 = vmul.f32 %v338, %v338
        %v406 = vmul.f32 %v339, %v339
        %v407 = vmul.f32 %v340, %v340
        %v408 = vmul.f32 %v341, %v341
        %v409 = vmul.f32 %v342, %v342
        %v410 = vmul.f32 %v343, %v343
        %v411 = vmul.f32 %v344, %v344
        %v412 = vmul.f32 %v345, %v345
        %v413 = vmul.f32 %v346, %v346
        %v414 = vmul.f32 %v347, %v347
        %v415 = vmul.f32 %v348, %v348
        %v416 = vmul.f32 %v349, %v349
        %v417 = vmul.f32 %v350, %v350
        %v418 = vmul.f32 %v351, %v351
        %v419 = vmul.f32 %v352, %v352
        %v420 = vmul.f32 %v353, %v353
        %v421 = vmul.f32 %v354, %v354
        %v422 = vmul.f32 %v355, %v355
        %v423 = vmul.f32 %v356, %v356
        %v424 = vmul.f32 %v357, %v357
        %v425 = vmul.f32 %v358, %v358
        %v426 = vmul.f32 %v359, %v359
        %v427 = vmul.f32 %v360, %v360
        %v428 = vmul.f32 %v361, %v361
        %v429 = vmul.f32 %v362, %v362
        %v430 = vmul.f32 %v363, %v363
        %v431 = vmul.f32 %v364, %v364
        %v432 = vmul.f32 %v365, %v365
        %v433 = vmul.f32 %v366, %v366
        %v434 = vadd.f32 %v402, %v403
        %v435 = vadd.f32 %v434, %v404
        %v436 = vadd.f32 %v435, %v405
        %v437 = vadd.f32 %v436, %v406
        %v438 = vadd.f32 %v437, %v407
        %v439 = vadd.f32 %v438, %v408
        %v440 = vadd.f32 %v439, %v409
        %v441 = vadd.f32 %v440, %v410
        %v442 = vadd.f32 %v441, %v411
        %v443 = vadd.f32 %v442, %v412
        %v444 = vadd.f32 %v443, %v413
        %v445 = vadd.f32 %v444, %v414
        %v446 = vadd.f32 %v445, %v415
        %v447 = vadd.f32 %v446, %v416
        %v448 = vadd.f32 %v447, %v417
        %v449 = vadd.f32 %v448, %v418
        %v450 = vadd.f32 %v449, %v419
        %v451 = vadd.f32 %v450, %v420
        %v452 = vadd.f32 %v451, %v421
        %v453 = vadd.f32 %v452, %v422
        %v454 = vadd.f32 %v453, %v423
        %v455 = vadd.f32 %v454, %v424
        %v456 = vadd.f32 %v455, %v425
        %v457 = vadd.f32 %v456, %v426
        %v458 = vadd.f32 %v457, %v427
        %v459 = vadd.f32 %v458, %v428
        %v460 = vadd.f32 %v459, %v429
        %v461 = vadd.f32 %v460, %v430
        %v462 = vadd.f32 %v461, %v431
        %v463 = vadd.f32 %v462, %v432
        %v464 = vadd.f32 %v463, %v433
        %v465 = vadd.f32 %v401, %v464
        %466 = vst [vmem:[%s328] sm:$0xff] %v465
        %p467 = scmp.lt.s32.totalorder %s18, 1
        %s468 = scalar_select %p467, %s18, 1
        %s469 = smul.addr %s468, 8
        %s470 = scalar_lea.vmem %s1, %s469
        %p471 = scmp.lt.s32.totalorder %s18, 1
        %s472 = scalar_select %p471, %s18, 1
        %s473 = smul.addr %s472, 8
        %s474 = scalar_lea.vmem %s2, %s473
        // Predicated region
        $region67: #{attention_block_b_forward.3} parent=57 // pred_check
          %p475 = pneg %p72
        $region68: #{attention_block_b_forward.3} parent=57 // pred_check_branch
          %477 = sbr.rel (%p475) target = $region70
        $region69: #{attention_block_b_forward.3} parent=57 // pred_region
          _
        $region70: #{attention_block_b_forward.3} parent=57 // pred_fallthru
          _
        // Predicated region
        $region71: #{attention_block_b_forward.3} parent=57 // pred_check
          %p478 = pneg %p98
        $region72: #{attention_block_b_forward.3} parent=57 // pred_check_branch
          %480 = sbr.rel (%p478) target = $region74
        $region73: #{attention_block_b_forward.3} parent=57 // pred_region
          _
        $region74: #{attention_block_b_forward.3} parent=57 // pred_fallthru
          _
      $region58: #{attention_block_b_forward.3} parent=5 // pred_fallthru
        _
      %p481 = scmp.le.s32.totalorder 2, %s9
      // Predicated region
      $region75: #{attention_block_b_forward.3} parent=5 // pred_check
        %p482 = pneg %p481
      $region76: #{attention_block_b_forward.3} parent=5 // pred_check_branch
        %484 = sbr.rel (%p482) target = $region78
      $region77: #{attention_block_b_forward.3} parent=5 // pred_region
        %s485 = ssub.s32 %s9, 2
        // Predicated region
        $region79: #{attention_block_b_forward.3} parent=77 // pred_check
          %p486 = pneg %p78
        $region80: #{attention_block_b_forward.3} parent=77 // pred_check_branch
          %488 = sbr.rel (%p486) target = $region82
        $region81: #{attention_block_b_forward.3} parent=77 // pred_region
          %p489 = scmp.lt.s32.totalorder %s20, 1
          %s490 = scalar_select %p489, %s20, 1
          %s491 = smul.addr %s490, 8
          %s492 = scalar_lea.vmem %s1, %s491
        $region82: #{attention_block_b_forward.3} parent=77 // pred_fallthru
          _
        // Predicated region
        $region83: #{attention_block_b_forward.3} parent=77 // pred_check
          %p493 = pneg %p104
        $region84: #{attention_block_b_forward.3} parent=77 // pred_check_branch
          %495 = sbr.rel (%p493) target = $region86
        $region85: #{attention_block_b_forward.3} parent=77 // pred_region
          %p496 = scmp.lt.s32.totalorder %s20, 1
          %s497 = scalar_select %p496, %s20, 1
          %s498 = smul.addr %s497, 8
          %s499 = scalar_lea.vmem %s2, %s498
        $region86: #{attention_block_b_forward.3} parent=77 // pred_fallthru
          _
      $region78: #{attention_block_b_forward.3} parent=5 // pred_fallthru
        _
    $region6: #{attention_block_b_forward.3} parent=1 // loop_footer
      %s13 = sadd.s32 1, %s9
    $region7: #{attention_block_b_forward.3} parent=1 // loop_footer_branch
      %8 = sbr.rel target = $region3
    $region8: #{attention_block_b_forward.3} parent=1 // loop_exit
      _

// kernel: mul.7
$region0: #{mul.7}
  #allocation0 [shape = 's32[1]{0}', space=sflag, size = 0x4, scoped, tag = 'scoped memory for mul.7']
  %s0 = inlined_call_operand.vmem [shape: f32[384], index: 0, kind: input, shape index: {}]
  %s1 = inlined_call_operand.vmem [shape: f32[384], index: 1, kind: input, shape index: {}]
  %s2 = inlined_call_operand.vmem [shape: f32[384], index: 2, kind: output, shape index: {}]
  %v3 = vld [vmem:[%s0] sm:$0x7]
  %v4 = vld [vmem:[%s1] sm:$0x7]
  %5 = xla_tuple %v3, %v4
  %6 = xla_tuple %5
  %v7 = vmul.f32 %v3, %v4
  %8 = xla_tuple %v7
  %9 = vst [vmem:[%s2] sm:$0xf] %v7

// kernel: attention_block_b_forward.4
$region0: #{attention_block_b_forward.4}
  #allocation0 [shape = 'u32[]', space=smem, size = 0x4, offset = 0x4, fixed_abs, tag = 'smem constant byte address 0x4 - core index']
  #allocation1 [shape = 'u32[144,128]{1,0:T(1,128)}', space=vmem, size = 0x12000, scoped, tag = 'internal scratch']
  #allocation2 [shape = 'f32[256,128]{1,0:T(8,128)}', space=vmem, size = 0x20000, scoped, tag = 'scratch operand']
  %s0 = inlined_call_operand.vmem [shape: f32[512,256], index: 0, kind: input, shape index: {}]
  %s1 = inlined_call_operand.vmem [shape: f32[1,256], index: 1, kind: input, shape index: {}]
  %s2 = inlined_call_operand.vmem [shape: f32[1,256], index: 2, kind: input, shape index: {}]
  %s3 = inlined_call_operand.vmem [shape: bf16[256,128], index: 3, kind: input, shape index: {}]
  %s4 = inlined_call_operand.vmem [shape: bf16[512,128], index: 4, kind: output, shape index: {0}]
  %s5 = inlined_call_operand.vmem [shape: f32[16,128], index: 5, kind: output, shape index: {1}]
  %s6 = inlined_call_operand.vmem [shape: f32[16,128], index: 6, kind: output, shape index: {2}]
  %7 = xla_tuple %s4, %s5, %s6
  %s8 = sld [smem:[#allocation0]]
  $region73: #{attention_block_b_forward.4} parent=0
    _
  %s10 = ssub.s32 1, %s8
  %s11 = scalar_select 0, %s10, %s8
  loop: start=0, step=1, limit=4
  $region2: #{attention_block_b_forward.4} parent=0 // loop_pre_header
    _
  $region3: #{attention_block_b_forward.4} parent=0 // loop_header
    %s13 = sphi 0, %s17
    %p14 = scmp.ge.s32.totalorder %s13, 4
    %s20 = sphi 0, %s32
    %s21 = sphi 0, %s28
    %s22 = sphi 0, %s20
    %s23 = sphi 0, %s21
    %s24 = sphi 0, %s22
    %s25 = sphi 0, %s23
    %s37 = sphi 0, %s39
    %s40 = sphi 0, %s37
    %s41 = sphi 0, %s40
    %s57 = sphi 0, %s41
    %s63 = sphi 0, %s65
    %s66 = sphi 0, %s63
    %s67 = sphi 0, %s66
    %s83 = sphi 0, %s67
    %s89 = sphi 0, %s91
    %s92 = sphi 0, %s89
    %s93 = sphi 0, %s92
    %s109 = sphi 0, %s93
    %s115 = sphi 0, %s117
    %s118 = sphi 0, %s115
    %s119 = sphi 0, %s118
    %s135 = sphi 0, %s119
    %s141 = sphi 0, %s143
    %s144 = sphi 0, %s141
    %s145 = sphi 0, %s144
    %s161 = sphi 0, %s145
    %s167 = sphi 0, %s169
    %s170 = sphi 0, %s167
    %s171 = sphi 0, %s170
    %s187 = sphi 0, %s171
    %s193 = sphi 0, %s195
    %s196 = sphi 0, %s193
    %s197 = sphi 0, %s196
    %s213 = sphi 0, %s197
  $region4: #{attention_block_b_forward.4} parent=0 // loop_header_branch
    %16 = sbr.rel (%p14) target = $region8
  $region5: #{attention_block_b_forward.4} parent=0 // loop_body
    %s18 = ssub.s32 %s13, 1
    %s19 = ssub.s32 %s13, 2
    %s26 = sadd.s32 1, %s21
    %p27 = scmp.ge.s32.totalorder %s26, 1
    %s28 = scalar_select %p27, 0, %s26
    %s29 = sadd.s32 1, %s20
    %s30 = scalar_select %p27, %s29, %s20
    %p31 = scmp.ge.s32.totalorder %s30, 2
    %s32 = scalar_select %p31, 0, %s30
    %s33 = ssub.s32 %s20, %s32
    %s34 = ssub.s32 %s21, %s28
    %s35 = sor.u32 %s33, %s34
    %p36 = scmp.eq.s32.totalorder %s35, 0
    %s38 = sadd.s32 %s37, 1
    %s39 = scalar_select %p36, %s37, %s38
    %p42 = pneg %p36
    %p43 = scmp.eq.s32.totalorder %s13, 1
    %p44 = por %p42, %p43
    %p45 = scmp.ne.s32.totalorder %s37, %s40
    %p46 = scmp.eq.s32.totalorder %s13, 0
    %p47 = por %p45, %p46
    %p48 = scmp.ne.s32.totalorder %s37, %s40
    %p49 = scmp.eq.s32.totalorder %s18, 1
    %p50 = por %p48, %p49
    %p51 = scmp.ne.s32.totalorder %s40, %s41
    %p52 = scmp.eq.s32.totalorder %s18, 0
    %p53 = por %p51, %p52
    %p54 = scmp.ne.s32.totalorder %s40, %s41
    %p55 = scmp.eq.s32.totalorder %s19, 1
    %p56 = por %p54, %p55
    %p58 = scmp.ne.s32.totalorder %s41, %s57
    %p59 = scmp.eq.s32.totalorder %s19, 0
    %p60 = por %p58, %p59
    %s61 = ssub.s32 %s21, %s28
    %p62 = scmp.eq.s32.totalorder %s61, 0
    %s64 = sadd.s32 %s63, 1
    %s65 = scalar_select %p62, %s63, %s64
    %p68 = pneg %p62
    %p69 = scmp.eq.s32.totalorder %s13, 1
    %p70 = por %p68, %p69
    %p71 = scmp.ne.s32.totalorder %s63, %s66
    %p72 = scmp.eq.s32.totalorder %s13, 0
    %p73 = por %p71, %p72
    %p74 = scmp.ne.s32.totalorder %s63, %s66
    %p75 = scmp.eq.s32.totalorder %s18, 1
    %p76 = por %p74, %p75
    %p77 = scmp.ne.s32.totalorder %s66, %s67
    %p78 = scmp.eq.s32.totalorder %s18, 0
    %p79 = por %p77, %p78
    %p80 = scmp.ne.s32.totalorder %s66, %s67
    %p81 = scmp.eq.s32.totalorder %s19, 1
    %p82 = por %p80, %p81
    %p84 = scmp.ne.s32.totalorder %s67, %s83
    %p85 = scmp.eq.s32.totalorder %s19, 0
    %p86 = por %p84, %p85
    %s87 = ssub.s32 %s21, %s28
    %p88 = scmp.eq.s32.totalorder %s87, 0
    %s90 = sadd.s32 %s89, 1
    %s91 = scalar_select %p88, %s89, %s90
    %p94 = pneg %p88
    %p95 = scmp.eq.s32.totalorder %s13, 1
    %p96 = por %p94, %p95
    %p97 = scmp.ne.s32.totalorder %s89, %s92
    %p98 = scmp.eq.s32.totalorder %s13, 0
    %p99 = por %p97, %p98
    %p100 = scmp.ne.s32.totalorder %s89, %s92
    %p101 = scmp.eq.s32.totalorder %s18, 1
    %p102 = por %p100, %p101
    %p103 = scmp.ne.s32.totalorder %s92, %s93
    %p104 = scmp.eq.s32.totalorder %s18, 0
    %p105 = por %p103, %p104
    %p106 = scmp.ne.s32.totalorder %s92, %s93
    %p107 = scmp.eq.s32.totalorder %s19, 1
    %p108 = por %p106, %p107
    %p110 = scmp.ne.s32.totalorder %s93, %s109
    %p111 = scmp.eq.s32.totalorder %s19, 0
    %p112 = por %p110, %p111
    %s113 = ssub.s32 %s21, %s28
    %p114 = scmp.eq.s32.totalorder %s113, 0
    %s116 = sadd.s32 %s115, 1
    %s117 = scalar_select %p114, %s115, %s116
    %p120 = pneg %p114
    %p121 = scmp.eq.s32.totalorder %s13, 1
    %p122 = por %p120, %p121
    %p123 = scmp.ne.s32.totalorder %s115, %s118
    %p124 = scmp.eq.s32.totalorder %s13, 0
    %p125 = por %p123, %p124
    %p126 = scmp.ne.s32.totalorder %s115, %s118
    %p127 = scmp.eq.s32.totalorder %s18, 1
    %p128 = por %p126, %p127
    %p129 = scmp.ne.s32.totalorder %s118, %s119
    %p130 = scmp.eq.s32.totalorder %s18, 0
    %p131 = por %p129, %p130
    %p132 = scmp.ne.s32.totalorder %s118, %s119
    %p133 = scmp.eq.s32.totalorder %s19, 1
    %p134 = por %p132, %p133
    %p136 = scmp.ne.s32.totalorder %s119, %s135
    %p137 = scmp.eq.s32.totalorder %s19, 0
    %p138 = por %p136, %p137
    %s139 = ssub.s32 %s20, %s32
    %p140 = scmp.eq.s32.totalorder %s139, 0
    %s142 = sadd.s32 %s141, 1
    %s143 = scalar_select %p140, %s141, %s142
    %p146 = pneg %p140
    %p147 = scmp.eq.s32.totalorder %s13, 1
    %p148 = por %p146, %p147
    %p149 = scmp.ne.s32.totalorder %s141, %s144
    %p150 = scmp.eq.s32.totalorder %s13, 0
    %p151 = por %p149, %p150
    %p152 = scmp.ne.s32.totalorder %s141, %s144
    %p153 = scmp.eq.s32.totalorder %s18, 1
    %p154 = por %p152, %p153
    %p155 = scmp.ne.s32.totalorder %s144, %s145
    %p156 = scmp.eq.s32.totalorder %s18, 0
    %p157 = por %p155, %p156
    %p158 = scmp.ne.s32.totalorder %s144, %s145
    %p159 = scmp.eq.s32.totalorder %s19, 1
    %p160 = por %p158, %p159
    %p162 = scmp.ne.s32.totalorder %s145, %s161
    %p163 = scmp.eq.s32.totalorder %s19, 0
    %p164 = por %p162, %p163
    %s165 = ssub.s32 %s20, %s32
    %p166 = scmp.eq.s32.totalorder %s165, 0
    %s168 = sadd.s32 %s167, 1
    %s169 = scalar_select %p166, %s167, %s168
    %p172 = pneg %p166
    %p173 = scmp.eq.s32.totalorder %s13, 1
    %p174 = por %p172, %p173
    %p175 = scmp.ne.s32.totalorder %s167, %s170
    %p176 = scmp.eq.s32.totalorder %s13, 0
    %p177 = por %p175, %p176
    %p178 = scmp.ne.s32.totalorder %s167, %s170
    %p179 = scmp.eq.s32.totalorder %s18, 1
    %p180 = por %p178, %p179
    %p181 = scmp.ne.s32.totalorder %s170, %s171
    %p182 = scmp.eq.s32.totalorder %s18, 0
    %p183 = por %p181, %p182
    %p184 = scmp.ne.s32.totalorder %s170, %s171
    %p185 = scmp.eq.s32.totalorder %s19, 1
    %p186 = por %p184, %p185
    %p188 = scmp.ne.s32.totalorder %s171, %s187
    %p189 = scmp.eq.s32.totalorder %s19, 0
    %p190 = por %p188, %p189
    %s191 = ssub.s32 %s20, %s32
    %p192 = scmp.eq.s32.totalorder %s191, 0
    %s194 = sadd.s32 %s193, 1
    %s195 = scalar_select %p192, %s193, %s194
    %p198 = pneg %p192
    %p199 = scmp.eq.s32.totalorder %s13, 1
    %p200 = por %p198, %p199
    %p201 = scmp.ne.s32.totalorder %s193, %s196
    %p202 = scmp.eq.s32.totalorder %s13, 0
    %p203 = por %p201, %p202
    %p204 = scmp.ne.s32.totalorder %s193, %s196
    %p205 = scmp.eq.s32.totalorder %s18, 1
    %p206 = por %p204, %p205
    %p207 = scmp.ne.s32.totalorder %s196, %s197
    %p208 = scmp.eq.s32.totalorder %s18, 0
    %p209 = por %p207, %p208
    %p210 = scmp.ne.s32.totalorder %s196, %s197
    %p211 = scmp.eq.s32.totalorder %s19, 1
    %p212 = por %p210, %p211
    %p214 = scmp.ne.s32.totalorder %s197, %s213
    %p215 = scmp.eq.s32.totalorder %s19, 0
    %p216 = por %p214, %p215
    %p217 = scmp.le.s32.totalorder 1, %s13
    %p218 = scmp.lt.s32.totalorder %s13, 3
    %p219 = pnand %p217, %p218
    %p220 = pneg %p219
    // Predicated region
    $region9: #{attention_block_b_forward.4} parent=5 // pred_check
      _
    $region10: #{attention_block_b_forward.4} parent=5 // pred_check_branch
      %222 = sbr.rel (%p219) target = $region12
    $region11: #{attention_block_b_forward.4} parent=5 // pred_region
      %s223 = ssub.s32 %s13, 1
      // Predicated region
      $region13: #{attention_block_b_forward.4} parent=11 // pred_check
        %p224 = pneg %p79
      $region14: #{attention_block_b_forward.4} parent=11 // pred_check_branch
        %226 = sbr.rel (%p224) target = $region16
      $region15: #{attention_block_b_forward.4} parent=11 // pred_region
        %s227 = smul.u32 2, %s23
        %p228 = scmp.lt.s32.totalorder %s227, 1
        %s229 = scalar_select %p228, %s227, 1
        %s230 = scalar_lea.vmem %s1, %s229
        %s231 = smul.u32 2, %s23
      $region16: #{attention_block_b_forward.4} parent=11 // pred_fallthru
        _
      // Predicated region
      $region17: #{attention_block_b_forward.4} parent=11 // pred_check
        %p232 = pneg %p105
      $region18: #{attention_block_b_forward.4} parent=11 // pred_check_branch
        %234 = sbr.rel (%p232) target = $region20
      $region19: #{attention_block_b_forward.4} parent=11 // pred_region
        %s235 = smul.u32 2, %s23
        %p236 = scmp.lt.s32.totalorder %s235, 1
        %s237 = scalar_select %p236, %s235, 1
        %s238 = scalar_lea.vmem %s2, %s237
        %s239 = smul.u32 2, %s23
      $region20: #{attention_block_b_forward.4} parent=11 // pred_fallthru
        _
      // Predicated region
      $region21: #{attention_block_b_forward.4} parent=11 // pred_check
        %p240 = pneg %p131
      $region22: #{attention_block_b_forward.4} parent=11 // pred_check_branch
        %242 = sbr.rel (%p240) target = $region24
      $region23: #{attention_block_b_forward.4} parent=11 // pred_region
        %s243 = smul.u32 32, %s23
        %p244 = scmp.lt.s32.totalorder %s243, 31
        %s245 = scalar_select %p244, %s243, 31
        %s246 = smul.addr %s245, 4
        %s247 = scalar_lea.vmem %s3, %s246
        %s248 = smul.u32 32, %s23
      $region24: #{attention_block_b_forward.4} parent=11 // pred_fallthru
        _
    $region12: #{attention_block_b_forward.4} parent=5 // pred_fallthru
      _
    %p249 = scmp.lt.s32.totalorder %s13, 2
    // Predicated region
    $region25: #{attention_block_b_forward.4} parent=5 // pred_check
      %p250 = pneg %p249
    $region26: #{attention_block_b_forward.4} parent=5 // pred_check_branch
      %252 = sbr.rel (%p250) target = $region28
    $region27: #{attention_block_b_forward.4} parent=5 // pred_region
      // Predicated region
      $region29: #{attention_block_b_forward.4} parent=27 // pred_check
        %p253 = pneg %p47
      $region30: #{attention_block_b_forward.4} parent=27 // pred_check_branch
        %255 = sbr.rel (%p253) target = $region32
      $region31: #{attention_block_b_forward.4} parent=27 // pred_region
        %s256 = smul.u32 32, %s20
        %s257 = smul.u32 2, %s21
        %p258 = scmp.lt.s32.totalorder %s256, 63
        %s259 = scalar_select %p258, %s256, 63
        %p260 = scmp.lt.s32.totalorder %s257, 1
        %s261 = scalar_select %p260, %s257, 1
        %s262 = smul.addr %s259, 2
        %s263 = sadd.s32 %s261, %s262
        %s264 = smul.addr %s263, 8
        %s265 = scalar_lea.vmem %s0, %s264
        %s266 = smul.u32 32, %s20
        %s267 = smul.u32 2, %s21
      $region32: #{attention_block_b_forward.4} parent=27 // pred_fallthru
        _
    $region28: #{attention_block_b_forward.4} parent=5 // pred_fallthru
      _
    %p268 = scmp.le.s32.totalorder 1, %s13
    %p269 = scmp.lt.s32.totalorder %s13, 3
    %p270 = pnand %p268, %p269
    %p271 = pneg %p270
    // Predicated region
    $region33: #{attention_block_b_forward.4} parent=5 // pred_check
      _
    $region34: #{attention_block_b_forward.4} parent=5 // pred_check_branch
      %273 = sbr.rel (%p270) target = $region36
    $region35: #{attention_block_b_forward.4} parent=5 // pred_region
      %s274 = ssub.s32 %s13, 1
      %s275 = smul.u32 32, %s22
      %s276 = smul.u32 2, %s23
      %p277 = scmp.lt.s32.totalorder %s275, 63
      %s278 = scalar_select %p277, %s275, 63
      %p279 = scmp.lt.s32.totalorder %s276, 1
      %s280 = scalar_select %p279, %s276, 1
      %s281 = smul.addr %s278, 2
      %s282 = sadd.s32 %s280, %s281
      %s283 = smul.addr %s282, 8
      %s284 = scalar_lea.vmem %s0, %s283
      %p285 = pneg %p53
      %p286 = pneg %p50
      %s287 = smul.u32 2, %s23
      %p288 = scmp.lt.s32.totalorder %s287, 1
      %s289 = scalar_select %p288, %s287, 1
      %s290 = scalar_lea.vmem %s1, %s289
      %p291 = pneg %p79
      %p292 = pneg %p76
      %s293 = smul.u32 2, %s23
      %p294 = scmp.lt.s32.totalorder %s293, 1
      %s295 = scalar_select %p294, %s293, 1
      %s296 = scalar_lea.vmem %s2, %s295
      %p297 = pneg %p105
      %p298 = pneg %p102
      %s299 = smul.u32 32, %s23
      %p300 = scmp.lt.s32.totalorder %s299, 31
      %s301 = scalar_select %p300, %s299, 31
      %s302 = smul.addr %s301, 4
      %s303 = scalar_lea.vmem %s3, %s302
      %p304 = pneg %p131
      %p305 = pneg %p128
      %p306 = pneg %p157
      %p307 = pneg %p154
      %s308 = smul.u32 32, %s22
      %p309 = scmp.lt.s32.totalorder %s308, 63
      %s310 = scalar_select %p309, %s308, 63
      %s311 = smul.addr %s310, 4
      %s312 = scalar_lea.vmem %s4, %s311
      %p313 = pneg %p183
      %p314 = pneg %p180
      %p315 = scmp.lt.s32.totalorder %s22, 1
      %s316 = scalar_select %p315, %s22, 1
      %s317 = smul.addr %s316, 8
      %s318 = scalar_lea.vmem %s5, %s317
      %p319 = pneg %p209
      %p320 = pneg %p206
      %p321 = scmp.lt.s32.totalorder %s22, 1
      %s322 = scalar_select %p321, %s22, 1
      %s323 = smul.addr %s322, 8
      %s324 = scalar_lea.vmem %s6, %s323
      %s325 = smul.u32 32, %s22
      %s326 = smul.u32 2, %s23
      %p327 = scmp.lt.s32.totalorder %s325, 63
      %s328 = scalar_select %p327, %s325, 63
      %p329 = scmp.lt.s32.totalorder %s326, 1
      %s330 = scalar_select %p329, %s326, 1
      %s331 = smul.addr %s328, 2
      %s332 = sadd.s32 %s330, %s331
      %s333 = smul.addr %s332, 8
      %s334 = scalar_lea.vmem %s0, %s333
      %s335 = smul.u32 32, %s22
      %s336 = smul.u32 2, %s23
      %s337 = smul.u32 2, %s23
      %p338 = scmp.lt.s32.totalorder %s337, 1
      %s339 = scalar_select %p338, %s337, 1
      %s340 = scalar_lea.vmem %s1, %s339
      %s341 = smul.u32 2, %s23
      %s342 = smul.u32 2, %s23
      %p343 = scmp.lt.s32.totalorder %s342, 1
      %s344 = scalar_select %p343, %s342, 1
      %s345 = scalar_lea.vmem %s2, %s344
      %s346 = smul.u32 2, %s23
      %s347 = smul.u32 32, %s23
      %p348 = scmp.lt.s32.totalorder %s347, 31
      %s349 = scalar_select %p348, %s347, 31
      %s350 = smul.addr %s349, 4
      %s351 = scalar_lea.vmem %s3, %s350
      %s352 = smul.u32 32, %s23
      %s353 = smul.u32 32, %s22
      %p354 = scmp.lt.s32.totalorder %s353, 63
      %s355 = scalar_select %p354, %s353, 63
      %s356 = smul.addr %s355, 4
      %s357 = scalar_lea.vmem %s4, %s356
      %s358 = smul.u32 32, %s22
      %p359 = scmp.lt.s32.totalorder %s22, 1
      %s360 = scalar_select %p359, %s22, 1
      %s361 = smul.addr %s360, 8
      %s362 = scalar_lea.vmem %s5, %s361
      %p363 = scmp.lt.s32.totalorder %s22, 1
      %s364 = scalar_select %p363, %s22, 1
      %s365 = smul.addr %s364, 8
      %s366 = scalar_lea.vmem %s6, %s365
      %p368 = scmp.eq.s32.totalorder %s23, 0
      // Predicated region
      $region37: #{attention_block_b_forward.4} parent=35 // pred_check
        %p369 = pneg %p368
      $region38: #{attention_block_b_forward.4} parent=35 // pred_check_branch
        %371 = sbr.rel (%p369) target = $region40
      $region39: #{attention_block_b_forward.4} parent=35 // pred_region
        %372 = vst [vmem:[#allocation2] sm:$0xff] 0.0
        %373 = vst [vmem:[#allocation2 + $0x8] sm:$0xff] 0.0
        %374 = vst [vmem:[#allocation2 + $0x10] sm:$0xff] 0.0
        %375 = vst [vmem:[#allocation2 + $0x18] sm:$0xff] 0.0
        %376 = vst [vmem:[#allocation2 + $0x20] sm:$0xff] 0.0
        %377 = vst [vmem:[#allocation2 + $0x28] sm:$0xff] 0.0
        %378 = vst [vmem:[#allocation2 + $0x30] sm:$0xff] 0.0
        %379 = vst [vmem:[#allocation2 + $0x38] sm:$0xff] 0.0
        %380 = vst [vmem:[#allocation2 + $0x40] sm:$0xff] 0.0
        %381 = vst [vmem:[#allocation2 + $0x48] sm:$0xff] 0.0
        %382 = vst [vmem:[#allocation2 + $0x50] sm:$0xff] 0.0
        %383 = vst [vmem:[#allocation2 + $0x58] sm:$0xff] 0.0
        %384 = vst [vmem:[#allocation2 + $0x60] sm:$0xff] 0.0
        %385 = vst [vmem:[#allocation2 + $0x68] sm:$0xff] 0.0
        %386 = vst [vmem:[#allocation2 + $0x70] sm:$0xff] 0.0
        %387 = vst [vmem:[#allocation2 + $0x78] sm:$0xff] 0.0
        %388 = vst [vmem:[#allocation2 + $0x80] sm:$0xff] 0.0
        %389 = vst [vmem:[#allocation2 + $0x88] sm:$0xff] 0.0
        %390 = vst [vmem:[#allocation2 + $0x90] sm:$0xff] 0.0
        %391 = vst [vmem:[#allocation2 + $0x98] sm:$0xff] 0.0
        %392 = vst [vmem:[#allocation2 + $0xa0] sm:$0xff] 0.0
        %393 = vst [vmem:[#allocation2 + $0xa8] sm:$0xff] 0.0
        %394 = vst [vmem:[#allocation2 + $0xb0] sm:$0xff] 0.0
        %395 = vst [vmem:[#allocation2 + $0xb8] sm:$0xff] 0.0
        %396 = vst [vmem:[#allocation2 + $0xc0] sm:$0xff] 0.0
        %397 = vst [vmem:[#allocation2 + $0xc8] sm:$0xff] 0.0
        %398 = vst [vmem:[#allocation2 + $0xd0] sm:$0xff] 0.0
        %399 = vst [vmem:[#allocation2 + $0xd8] sm:$0xff] 0.0
        %400 = vst [vmem:[#allocation2 + $0xe0] sm:$0xff] 0.0
        %401 = vst [vmem:[#allocation2 + $0xe8] sm:$0xff] 0.0
        %402 = vst [vmem:[#allocation2 + $0xf0] sm:$0xff] 0.0
        %403 = vst [vmem:[#allocation2 + $0xf8] sm:$0xff] 0.0
      $region40: #{attention_block_b_forward.4} parent=35 // pred_fallthru
        _
      %v404 = vld [vmem:[%s334] sm:$0xff]
      %v405 = vld [vmem:[%s334 + $0x8] sm:$0xff]
      %v406 = vld [vmem:[%s334 + $0x10] sm:$0xff]
      %v407 = vld [vmem:[%s334 + $0x18] sm:$0xff]
      %v408 = vld [vmem:[%s334 + $0x20] sm:$0xff]
      %v409 = vld [vmem:[%s334 + $0x28] sm:$0xff]
      %v410 = vld [vmem:[%s334 + $0x30] sm:$0xff]
      %v411 = vld [vmem:[%s334 + $0x38] sm:$0xff]
      %v412 = vld [vmem:[%s334 + $0x40] sm:$0xff]
      %v413 = vld [vmem:[%s334 + $0x48] sm:$0xff]
      %v414 = vld [vmem:[%s334 + $0x50] sm:$0xff]
      %v415 = vld [vmem:[%s334 + $0x58] sm:$0xff]
      %v416 = vld [vmem:[%s334 + $0x60] sm:$0xff]
      %v417 = vld [vmem:[%s334 + $0x68] sm:$0xff]
      %v418 = vld [vmem:[%s334 + $0x70] sm:$0xff]
      %v419 = vld [vmem:[%s334 + $0x78] sm:$0xff]
      %v420 = vld [vmem:[%s334 + $0x80] sm:$0xff]
      %v421 = vld [vmem:[%s334 + $0x88] sm:$0xff]
      %v422 = vld [vmem:[%s334 + $0x90] sm:$0xff]
      %v423 = vld [vmem:[%s334 + $0x98] sm:$0xff]
      %v424 = vld [vmem:[%s334 + $0xa0] sm:$0xff]
      %v425 = vld [vmem:[%s334 + $0xa8] sm:$0xff]
      %v426 = vld [vmem:[%s334 + $0xb0] sm:$0xff]
      %v427 = vld [vmem:[%s334 + $0xb8] sm:$0xff]
      %v428 = vld [vmem:[%s334 + $0xc0] sm:$0xff]
      %v429 = vld [vmem:[%s334 + $0xc8] sm:$0xff]
      %v430 = vld [vmem:[%s334 + $0xd0] sm:$0xff]
      %v431 = vld [vmem:[%s334 + $0xd8] sm:$0xff]
      %v432 = vld [vmem:[%s334 + $0xe0] sm:$0xff]
      %v433 = vld [vmem:[%s334 + $0xe8] sm:$0xff]
      %v434 = vld [vmem:[%s334 + $0xf0] sm:$0xff]
      %v435 = vld [vmem:[%s334 + $0xf8] sm:$0xff]
      %v436 = vld [vmem:[%s334 + $0x100] sm:$0xff]
      %v437 = vld [vmem:[%s334 + $0x108] sm:$0xff]
      %v438 = vld [vmem:[%s334 + $0x110] sm:$0xff]
      %v439 = vld [vmem:[%s334 + $0x118] sm:$0xff]
      %v440 = vld [vmem:[%s334 + $0x120] sm:$0xff]
      %v441 = vld [vmem:[%s334 + $0x128] sm:$0xff]
      %v442 = vld [vmem:[%s334 + $0x130] sm:$0xff]
      %v443 = vld [vmem:[%s334 + $0x138] sm:$0xff]
      %v444 = vld [vmem:[%s334 + $0x140] sm:$0xff]
      %v445 = vld [vmem:[%s334 + $0x148] sm:$0xff]
      %v446 = vld [vmem:[%s334 + $0x150] sm:$0xff]
      %v447 = vld [vmem:[%s334 + $0x158] sm:$0xff]
      %v448 = vld [vmem:[%s334 + $0x160] sm:$0xff]
      %v449 = vld [vmem:[%s334 + $0x168] sm:$0xff]
      %v450 = vld [vmem:[%s334 + $0x170] sm:$0xff]
      %v451 = vld [vmem:[%s334 + $0x178] sm:$0xff]
      %v452 = vld [vmem:[%s334 + $0x180] sm:$0xff]
      %v453 = vld [vmem:[%s334 + $0x188] sm:$0xff]
      %v454 = vld [vmem:[%s334 + $0x190] sm:$0xff]
      %v455 = vld [vmem:[%s334 + $0x198] sm:$0xff]
      %v456 = vld [vmem:[%s334 + $0x1a0] sm:$0xff]
      %v457 = vld [vmem:[%s334 + $0x1a8] sm:$0xff]
      %v458 = vld [vmem:[%s334 + $0x1b0] sm:$0xff]
      %v459 = vld [vmem:[%s334 + $0x1b8] sm:$0xff]
      %v460 = vld [vmem:[%s334 + $0x1c0] sm:$0xff]
      %v461 = vld [vmem:[%s334 + $0x1c8] sm:$0xff]
      %v462 = vld [vmem:[%s334 + $0x1d0] sm:$0xff]
      %v463 = vld [vmem:[%s334 + $0x1d8] sm:$0xff]
      %v464 = vld [vmem:[%s334 + $0x1e0] sm:$0xff]
      %v465 = vld [vmem:[%s334 + $0x1e8] sm:$0xff]
      %v466 = vld [vmem:[%s334 + $0x1f0] sm:$0xff]
      %v467 = vld [vmem:[%s334 + $0x1f8] sm:$0xff]
      %v468 = vld [vmem:[%s340] sm:$0x3]
      %v470 = vlaneseq
      %v471 = vshrl.u32 %v470, 7
      %v472 = vsub.s32 0, %v471
      %v473 = vrot.slane %v468, %v472
      %v474 = vlaneseq
      %v475 = vshrl.u32 %v474, 7
      %v476 = vsub.s32 1, %v475
      %v477 = vrot.slane %v468, %v476
      %v480 = vmul.f32 %v404, %v473
      %v481 = vmul.f32 %v405, %v477
      %v482 = vmul.f32 %v406, %v473
      %v483 = vmul.f32 %v407, %v477
      %v484 = vmul.f32 %v408, %v473
      %v485 = vmul.f32 %v409, %v477
      %v486 = vmul.f32 %v410, %v473
      %v487 = vmul.f32 %v411, %v477
      %v488 = vmul.f32 %v412, %v473
      %v489 = vmul.f32 %v413, %v477
      %v490 = vmul.f32 %v414, %v473
      %v491 = vmul.f32 %v415, %v477
      %v492 = vmul.f32 %v416, %v473
      %v493 = vmul.f32 %v417, %v477
      %v494 = vmul.f32 %v418, %v473
      %v495 = vmul.f32 %v419, %v477
      %v496 = vmul.f32 %v420, %v473
      %v497 = vmul.f32 %v421, %v477
      %v498 = vmul.f32 %v422, %v473
      %v499 = vmul.f32 %v423, %v477
      %v500 = vmul.f32 %v424, %v473
      %v501 = vmul.f32 %v425, %v477
      %v502 = vmul.f32 %v426, %v473
      %v503 = vmul.f32 %v427, %v477
      %v504 = vmul.f32 %v428, %v473
      %v505 = vmul.f32 %v429, %v477
      %v506 = vmul.f32 %v430, %v473
      %v507 = vmul.f32 %v431, %v477
      %v508 = vmul.f32 %v432, %v473
      %v509 = vmul.f32 %v433, %v477
      %v510 = vmul.f32 %v434, %v473
      %v511 = vmul.f32 %v435, %v477
      %v512 = vmul.f32 %v436, %v473
      %v513 = vmul.f32 %v437, %v477
      %v514 = vmul.f32 %v438, %v473
      %v515 = vmul.f32 %v439, %v477
      %v516 = vmul.f32 %v440, %v473
      %v517 = vmul.f32 %v441, %v477
      %v518 = vmul.f32 %v442, %v473
      %v519 = vmul.f32 %v443, %v477
      %v520 = vmul.f32 %v444, %v473
      %v521 = vmul.f32 %v445, %v477
      %v522 = vmul.f32 %v446, %v473
      %v523 = vmul.f32 %v447, %v477
      %v524 = vmul.f32 %v448, %v473
      %v525 = vmul.f32 %v449, %v477
      %v526 = vmul.f32 %v450, %v473
      %v527 = vmul.f32 %v451, %v477
      %v528 = vmul.f32 %v452, %v473
      %v529 = vmul.f32 %v453, %v477
      %v530 = vmul.f32 %v454, %v473
      %v531 = vmul.f32 %v455, %v477
      %v532 = vmul.f32 %v456, %v473
      %v533 = vmul.f32 %v457, %v477
      %v534 = vmul.f32 %v458, %v473
      %v535 = vmul.f32 %v459, %v477
      %v536 = vmul.f32 %v460, %v473
      %v537 = vmul.f32 %v461, %v477
      %v538 = vmul.f32 %v462, %v473
      %v539 = vmul.f32 %v463, %v477
      %v540 = vmul.f32 %v464, %v473
      %v541 = vmul.f32 %v465, %v477
      %v542 = vmul.f32 %v466, %v473
      %v543 = vmul.f32 %v467, %v477
      %v544 = vld [vmem:[%s345] sm:$0x3]
      %v546 = vlaneseq
      %v547 = vshrl.u32 %v546, 7
      %v548 = vsub.s32 0, %v547
      %v549 = vrot.slane %v544, %v548
      %v550 = vlaneseq
      %v551 = vshrl.u32 %v550, 7
      %v552 = vsub.s32 1, %v551
      %v553 = vrot.slane %v544, %v552
      %v556 = vadd.f32 %v480, %v549
      %v557 = vadd.f32 %v481, %v553
      %v558 = vadd.f32 %v482, %v549
      %v559 = vadd.f32 %v483, %v553
      %v560 = vadd.f32 %v484, %v549
      %v561 = vadd.f32 %v485, %v553
      %v562 = vadd.f32 %v486, %v549
      %v563 = vadd.f32 %v487, %v553
      %v564 = vadd.f32 %v488, %v549
      %v565 = vadd.f32 %v489, %v553
      %v566 = vadd.f32 %v490, %v549
      %v567 = vadd.f32 %v491, %v553
      %v568 = vadd.f32 %v492, %v549
      %v569 = vadd.f32 %v493, %v553
      %v570 = vadd.f32 %v494, %v549
      %v571 = vadd.f32 %v495, %v553
      %v572 = vadd.f32 %v496, %v549
      %v573 = vadd.f32 %v497, %v553
      %v574 = vadd.f32 %v498, %v549
      %v575 = vadd.f32 %v499, %v553
      %v576 = vadd.f32 %v500, %v549
      %v577 = vadd.f32 %v501, %v553
      %v578 = vadd.f32 %v502, %v549
      %v579 = vadd.f32 %v503, %v553
      %v580 = vadd.f32 %v504, %v549
      %v581 = vadd.f32 %v505, %v553
      %v582 = vadd.f32 %v506, %v549
      %v583 = vadd.f32 %v507, %v553
      %v584 = vadd.f32 %v508, %v549
      %v585 = vadd.f32 %v509, %v553
      %v586 = vadd.f32 %v510, %v549
      %v587 = vadd.f32 %v511, %v553
      %v588 = vadd.f32 %v512, %v549
      %v589 = vadd.f32 %v513, %v553
      %v590 = vadd.f32 %v514, %v549
      %v591 = vadd.f32 %v515, %v553
      %v592 = vadd.f32 %v516, %v549
      %v593 = vadd.f32 %v517, %v553
      %v594 = vadd.f32 %v518, %v549
      %v595 = vadd.f32 %v519, %v553
      %v596 = vadd.f32 %v520, %v549
      %v597 = vadd.f32 %v521, %v553
      %v598 = vadd.f32 %v522, %v549
      %v599 = vadd.f32 %v523, %v553
      %v600 = vadd.f32 %v524, %v549
      %v601 = vadd.f32 %v525, %v553
      %v602 = vadd.f32 %v526, %v549
      %v603 = vadd.f32 %v527, %v553
      %v604 = vadd.f32 %v528, %v549
      %v605 = vadd.f32 %v529, %v553
      %v606 = vadd.f32 %v530, %v549
      %v607 = vadd.f32 %v531, %v553
      %v608 = vadd.f32 %v532, %v549
      %v609 = vadd.f32 %v533, %v553
      %v610 = vadd.f32 %v534, %v549
      %v611 = vadd.f32 %v535, %v553
      %v612 = vadd.f32 %v536, %v549
      %v613 = vadd.f32 %v537, %v553
      %v614 = vadd.f32 %v538, %v549
      %v615 = vadd.f32 %v539, %v553
      %v616 = vadd.f32 %v540, %v549
      %v617 = vadd.f32 %v541, %v553
      %v618 = vadd.f32 %v542, %v549
      %v619 = vadd.f32 %v543, %v553
      %v620 = vmul.f32 %v556, %v556
      %v621 = vmul.f32 %v557, %v557
      %v622 = vmul.f32 %v558, %v558
      %v623 = vmul.f32 %v559, %v559
      %v624 = vmul.f32 %v560, %v560
      %v625 = vmul.f32 %v561, %v561
      %v626 = vmul.f32 %v562, %v562
      %v627 = vmul.f32 %v563, %v563
      %v628 = vmul.f32 %v564, %v564
      %v629 = vmul.f32 %v565, %v565
      %v630 = vmul.f32 %v566, %v566
      %v631 = vmul.f32 %v567, %v567
      %v632 = vmul.f32 %v568, %v568
      %v633 = vmul.f32 %v569, %v569
      %v634 = vmul.f32 %v570, %v570
      %v635 = vmul.f32 %v571, %v571
      %v636 = vmul.f32 %v572, %v572
      %v637 = vmul.f32 %v573, %v573
      %v638 = vmul.f32 %v574, %v574
      %v639 = vmul.f32 %v575, %v575
      %v640 = vmul.f32 %v576, %v576
      %v641 = vmul.f32 %v577, %v577
      %v642 = vmul.f32 %v578, %v578
      %v643 = vmul.f32 %v579, %v579
      %v644 = vmul.f32 %v580, %v580
      %v645 = vmul.f32 %v581, %v581
      %v646 = vmul.f32 %v582, %v582
      %v647 = vmul.f32 %v583, %v583
      %v648 = vmul.f32 %v584, %v584
      %v649 = vmul.f32 %v585, %v585
      %v650 = vmul.f32 %v586, %v586
      %v651 = vmul.f32 %v587, %v587
      %v652 = vmul.f32 %v588, %v588
      %v653 = vmul.f32 %v589, %v589
      %v654 = vmul.f32 %v590, %v590
      %v655 = vmul.f32 %v591, %v591
      %v656 = vmul.f32 %v592, %v592
      %v657 = vmul.f32 %v593, %v593
      %v658 = vmul.f32 %v594, %v594
      %v659 = vmul.f32 %v595, %v595
      %v660 = vmul.f32 %v596, %v596
      %v661 = vmul.f32 %v597, %v597
      %v662 = vmul.f32 %v598, %v598
      %v663 = vmul.f32 %v599, %v599
      %v664 = vmul.f32 %v600, %v600
      %v665 = vmul.f32 %v601, %v601
      %v666 = vmul.f32 %v602, %v602
      %v667 = vmul.f32 %v603, %v603
      %v668 = vmul.f32 %v604, %v604
      %v669 = vmul.f32 %v605, %v605
      %v670 = vmul.f32 %v606, %v606
      %v671 = vmul.f32 %v607, %v607
      %v672 = vmul.f32 %v608, %v608
      %v673 = vmul.f32 %v609, %v609
      %v674 = vmul.f32 %v610, %v610
      %v675 = vmul.f32 %v611, %v611
      %v676 = vmul.f32 %v612, %v612
      %v677 = vmul.f32 %v613, %v613
      %v678 = vmul.f32 %v614, %v614
      %v679 = vmul.f32 %v615, %v615
      %v680 = vmul.f32 %v616, %v616
      %v681 = vmul.f32 %v617, %v617
      %v682 = vmul.f32 %v618, %v618
      %v683 = vmul.f32 %v619, %v619
      %v684 = vmul.f32 %v556, %v620
      %v685 = vmul.f32 %v557, %v621
      %v686 = vmul.f32 %v558, %v622
      %v687 = vmul.f32 %v559, %v623
      %v688 = vmul.f32 %v560, %v624
      %v689 = vmul.f32 %v561, %v625
      %v690 = vmul.f32 %v562, %v626
      %v691 = vmul.f32 %v563, %v627
      %v692 = vmul.f32 %v564, %v628
      %v693 = vmul.f32 %v565, %v629
      %v694 = vmul.f32 %v566, %v630
      %v695 = vmul.f32 %v567, %v631
      %v696 = vmul.f32 %v568, %v632
      %v697 = vmul.f32 %v569, %v633
      %v698 = vmul.f32 %v570, %v634
      %v699 = vmul.f32 %v571, %v635
      %v700 = vmul.f32 %v572, %v636
      %v701 = vmul.f32 %v573, %v637
      %v702 = vmul.f32 %v574, %v638
      %v703 = vmul.f32 %v575, %v639
      %v704 = vmul.f32 %v576, %v640
      %v705 = vmul.f32 %v577, %v641
      %v706 = vmul.f32 %v578, %v642
      %v707 = vmul.f32 %v579, %v643
      %v708 = vmul.f32 %v580, %v644
      %v709 = vmul.f32 %v581, %v645
      %v710 = vmul.f32 %v582, %v646
      %v711 = vmul.f32 %v583, %v647
      %v712 = vmul.f32 %v584, %v648
      %v713 = vmul.f32 %v585, %v649
      %v714 = vmul.f32 %v586, %v650
      %v715 = vmul.f32 %v587, %v651
      %v716 = vmul.f32 %v588, %v652
      %v717 = vmul.f32 %v589, %v653
      %v718 = vmul.f32 %v590, %v654
      %v719 = vmul.f32 %v591, %v655
      %v720 = vmul.f32 %v592, %v656
      %v721 = vmul.f32 %v593, %v657
      %v722 = vmul.f32 %v594, %v658
      %v723 = vmul.f32 %v595, %v659
      %v724 = vmul.f32 %v596, %v660
      %v725 = vmul.f32 %v597, %v661
      %v726 = vmul.f32 %v598, %v662
      %v727 = vmul.f32 %v599, %v663
      %v728 = vmul.f32 %v600, %v664
      %v729 = vmul.f32 %v601, %v665
      %v730 = vmul.f32 %v602, %v666
      %v731 = vmul.f32 %v603, %v667
      %v732 = vmul.f32 %v604, %v668
      %v733 = vmul.f32 %v605, %v669
      %v734 = vmul.f32 %v606, %v670
      %v735 = vmul.f32 %v607, %v671
      %v736 = vmul.f32 %v608, %v672
      %v737 = vmul.f32 %v609, %v673
      %v738 = vmul.f32 %v610, %v674
      %v739 = vmul.f32 %v611, %v675
      %v740 = vmul.f32 %v612, %v676
      %v741 = vmul.f32 %v613, %v677
      %v742 = vmul.f32 %v614, %v678
      %v743 = vmul.f32 %v615, %v679
      %v744 = vmul.f32 %v616, %v680
      %v745 = vmul.f32 %v617, %v681
      %v746 = vmul.f32 %v618, %v682
      %v747 = vmul.f32 %v619, %v683
      %v748 = vmul.f32 %v684, 0.044715
      %v749 = vmul.f32 %v685, 0.044715
      %v750 = vmul.f32 %v686, 0.044715
      %v751 = vmul.f32 %v687, 0.044715
      %v752 = vmul.f32 %v688, 0.044715
      %v753 = vmul.f32 %v689, 0.044715
      %v754 = vmul.f32 %v690, 0.044715
      %v755 = vmul.f32 %v691, 0.044715
      %v756 = vmul.f32 %v692, 0.044715
      %v757 = vmul.f32 %v693, 0.044715
      %v758 = vmul.f32 %v694, 0.044715
      %v759 = vmul.f32 %v695, 0.044715
      %v760 = vmul.f32 %v696, 0.044715
      %v761 = vmul.f32 %v697, 0.044715
      %v762 = vmul.f32 %v698, 0.044715
      %v763 = vmul.f32 %v699, 0.044715
      %v764 = vmul.f32 %v700, 0.044715
      %v765 = vmul.f32 %v701, 0.044715
      %v766 = vmul.f32 %v702, 0.044715
      %v767 = vmul.f32 %v703, 0.044715
      %v768 = vmul.f32 %v704, 0.044715
      %v769 = vmul.f32 %v705, 0.044715
      %v770 = vmul.f32 %v706, 0.044715
      %v771 = vmul.f32 %v707, 0.044715
      %v772 = vmul.f32 %v708, 0.044715
      %v773 = vmul.f32 %v709, 0.044715
      %v774 = vmul.f32 %v710, 0.044715
      %v775 = vmul.f32 %v711, 0.044715
      %v776 = vmul.f32 %v712, 0.044715
      %v777 = vmul.f32 %v713, 0.044715
      %v778 = vmul.f32 %v714, 0.044715
      %v779 = vmul.f32 %v715, 0.044715
      %v780 = vmul.f32 %v716, 0.044715
      %v781 = vmul.f32 %v717, 0.044715
      %v782 = vmul.f32 %v718, 0.044715
      %v783 = vmul.f32 %v719, 0.044715
      %v784 = vmul.f32 %v720, 0.044715
      %v785 = vmul.f32 %v721, 0.044715
      %v786 = vmul.f32 %v722, 0.044715
      %v787 = vmul.f32 %v723, 0.044715
      %v788 = vmul.f32 %v724, 0.044715
      %v789 = vmul.f32 %v725, 0.044715
      %v790 = vmul.f32 %v726, 0.044715
      %v791 = vmul.f32 %v727, 0.044715
      %v792 = vmul.f32 %v728, 0.044715
      %v793 = vmul.f32 %v729, 0.044715
      %v794 = vmul.f32 %v730, 0.044715
      %v795 = vmul.f32 %v731, 0.044715
      %v796 = vmul.f32 %v732, 0.044715
      %v797 = vmul.f32 %v733, 0.044715
      %v798 = vmul.f32 %v734, 0.044715
      %v799 = vmul.f32 %v735, 0.044715
      %v800 = vmul.f32 %v736, 0.044715
      %v801 = vmul.f32 %v737, 0.044715
      %v802 = vmul.f32 %v738, 0.044715
      %v803 = vmul.f32 %v739, 0.044715
      %v804 = vmul.f32 %v740, 0.044715
      %v805 = vmul.f32 %v741, 0.044715
      %v806 = vmul.f32 %v742, 0.044715
      %v807 = vmul.f32 %v743, 0.044715
      %v808 = vmul.f32 %v744, 0.044715
      %v809 = vmul.f32 %v745, 0.044715
      %v810 = vmul.f32 %v746, 0.044715
      %v811 = vmul.f32 %v747, 0.044715
      %v812 = vadd.f32 %v556, %v748
      %v813 = vadd.f32 %v557, %v749
      %v814 = vadd.f32 %v558, %v750
      %v815 = vadd.f32 %v559, %v751
      %v816 = vadd.f32 %v560, %v752
      %v817 = vadd.f32 %v561, %v753
      %v818 = vadd.f32 %v562, %v754
      %v819 = vadd.f32 %v563, %v755
      %v820 = vadd.f32 %v564, %v756
      %v821 = vadd.f32 %v565, %v757
      %v822 = vadd.f32 %v566, %v758
      %v823 = vadd.f32 %v567, %v759
      %v824 = vadd.f32 %v568, %v760
      %v825 = vadd.f32 %v569, %v761
      %v826 = vadd.f32 %v570, %v762
      %v827 = vadd.f32 %v571, %v763
      %v828 = vadd.f32 %v572, %v764
      %v829 = vadd.f32 %v573, %v765
      %v830 = vadd.f32 %v574, %v766
      %v831 = vadd.f32 %v575, %v767
      %v832 = vadd.f32 %v576, %v768
      %v833 = vadd.f32 %v577, %v769
      %v834 = vadd.f32 %v578, %v770
      %v835 = vadd.f32 %v579, %v771
      %v836 = vadd.f32 %v580, %v772
      %v837 = vadd.f32 %v581, %v773
      %v838 = vadd.f32 %v582, %v774
      %v839 = vadd.f32 %v583, %v775
      %v840 = vadd.f32 %v584, %v776
      %v841 = vadd.f32 %v585, %v777
      %v842 = vadd.f32 %v586, %v778
      %v843 = vadd.f32 %v587, %v779
      %v844 = vadd.f32 %v588, %v780
      %v845 = vadd.f32 %v589, %v781
      %v846 = vadd.f32 %v590, %v782
      %v847 = vadd.f32 %v591, %v783
      %v848 = vadd.f32 %v592, %v784
      %v849 = vadd.f32 %v593, %v785
      %v850 = vadd.f32 %v594, %v786
      %v851 = vadd.f32 %v595, %v787
      %v852 = vadd.f32 %v596, %v788
      %v853 = vadd.f32 %v597, %v789
      %v854 = vadd.f32 %v598, %v790
      %v855 = vadd.f32 %v599, %v791
      %v856 = vadd.f32 %v600, %v792
      %v857 = vadd.f32 %v601, %v793
      %v858 = vadd.f32 %v602, %v794
      %v859 = vadd.f32 %v603, %v795
      %v860 = vadd.f32 %v604, %v796
      %v861 = vadd.f32 %v605, %v797
      %v862 = vadd.f32 %v606, %v798
      %v863 = vadd.f32 %v607, %v799
      %v864 = vadd.f32 %v608, %v800
      %v865 = vadd.f32 %v609, %v801
      %v866 = vadd.f32 %v610, %v802
      %v867 = vadd.f32 %v611, %v803
      %v868 = vadd.f32 %v612, %v804
      %v869 = vadd.f32 %v613, %v805
      %v870 = vadd.f32 %v614, %v806
      %v871 = vadd.f32 %v615, %v807
      %v872 = vadd.f32 %v616, %v808
      %v873 = vadd.f32 %v617, %v809
      %v874 = vadd.f32 %v618, %v810
      %v875 = vadd.f32 %v619, %v811
      %v876 = vmul.f32 %v812, 0.7978846
      %v877 = vmul.f32 %v813, 0.7978846
      %v878 = vmul.f32 %v814, 0.7978846
      %v879 = vmul.f32 %v815, 0.7978846
      %v880 = vmul.f32 %v816, 0.7978846
      %v881 = vmul.f32 %v817, 0.7978846
      %v882 = vmul.f32 %v818, 0.7978846
      %v883 = vmul.f32 %v819, 0.7978846
      %v884 = vmul.f32 %v820, 0.7978846
      %v885 = vmul.f32 %v821, 0.7978846
      %v886 = vmul.f32 %v822, 0.7978846
      %v887 = vmul.f32 %v823, 0.7978846
      %v888 = vmul.f32 %v824, 0.7978846
      %v889 = vmul.f32 %v825, 0.7978846
      %v890 = vmul.f32 %v826, 0.7978846
      %v891 = vmul.f32 %v827, 0.7978846
      %v892 = vmul.f32 %v828, 0.7978846
      %v893 = vmul.f32 %v829, 0.7978846
      %v894 = vmul.f32 %v830, 0.7978846
      %v895 = vmul.f32 %v831, 0.7978846
      %v896 = vmul.f32 %v832, 0.7978846
      %v897 = vmul.f32 %v833, 0.7978846
      %v898 = vmul.f32 %v834, 0.7978846
      %v899 = vmul.f32 %v835, 0.7978846
      %v900 = vmul.f32 %v836, 0.7978846
      %v901 = vmul.f32 %v837, 0.7978846
      %v902 = vmul.f32 %v838, 0.7978846
      %v903 = vmul.f32 %v839, 0.7978846
      %v904 = vmul.f32 %v840, 0.7978846
      %v905 = vmul.f32 %v841, 0.7978846
      %v906 = vmul.f32 %v842, 0.7978846
      %v907 = vmul.f32 %v843, 0.7978846
      %v908 = vmul.f32 %v844, 0.7978846
      %v909 = vmul.f32 %v845, 0.7978846
      %v910 = vmul.f32 %v846, 0.7978846
      %v911 = vmul.f32 %v847, 0.7978846
      %v912 = vmul.f32 %v848, 0.7978846
      %v913 = vmul.f32 %v849, 0.7978846
      %v914 = vmul.f32 %v850, 0.7978846
      %v915 = vmul.f32 %v851, 0.7978846
      %v916 = vmul.f32 %v852, 0.7978846
      %v917 = vmul.f32 %v853, 0.7978846
      %v918 = vmul.f32 %v854, 0.7978846
      %v919 = vmul.f32 %v855, 0.7978846
      %v920 = vmul.f32 %v856, 0.7978846
      %v921 = vmul.f32 %v857, 0.7978846
      %v922 = vmul.f32 %v858, 0.7978846
      %v923 = vmul.f32 %v859, 0.7978846
      %v924 = vmul.f32 %v860, 0.7978846
      %v925 = vmul.f32 %v861, 0.7978846
      %v926 = vmul.f32 %v862, 0.7978846
      %v927 = vmul.f32 %v863, 0.7978846
      %v928 = vmul.f32 %v864, 0.7978846
      %v929 = vmul.f32 %v865, 0.7978846
      %v930 = vmul.f32 %v866, 0.7978846
      %v931 = vmul.f32 %v867, 0.7978846
      %v932 = vmul.f32 %v868, 0.7978846
      %v933 = vmul.f32 %v869, 0.7978846
      %v934 = vmul.f32 %v870, 0.7978846
      %v935 = vmul.f32 %v871, 0.7978846
      %v936 = vmul.f32 %v872, 0.7978846
      %v937 = vmul.f32 %v873, 0.7978846
      %v938 = vmul.f32 %v874, 0.7978846
      %v939 = vmul.f32 %v875, 0.7978846
      %v940 = vtanh.pop %v876
      %v941 = vtanh.pop %v877
      %v942 = vtanh.pop %v878
      %v943 = vtanh.pop %v879
      %v944 = vtanh.pop %v880
      %v945 = vtanh.pop %v881
      %v946 = vtanh.pop %v882
      %v947 = vtanh.pop %v883
      %v948 = vtanh.pop %v884
      %v949 = vtanh.pop %v885
      %v950 = vtanh.pop %v886
      %v951 = vtanh.pop %v887
      %v952 = vtanh.pop %v888
      %v953 = vtanh.pop %v889
      %v954 = vtanh.pop %v890
      %v955 = vtanh.pop %v891
      %v956 = vtanh.pop %v892
      %v957 = vtanh.pop %v893
      %v958 = vtanh.pop %v894
      %v959 = vtanh.pop %v895
      %v960 = vtanh.pop %v896
      %v961 = vtanh.pop %v897
      %v962 = vtanh.pop %v898
      %v963 = vtanh.pop %v899
      %v964 = vtanh.pop %v900
      %v965 = vtanh.pop %v901
      %v966 = vtanh.pop %v902
      %v967 = vtanh.pop %v903
      %v968 = vtanh.pop %v904
      %v969 = vtanh.pop %v905
      %v970 = vtanh.pop %v906
      %v971 = vtanh.pop %v907
      %v972 = vtanh.pop %v908
      %v973 = vtanh.pop %v909
      %v974 = vtanh.pop %v910
      %v975 = vtanh.pop %v911
      %v976 = vtanh.pop %v912
      %v977 = vtanh.pop %v913
      %v978 = vtanh.pop %v914
      %v979 = vtanh.pop %v915
      %v980 = vtanh.pop %v916
      %v981 = vtanh.pop %v917
      %v982 = vtanh.pop %v918
      %v983 = vtanh.pop %v919
      %v984 = vtanh.pop %v920
      %v985 = vtanh.pop %v921
      %v986 = vtanh.pop %v922
      %v987 = vtanh.pop %v923
      %v988 = vtanh.pop %v924
      %v989 = vtanh.pop %v925
      %v990 = vtanh.pop %v926
      %v991 = vtanh.pop %v927
      %v992 = vtanh.pop %v928
      %v993 = vtanh.pop %v929
      %v994 = vtanh.pop %v930
      %v995 = vtanh.pop %v931
      %v996 = vtanh.pop %v932
      %v997 = vtanh.pop %v933
      %v998 = vtanh.pop %v934
      %v999 = vtanh.pop %v935
      %v1000 = vtanh.pop %v936
      %v1001 = vtanh.pop %v937
      %v1002 = vtanh.pop %v938
      %v1003 = vtanh.pop %v939
      %v1004 = vadd.f32 %v940, 1.0
      %v1005 = vadd.f32 %v941, 1.0
      %v1006 = vadd.f32 %v942, 1.0
      %v1007 = vadd.f32 %v943, 1.0
      %v1008 = vadd.f32 %v944, 1.0
      %v1009 = vadd.f32 %v945, 1.0
      %v1010 = vadd.f32 %v946, 1.0
      %v1011 = vadd.f32 %v947, 1.0
      %v1012 = vadd.f32 %v948, 1.0
      %v1013 = vadd.f32 %v949, 1.0
      %v1014 = vadd.f32 %v950, 1.0
      %v1015 = vadd.f32 %v951, 1.0
      %v1016 = vadd.f32 %v952, 1.0
      %v1017 = vadd.f32 %v953, 1.0
      %v1018 = vadd.f32 %v954, 1.0
      %v1019 = vadd.f32 %v955, 1.0
      %v1020 = vadd.f32 %v956, 1.0
      %v1021 = vadd.f32 %v957, 1.0
      %v1022 = vadd.f32 %v958, 1.0
      %v1023 = vadd.f32 %v959, 1.0
      %v1024 = vadd.f32 %v960, 1.0
      %v1025 = vadd.f32 %v961, 1.0
      %v1026 = vadd.f32 %v962, 1.0
      %v1027 = vadd.f32 %v963, 1.0
      %v1028 = vadd.f32 %v964, 1.0
      %v1029 = vadd.f32 %v965, 1.0
      %v1030 = vadd.f32 %v966, 1.0
      %v1031 = vadd.f32 %v967, 1.0
      %v1032 = vadd.f32 %v968, 1.0
      %v1033 = vadd.f32 %v969, 1.0
      %v1034 = vadd.f32 %v970, 1.0
      %v1035 = vadd.f32 %v971, 1.0
      %v1036 = vadd.f32 %v972, 1.0
      %v1037 = vadd.f32 %v973, 1.0
      %v1038 = vadd.f32 %v974, 1.0
      %v1039 = vadd.f32 %v975, 1.0
      %v1040 = vadd.f32 %v976, 1.0
      %v1041 = vadd.f32 %v977, 1.0
      %v1042 = vadd.f32 %v978, 1.0
      %v1043 = vadd.f32 %v979, 1.0
      %v1044 = vadd.f32 %v980, 1.0
      %v1045 = vadd.f32 %v981, 1.0
      %v1046 = vadd.f32 %v982, 1.0
      %v1047 = vadd.f32 %v983, 1.0
      %v1048 = vadd.f32 %v984, 1.0
      %v1049 = vadd.f32 %v985, 1.0
      %v1050 = vadd.f32 %v986, 1.0
      %v1051 = vadd.f32 %v987, 1.0
      %v1052 = vadd.f32 %v988, 1.0
      %v1053 = vadd.f32 %v989, 1.0
      %v1054 = vadd.f32 %v990, 1.0
      %v1055 = vadd.f32 %v991, 1.0
      %v1056 = vadd.f32 %v992, 1.0
      %v1057 = vadd.f32 %v993, 1.0
      %v1058 = vadd.f32 %v994, 1.0
      %v1059 = vadd.f32 %v995, 1.0
      %v1060 = vadd.f32 %v996, 1.0
      %v1061 = vadd.f32 %v997, 1.0
      %v1062 = vadd.f32 %v998, 1.0
      %v1063 = vadd.f32 %v999, 1.0
      %v1064 = vadd.f32 %v1000, 1.0
      %v1065 = vadd.f32 %v1001, 1.0
      %v1066 = vadd.f32 %v1002, 1.0
      %v1067 = vadd.f32 %v1003, 1.0
      %v1068 = vmul.f32 %v1004, 0.5
      %v1069 = vmul.f32 %v1005, 0.5
      %v1070 = vmul.f32 %v1006, 0.5
      %v1071 = vmul.f32 %v1007, 0.5
      %v1072 = vmul.f32 %v1008, 0.5
      %v1073 = vmul.f32 %v1009, 0.5
      %v1074 = vmul.f32 %v1010, 0.5
      %v1075 = vmul.f32 %v1011, 0.5
      %v1076 = vmul.f32 %v1012, 0.5
      %v1077 = vmul.f32 %v1013, 0.5
      %v1078 = vmul.f32 %v1014, 0.5
      %v1079 = vmul.f32 %v1015, 0.5
      %v1080 = vmul.f32 %v1016, 0.5
      %v1081 = vmul.f32 %v1017, 0.5
      %v1082 = vmul.f32 %v1018, 0.5
      %v1083 = vmul.f32 %v1019, 0.5
      %v1084 = vmul.f32 %v1020, 0.5
      %v1085 = vmul.f32 %v1021, 0.5
      %v1086 = vmul.f32 %v1022, 0.5
      %v1087 = vmul.f32 %v1023, 0.5
      %v1088 = vmul.f32 %v1024, 0.5
      %v1089 = vmul.f32 %v1025, 0.5
      %v1090 = vmul.f32 %v1026, 0.5
      %v1091 = vmul.f32 %v1027, 0.5
      %v1092 = vmul.f32 %v1028, 0.5
      %v1093 = vmul.f32 %v1029, 0.5
      %v1094 = vmul.f32 %v1030, 0.5
      %v1095 = vmul.f32 %v1031, 0.5
      %v1096 = vmul.f32 %v1032, 0.5
      %v1097 = vmul.f32 %v1033, 0.5
      %v1098 = vmul.f32 %v1034, 0.5
      %v1099 = vmul.f32 %v1035, 0.5
      %v1100 = vmul.f32 %v1036, 0.5
      %v1101 = vmul.f32 %v1037, 0.5
      %v1102 = vmul.f32 %v1038, 0.5
      %v1103 = vmul.f32 %v1039, 0.5
      %v1104 = vmul.f32 %v1040, 0.5
      %v1105 = vmul.f32 %v1041, 0.5
      %v1106 = vmul.f32 %v1042, 0.5
      %v1107 = vmul.f32 %v1043, 0.5
      %v1108 = vmul.f32 %v1044, 0.5
      %v1109 = vmul.f32 %v1045, 0.5
      %v1110 = vmul.f32 %v1046, 0.5
      %v1111 = vmul.f32 %v1047, 0.5
      %v1112 = vmul.f32 %v1048, 0.5
      %v1113 = vmul.f32 %v1049, 0.5
      %v1114 = vmul.f32 %v1050, 0.5
      %v1115 = vmul.f32 %v1051, 0.5
      %v1116 = vmul.f32 %v1052, 0.5
      %v1117 = vmul.f32 %v1053, 0.5
      %v1118 = vmul.f32 %v1054, 0.5
      %v1119 = vmul.f32 %v1055, 0.5
      %v1120 = vmul.f32 %v1056, 0.5
      %v1121 = vmul.f32 %v1057, 0.5
      %v1122 = vmul.f32 %v1058, 0.5
      %v1123 = vmul.f32 %v1059, 0.5
      %v1124 = vmul.f32 %v1060, 0.5
      %v1125 = vmul.f32 %v1061, 0.5
      %v1126 = vmul.f32 %v1062, 0.5
      %v1127 = vmul.f32 %v1063, 0.5
      %v1128 = vmul.f32 %v1064, 0.5
      %v1129 = vmul.f32 %v1065, 0.5
      %v1130 = vmul.f32 %v1066, 0.5
      %v1131 = vmul.f32 %v1067, 0.5
      %v1132 = vmul.f32 %v556, %v1068
      %v1133 = vmul.f32 %v557, %v1069
      %v1134 = vmul.f32 %v558, %v1070
      %v1135 = vmul.f32 %v559, %v1071
      %v1136 = vmul.f32 %v560, %v1072
      %v1137 = vmul.f32 %v561, %v1073
      %v1138 = vmul.f32 %v562, %v1074
      %v1139 = vmul.f32 %v563, %v1075
      %v1140 = vmul.f32 %v564, %v1076
      %v1141 = vmul.f32 %v565, %v1077
      %v1142 = vmul.f32 %v566, %v1078
      %v1143 = vmul.f32 %v567, %v1079
      %v1144 = vmul.f32 %v568, %v1080
      %v1145 = vmul.f32 %v569, %v1081
      %v1146 = vmul.f32 %v570, %v1082
      %v1147 = vmul.f32 %v571, %v1083
      %v1148 = vmul.f32 %v572, %v1084
      %v1149 = vmul.f32 %v573, %v1085
      %v1150 = vmul.f32 %v574, %v1086
      %v1151 = vmul.f32 %v575, %v1087
      %v1152 = vmul.f32 %v576, %v1088
      %v1153 = vmul.f32 %v577, %v1089
      %v1154 = vmul.f32 %v578, %v1090
      %v1155 = vmul.f32 %v579, %v1091
      %v1156 = vmul.f32 %v580, %v1092
      %v1157 = vmul.f32 %v581, %v1093
      %v1158 = vmul.f32 %v582, %v1094
      %v1159 = vmul.f32 %v583, %v1095
      %v1160 = vmul.f32 %v584, %v1096
      %v1161 = vmul.f32 %v585, %v1097
      %v1162 = vmul.f32 %v586, %v1098
      %v1163 = vmul.f32 %v587, %v1099
      %v1164 = vmul.f32 %v588, %v1100
      %v1165 = vmul.f32 %v589, %v1101
      %v1166 = vmul.f32 %v590, %v1102
      %v1167 = vmul.f32 %v591, %v1103
      %v1168 = vmul.f32 %v592, %v1104
      %v1169 = vmul.f32 %v593, %v1105
      %v1170 = vmul.f32 %v594, %v1106
      %v1171 = vmul.f32 %v595, %v1107
      %v1172 = vmul.f32 %v596, %v1108
      %v1173 = vmul.f32 %v597, %v1109
      %v1174 = vmul.f32 %v598, %v1110
      %v1175 = vmul.f32 %v599, %v1111
      %v1176 = vmul.f32 %v600, %v1112
      %v1177 = vmul.f32 %v601, %v1113
      %v1178 = vmul.f32 %v602, %v1114
      %v1179 = vmul.f32 %v603, %v1115
      %v1180 = vmul.f32 %v604, %v1116
      %v1181 = vmul.f32 %v605, %v1117
      %v1182 = vmul.f32 %v606, %v1118
      %v1183 = vmul.f32 %v607, %v1119
      %v1184 = vmul.f32 %v608, %v1120
      %v1185 = vmul.f32 %v609, %v1121
      %v1186 = vmul.f32 %v610, %v1122
      %v1187 = vmul.f32 %v611, %v1123
      %v1188 = vmul.f32 %v612, %v1124
      %v1189 = vmul.f32 %v613, %v1125
      %v1190 = vmul.f32 %v614, %v1126
      %v1191 = vmul.f32 %v615, %v1127
      %v1192 = vmul.f32 %v616, %v1128
      %v1193 = vmul.f32 %v617, %v1129
      %v1194 = vmul.f32 %v618, %v1130
      %v1195 = vmul.f32 %v619, %v1131
      %v1196 = vld [vmem:[#allocation2] sm:$0xff]
      %v1197 = vld [vmem:[#allocation2 + $0x8] sm:$0xff]
      %v1198 = vld [vmem:[#allocation2 + $0x10] sm:$0xff]
      %v1199 = vld [vmem:[#allocation2 + $0x18] sm:$0xff]
      %v1200 = vld [vmem:[#allocation2 + $0x20] sm:$0xff]
      %v1201 = vld [vmem:[#allocation2 + $0x28] sm:$0xff]
      %v1202 = vld [vmem:[#allocation2 + $0x30] sm:$0xff]
      %v1203 = vld [vmem:[#allocation2 + $0x38] sm:$0xff]
      %v1204 = vld [vmem:[#allocation2 + $0x40] sm:$0xff]
      %v1205 = vld [vmem:[#allocation2 + $0x48] sm:$0xff]
      %v1206 = vld [vmem:[#allocation2 + $0x50] sm:$0xff]
      %v1207 = vld [vmem:[#allocation2 + $0x58] sm:$0xff]
      %v1208 = vld [vmem:[#allocation2 + $0x60] sm:$0xff]
      %v1209 = vld [vmem:[#allocation2 + $0x68] sm:$0xff]
      %v1210 = vld [vmem:[#allocation2 + $0x70] sm:$0xff]
      %v1211 = vld [vmem:[#allocation2 + $0x78] sm:$0xff]
      %v1212 = vld [vmem:[#allocation2 + $0x80] sm:$0xff]
      %v1213 = vld [vmem:[#allocation2 + $0x88] sm:$0xff]
      %v1214 = vld [vmem:[#allocation2 + $0x90] sm:$0xff]
      %v1215 = vld [vmem:[#allocation2 + $0x98] sm:$0xff]
      %v1216 = vld [vmem:[#allocation2 + $0xa0] sm:$0xff]
      %v1217 = vld [vmem:[#allocation2 + $0xa8] sm:$0xff]
      %v1218 = vld [vmem:[#allocation2 + $0xb0] sm:$0xff]
      %v1219 = vld [vmem:[#allocation2 + $0xb8] sm:$0xff]
      %v1220 = vld [vmem:[#allocation2 + $0xc0] sm:$0xff]
      %v1221 = vld [vmem:[#allocation2 + $0xc8] sm:$0xff]
      %v1222 = vld [vmem:[#allocation2 + $0xd0] sm:$0xff]
      %v1223 = vld [vmem:[#allocation2 + $0xd8] sm:$0xff]
      %v1224 = vld [vmem:[#allocation2 + $0xe0] sm:$0xff]
      %v1225 = vld [vmem:[#allocation2 + $0xe8] sm:$0xff]
      %v1226 = vld [vmem:[#allocation2 + $0xf0] sm:$0xff]
      %v1227 = vld [vmem:[#allocation2 + $0xf8] sm:$0xff]
      %v1228 = vpack.c.bf16 %v1134, %v1132
      %v1229 = vpack.c.bf16 %v1135, %v1133
      %v1230 = vpack.c.bf16 %v1138, %v1136
      %v1231 = vpack.c.bf16 %v1139, %v1137
      %v1232 = vpack.c.bf16 %v1142, %v1140
      %v1233 = vpack.c.bf16 %v1143, %v1141
      %v1234 = vpack.c.bf16 %v1146, %v1144
      %v1235 = vpack.c.bf16 %v1147, %v1145
      %v1236 = vpack.c.bf16 %v1150, %v1148
      %v1237 = vpack.c.bf16 %v1151, %v1149
      %v1238 = vpack.c.bf16 %v1154, %v1152
      %v1239 = vpack.c.bf16 %v1155, %v1153
      %v1240 = vpack.c.bf16 %v1158, %v1156
      %v1241 = vpack.c.bf16 %v1159, %v1157
      %v1242 = vpack.c.bf16 %v1162, %v1160
      %v1243 = vpack.c.bf16 %v1163, %v1161
      %v1244 = vpack.c.bf16 %v1166, %v1164
      %v1245 = vpack.c.bf16 %v1167, %v1165
      %v1246 = vpack.c.bf16 %v1170, %v1168
      %v1247 = vpack.c.bf16 %v1171, %v1169
      %v1248 = vpack.c.bf16 %v1174, %v1172
      %v1249 = vpack.c.bf16 %v1175, %v1173
      %v1250 = vpack.c.bf16 %v1178, %v1176
      %v1251 = vpack.c.bf16 %v1179, %v1177
      %v1252 = vpack.c.bf16 %v1182, %v1180
      %v1253 = vpack.c.bf16 %v1183, %v1181
      %v1254 = vpack.c.bf16 %v1186, %v1184
      %v1255 = vpack.c.bf16 %v1187, %v1185
      %v1256 = vpack.c.bf16 %v1190, %v1188
      %v1257 = vpack.c.bf16 %v1191, %v1189
      %v1258 = vpack.c.bf16 %v1194, %v1192
      %v1259 = vpack.c.bf16 %v1195, %v1193
      %v1260 = vld [vmem:[%s351] sm:$0xf]
      %v1261 = vld [vmem:[%s351 + $0x4] sm:$0xf]
      %v1262 = vld [vmem:[%s351 + $0x8] sm:$0xf]
      %v1263 = vld [vmem:[%s351 + $0xc] sm:$0xf]
      %v1264 = vld [vmem:[%s351 + $0x10] sm:$0xf]
      %v1265 = vld [vmem:[%s351 + $0x14] sm:$0xf]
      %v1266 = vld [vmem:[%s351 + $0x18] sm:$0xf]
      %v1267 = vld [vmem:[%s351 + $0x1c] sm:$0xf]
      %v1268 = vld [vmem:[%s351 + $0x20] sm:$0xf]
      %v1269 = vld [vmem:[%s351 + $0x24] sm:$0xf]
      %v1270 = vld [vmem:[%s351 + $0x28] sm:$0xf]
      %v1271 = vld [vmem:[%s351 + $0x2c] sm:$0xf]
      %v1272 = vld [vmem:[%s351 + $0x30] sm:$0xf]
      %v1273 = vld [vmem:[%s351 + $0x34] sm:$0xf]
      %v1274 = vld [vmem:[%s351 + $0x38] sm:$0xf]
      %v1275 = vld [vmem:[%s351 + $0x3c] sm:$0xf]
      %v1276 = vld [vmem:[%s351 + $0x40] sm:$0xf]
      %v1277 = vld [vmem:[%s351 + $0x44] sm:$0xf]
      %v1278 = vld [vmem:[%s351 + $0x48] sm:$0xf]
      %v1279 = vld [vmem:[%s351 + $0x4c] sm:$0xf]
      %v1280 = vld [vmem:[%s351 + $0x50] sm:$0xf]
      %v1281 = vld [vmem:[%s351 + $0x54] sm:$0xf]
      %v1282 = vld [vmem:[%s351 + $0x58] sm:$0xf]
      %v1283 = vld [vmem:[%s351 + $0x5c] sm:$0xf]
      %v1284 = vld [vmem:[%s351 + $0x60] sm:$0xf]
      %v1285 = vld [vmem:[%s351 + $0x64] sm:$0xf]
      %v1286 = vld [vmem:[%s351 + $0x68] sm:$0xf]
      %v1287 = vld [vmem:[%s351 + $0x6c] sm:$0xf]
      %v1288 = vld [vmem:[%s351 + $0x70] sm:$0xf]
      %v1289 = vld [vmem:[%s351 + $0x74] sm:$0xf]
      %v1290 = vld [vmem:[%s351 + $0x78] sm:$0xf]
      %v1291 = vld [vmem:[%s351 + $0x7c] sm:$0xf]
      %v1324 = vunpack.c.l.b16 %v1260
      %v1325 = vunpack.c.l.b16 %v1261
      %v1326 = vunpack.c.l.b16 %v1262
      %v1327 = vunpack.c.l.b16 %v1263
      %v1328 = vunpack.c.l.b16 %v1264
      %v1329 = vunpack.c.l.b16 %v1265
      %v1330 = vunpack.c.l.b16 %v1266
      %v1331 = vunpack.c.l.b16 %v1267
      %v1332 = vunpack.c.l.b16 %v1268
      %v1333 = vunpack.c.l.b16 %v1269
      %v1334 = vunpack.c.l.b16 %v1270
      %v1335 = vunpack.c.l.b16 %v1271
      %v1336 = vunpack.c.l.b16 %v1272
      %v1337 = vunpack.c.l.b16 %v1273
      %v1338 = vunpack.c.l.b16 %v1274
      %v1339 = vunpack.c.l.b16 %v1275
      %v1340 = vunpack.c.l.b16 %v1276
      %v1341 = vunpack.c.l.b16 %v1277
      %v1342 = vunpack.c.l.b16 %v1278
      %v1343 = vunpack.c.l.b16 %v1279
      %v1344 = vunpack.c.l.b16 %v1280
      %v1345 = vunpack.c.l.b16 %v1281
      %v1346 = vunpack.c.l.b16 %v1282
      %v1347 = vunpack.c.l.b16 %v1283
      %v1348 = vunpack.c.l.b16 %v1284
      %v1349 = vunpack.c.l.b16 %v1285
      %v1350 = vunpack.c.l.b16 %v1286
      %v1351 = vunpack.c.l.b16 %v1287
      %v1352 = vunpack.c.l.b16 %v1288
      %v1353 = vunpack.c.l.b16 %v1289
      %v1354 = vunpack.c.l.b16 %v1290
      %v1355 = vunpack.c.l.b16 %v1291
      %v1356 = vpack.c.b16 %v1325, %v1324
      %v1357 = vpack.c.b16 %v1327, %v1326
      %v1358 = vpack.c.b16 %v1329, %v1328
      %v1359 = vpack.c.b16 %v1331, %v1330
      %v1360 = vpack.c.b16 %v1333, %v1332
      %v1361 = vpack.c.b16 %v1335, %v1334
      %v1362 = vpack.c.b16 %v1337, %v1336
      %v1363 = vpack.c.b16 %v1339, %v1338
      %v1364 = vpack.c.b16 %v1341, %v1340
      %v1365 = vpack.c.b16 %v1343, %v1342
      %v1366 = vpack.c.b16 %v1345, %v1344
      %v1367 = vpack.c.b16 %v1347, %v1346
      %v1368 = vpack.c.b16 %v1349, %v1348
      %v1369 = vpack.c.b16 %v1351, %v1350
      %v1370 = vpack.c.b16 %v1353, %v1352
      %v1371 = vpack.c.b16 %v1355, %v1354
      %1388 = vmatprep.subr.bf16.mxu0 0
      %1389 = vmatpush1.bf16.msra.mxu0 %v1356
      %1390 = vmatprep.subr.bf16.mxu0 0
      %1391 = vmatpush1.bf16.msra.mxu0 %v1357
      %1392 = vmatprep.subr.bf16.mxu0 0
      %1393 = vmatpush1.bf16.msra.mxu0 %v1358
      %1394 = vmatprep.subr.bf16.mxu0 0
      %1395 = vmatpush1.bf16.msra.mxu0 %v1359
      %1396 = vmatprep.subr.bf16.mxu0 0
      %1397 = vmatpush1.bf16.msra.mxu0 %v1360
      %1398 = vmatprep.subr.bf16.mxu0 0
      %1399 = vmatpush1.bf16.msra.mxu0 %v1361
      %1400 = vmatprep.subr.bf16.mxu0 0
      %1401 = vmatpush1.bf16.msra.mxu0 %v1362
      %1402 = vmatprep.subr.bf16.mxu0 0
      %1403 = vmatpush1.bf16.msra.mxu0 %v1363
      %1404 = vmatprep.subr.bf16.mxu0 0
      %1405 = vmatpush1.bf16.msra.mxu0 %v1364
      %1406 = vmatprep.subr.bf16.mxu0 0
      %1407 = vmatpush1.bf16.msra.mxu0 %v1365
      %1408 = vmatprep.subr.bf16.mxu0 0
      %1409 = vmatpush1.bf16.msra.mxu0 %v1366
      %1410 = vmatprep.subr.bf16.mxu0 0
      %1411 = vmatpush1.bf16.msra.mxu0 %v1367
      %1412 = vmatprep.subr.bf16.mxu0 0
      %1413 = vmatpush1.bf16.msra.mxu0 %v1368
      %1414 = vmatprep.subr.bf16.mxu0 0
      %1415 = vmatpush1.bf16.msra.mxu0 %v1369
      %1416 = vmatprep.subr.bf16.mxu0 0
      %1417 = vmatpush1.bf16.msra.mxu0 %v1370
      %1418 = vmatprep.subr.bf16.mxu0 0
      %1419 = vmatpush1.bf16.msra.mxu0 %v1371
      %1420 = vmatprep.mubr.bf16.mxu0 %v1229
      %1421 = vmatmul.mubr.bf16.gmra.mrb[0].mxu0 %v1228
      %v1422 = vpop.f32.mrb[0].mxu0
      %v1423 = vadd.f32 0.0, %v1422
      %v1424 = vpop.f32.mrb[0].mxu0
      %v1425 = vpop.f32.mrb[0].mxu0
      %v1426 = vadd.f32 0.0, %v1425
      %v1427 = vpop.f32.mrb[0].mxu0
      %1428 = vmatprep.mubr.bf16.mxu0 %v1231
      %1429 = vmatmul.mubr.bf16.gmra.mrb[0].mxu0 %v1230
      %v1430 = vpop.f32.mrb[0].mxu0
      %v1431 = vadd.f32 0.0, %v1430
      %v1432 = vpop.f32.mrb[0].mxu0
      %v1433 = vpop.f32.mrb[0].mxu0
      %v1434 = vadd.f32 0.0, %v1433
      %v1435 = vpop.f32.mrb[0].mxu0
      %1436 = vmatprep.mubr.bf16.mxu0 %v1233
      %1437 = vmatmul.mubr.bf16.gmra.mrb[0].mxu0 %v1232
      %v1438 = vpop.f32.mrb[0].mxu0
      %v1439 = vadd.f32 0.0, %v1438
      %v1440 = vpop.f32.mrb[0].mxu0
      %v1441 = vpop.f32.mrb[0].mxu0
      %v1442 = vadd.f32 0.0, %v1441
      %v1443 = vpop.f32.mrb[0].mxu0
      %1444 = vmatprep.mubr.bf16.mxu0 %v1235
      %1445 = vmatmul.mubr.bf16.gmra.mrb[0].mxu0 %v1234
      %v1446 = vpop.f32.mrb[0].mxu0
      %v1447 = vadd.f32 0.0, %v1446
      %v1448 = vpop.f32.mrb[0].mxu0
      %v1449 = vpop.f32.mrb[0].mxu0
      %v1450 = vadd.f32 0.0, %v1449
      %v1451 = vpop.f32.mrb[0].mxu0
      %1452 = vmatprep.mubr.bf16.mxu0 %v1237
      %1453 = vmatmul.mubr.bf16.gmra.mrb[0].mxu0 %v1236
      %v1454 = vpop.f32.mrb[0].mxu0
      %v1455 = vadd.f32 0.0, %v1454
      %v1456 = vpop.f32.mrb[0].mxu0
      %v1457 = vpop.f32.mrb[0].mxu0
      %v1458 = vadd.f32 0.0, %v1457
      %v1459 = vpop.f32.mrb[0].mxu0
      %1460 = vmatprep.mubr.bf16.mxu0 %v1239
      %1461 = vmatmul.mubr.bf16.gmra.mrb[0].mxu0 %v1238
      %v1462 = vpop.f32.mrb[0].mxu0
      %v1463 = vadd.f32 0.0, %v1462
      %v1464 = vpop.f32.mrb[0].mxu0
      %v1465 = vpop.f32.mrb[0].mxu0
      %v1466 = vadd.f32 0.0, %v1465
      %v1467 = vpop.f32.mrb[0].mxu0
      %1468 = vmatprep.mubr.bf16.mxu0 %v1241
      %1469 = vmatmul.mubr.bf16.gmra.mrb[0].mxu0 %v1240
      %v1470 = vpop.f32.mrb[0].mxu0
      %v1471 = vadd.f32 0.0, %v1470
      %v1472 = vpop.f32.mrb[0].mxu0
      %v1473 = vpop.f32.mrb[0].mxu0
      %v1474 = vadd.f32 0.0, %v1473
      %v1475 = vpop.f32.mrb[0].mxu0
      %1476 = vmatprep.mubr.bf16.mxu0 %v1243
      %1477 = vmatmul.mubr.bf16.gmra.mrb[0].mxu0 %v1242
      %v1478 = vpop.f32.mrb[0].mxu0
      %v1479 = vadd.f32 0.0, %v1478
      %v1480 = vpop.f32.mrb[0].mxu0
      %v1481 = vpop.f32.mrb[0].mxu0
      %v1482 = vadd.f32 0.0, %v1481
      %v1483 = vpop.f32.mrb[0].mxu0
      %1484 = vmatprep.mubr.bf16.mxu0 %v1245
      %1485 = vmatmul.mubr.bf16.gmra.mrb[0].mxu0 %v1244
      %v1486 = vpop.f32.mrb[0].mxu0
      %v1487 = vadd.f32 0.0, %v1486
      %v1488 = vpop.f32.mrb[0].mxu0
      %v1489 = vpop.f32.mrb[0].mxu0
      %v1490 = vadd.f32 0.0, %v1489
      %v1491 = vpop.f32.mrb[0].mxu0
      %1492 = vmatprep.mubr.bf16.mxu0 %v1247
      %1493 = vmatmul.mubr.bf16.gmra.mrb[0].mxu0 %v1246
      %v1494 = vpop.f32.mrb[0].mxu0
      %v1495 = vadd.f32 0.0, %v1494
      %v1496 = vpop.f32.mrb[0].mxu0
      %v1497 = vpop.f32.mrb[0].mxu0
      %v1498 = vadd.f32 0.0, %v1497
      %v1499 = vpop.f32.mrb[0].mxu0
      %1500 = vmatprep.mubr.bf16.mxu0 %v1249
      %1501 = vmatmul.mubr.bf16.gmra.mrb[0].mxu0 %v1248
      %v1502 = vpop.f32.mrb[0].mxu0
      %v1503 = vadd.f32 0.0, %v1502
      %v1504 = vpop.f32.mrb[0].mxu0
      %v1505 = vpop.f32.mrb[0].mxu0
      %v1506 = vadd.f32 0.0, %v1505
      %v1507 = vpop.f32.mrb[0].mxu0
      %1508 = vmatprep.mubr.bf16.mxu0 %v1251
      %1509 = vmatmul.mubr.bf16.gmra.mrb[0].mxu0 %v1250
      %v1510 = vpop.f32.mrb[0].mxu0
      %v1511 = vadd.f32 0.0, %v1510
      %v1512 = vpop.f32.mrb[0].mxu0
      %v1513 = vpop.f32.mrb[0].mxu0
      %v1514 = vadd.f32 0.0, %v1513
      %v1515 = vpop.f32.mrb[0].mxu0
      %1516 = vmatprep.mubr.bf16.mxu0 %v1253
      %1517 = vmatmul.mubr.bf16.gmra.mrb[0].mxu0 %v1252
      %v1518 = vpop.f32.mrb[0].mxu0
      %v1519 = vadd.f32 0.0, %v1518
      %v1520 = vpop.f32.mrb[0].mxu0
      %v1521 = vpop.f32.mrb[0].mxu0
      %v1522 = vadd.f32 0.0, %v1521
      %v1523 = vpop.f32.mrb[0].mxu0
      %1524 = vmatprep.mubr.bf16.mxu0 %v1255
      %1525 = vmatmul.mubr.bf16.gmra.mrb[0].mxu0 %v1254
      %v1526 = vpop.f32.mrb[0].mxu0
      %v1527 = vadd.f32 0.0, %v1526
      %v1528 = vpop.f32.mrb[0].mxu0
      %v1529 = vpop.f32.mrb[0].mxu0
      %v1530 = vadd.f32 0.0, %v1529
      %v1531 = vpop.f32.mrb[0].mxu0
      %1532 = vmatprep.mubr.bf16.mxu0 %v1257
      %1533 = vmatmul.mubr.bf16.gmra.mrb[0].mxu0 %v1256
      %v1534 = vpop.f32.mrb[0].mxu0
      %v1535 = vadd.f32 0.0, %v1534
      %v1536 = vpop.f32.mrb[0].mxu0
      %v1537 = vpop.f32.mrb[0].mxu0
      %v1538 = vadd.f32 0.0, %v1537
      %v1539 = vpop.f32.mrb[0].mxu0
      %1540 = vmatprep.mubr.bf16.mxu0 %v1259
      %1541 = vmatmul.mubr.bf16.gmra.mrb[0].mxu0 %v1258
      %v1542 = vpop.f32.mrb[0].mxu0
      %v1543 = vadd.f32 0.0, %v1542
      %v1544 = vpop.f32.mrb[0].mxu0
      %v1545 = vpop.f32.mrb[0].mxu0
      %v1546 = vadd.f32 0.0, %v1545
      %v1547 = vpop.f32.mrb[0].mxu0
      %1548 = vdwg.mxu0
      %v1549 = vadd.f32 %v1196, %v1423
      %v1550 = vadd.f32 %v1197, %v1426
      %v1551 = vadd.f32 %v1198, %v1431
      %v1552 = vadd.f32 %v1199, %v1434
      %v1553 = vadd.f32 %v1200, %v1439
      %v1554 = vadd.f32 %v1201, %v1442
      %v1555 = vadd.f32 %v1202, %v1447
      %v1556 = vadd.f32 %v1203, %v1450
      %v1557 = vadd.f32 %v1204, %v1455
      %v1558 = vadd.f32 %v1205, %v1458
      %v1559 = vadd.f32 %v1206, %v1463
      %v1560 = vadd.f32 %v1207, %v1466
      %v1561 = vadd.f32 %v1208, %v1471
      %v1562 = vadd.f32 %v1209, %v1474
      %v1563 = vadd.f32 %v1210, %v1479
      %v1564 = vadd.f32 %v1211, %v1482
      %v1565 = vadd.f32 %v1212, %v1487
      %v1566 = vadd.f32 %v1213, %v1490
      %v1567 = vadd.f32 %v1214, %v1495
      %v1568 = vadd.f32 %v1215, %v1498
      %v1569 = vadd.f32 %v1216, %v1503
      %v1570 = vadd.f32 %v1217, %v1506
      %v1571 = vadd.f32 %v1218, %v1511
      %v1572 = vadd.f32 %v1219, %v1514
      %v1573 = vadd.f32 %v1220, %v1519
      %v1574 = vadd.f32 %v1221, %v1522
      %v1575 = vadd.f32 %v1222, %v1527
      %v1576 = vadd.f32 %v1223, %v1530
      %v1577 = vadd.f32 %v1224, %v1535
      %v1578 = vadd.f32 %v1225, %v1538
      %v1579 = vadd.f32 %v1226, %v1543
      %v1580 = vadd.f32 %v1227, %v1546
      %1581 = vst [vmem:[#allocation2] sm:$0xff] %v1549
      %1582 = vst [vmem:[#allocation2 + $0x8] sm:$0xff] %v1550
      %1583 = vst [vmem:[#allocation2 + $0x10] sm:$0xff] %v1551
      %1584 = vst [vmem:[#allocation2 + $0x18] sm:$0xff] %v1552
      %1585 = vst [vmem:[#allocation2 + $0x20] sm:$0xff] %v1553
      %1586 = vst [vmem:[#allocation2 + $0x28] sm:$0xff] %v1554
      %1587 = vst [vmem:[#allocation2 + $0x30] sm:$0xff] %v1555
      %1588 = vst [vmem:[#allocation2 + $0x38] sm:$0xff] %v1556
      %1589 = vst [vmem:[#allocation2 + $0x40] sm:$0xff] %v1557
      %1590 = vst [vmem:[#allocation2 + $0x48] sm:$0xff] %v1558
      %1591 = vst [vmem:[#allocation2 + $0x50] sm:$0xff] %v1559
      %1592 = vst [vmem:[#allocation2 + $0x58] sm:$0xff] %v1560
      %1593 = vst [vmem:[#allocation2 + $0x60] sm:$0xff] %v1561
      %1594 = vst [vmem:[#allocation2 + $0x68] sm:$0xff] %v1562
      %1595 = vst [vmem:[#allocation2 + $0x70] sm:$0xff] %v1563
      %1596 = vst [vmem:[#allocation2 + $0x78] sm:$0xff] %v1564
      %1597 = vst [vmem:[#allocation2 + $0x80] sm:$0xff] %v1565
      %1598 = vst [vmem:[#allocation2 + $0x88] sm:$0xff] %v1566
      %1599 = vst [vmem:[#allocation2 + $0x90] sm:$0xff] %v1567
      %1600 = vst [vmem:[#allocation2 + $0x98] sm:$0xff] %v1568
      %1601 = vst [vmem:[#allocation2 + $0xa0] sm:$0xff] %v1569
      %1602 = vst [vmem:[#allocation2 + $0xa8] sm:$0xff] %v1570
      %1603 = vst [vmem:[#allocation2 + $0xb0] sm:$0xff] %v1571
      %1604 = vst [vmem:[#allocation2 + $0xb8] sm:$0xff] %v1572
      %1605 = vst [vmem:[#allocation2 + $0xc0] sm:$0xff] %v1573
      %1606 = vst [vmem:[#allocation2 + $0xc8] sm:$0xff] %v1574
      %1607 = vst [vmem:[#allocation2 + $0xd0] sm:$0xff] %v1575
      %1608 = vst [vmem:[#allocation2 + $0xd8] sm:$0xff] %v1576
      %1609 = vst [vmem:[#allocation2 + $0xe0] sm:$0xff] %v1577
      %1610 = vst [vmem:[#allocation2 + $0xe8] sm:$0xff] %v1578
      %1611 = vst [vmem:[#allocation2 + $0xf0] sm:$0xff] %v1579
      %1612 = vst [vmem:[#allocation2 + $0xf8] sm:$0xff] %v1580
      // Predicated region
      $region41: #{attention_block_b_forward.4} parent=35 // pred_check
        %p1613 = pneg %p368
      $region42: #{attention_block_b_forward.4} parent=35 // pred_check_branch
        %1615 = sbr.rel (%p1613) target = $region44
      $region43: #{attention_block_b_forward.4} parent=35 // pred_region
        %v1616 = vld [vmem:[#allocation2] sm:$0xff]
        %v1617 = vld [vmem:[#allocation2 + $0x8] sm:$0xff]
        %v1618 = vld [vmem:[#allocation2 + $0x10] sm:$0xff]
        %v1619 = vld [vmem:[#allocation2 + $0x18] sm:$0xff]
        %v1620 = vld [vmem:[#allocation2 + $0x20] sm:$0xff]
        %v1621 = vld [vmem:[#allocation2 + $0x28] sm:$0xff]
        %v1622 = vld [vmem:[#allocation2 + $0x30] sm:$0xff]
        %v1623 = vld [vmem:[#allocation2 + $0x38] sm:$0xff]
        %v1624 = vld [vmem:[#allocation2 + $0x40] sm:$0xff]
        %v1625 = vld [vmem:[#allocation2 + $0x48] sm:$0xff]
        %v1626 = vld [vmem:[#allocation2 + $0x50] sm:$0xff]
        %v1627 = vld [vmem:[#allocation2 + $0x58] sm:$0xff]
        %v1628 = vld [vmem:[#allocation2 + $0x60] sm:$0xff]
        %v1629 = vld [vmem:[#allocation2 + $0x68] sm:$0xff]
        %v1630 = vld [vmem:[#allocation2 + $0x70] sm:$0xff]
        %v1631 = vld [vmem:[#allocation2 + $0x78] sm:$0xff]
        %v1632 = vld [vmem:[#allocation2 + $0x80] sm:$0xff]
        %v1633 = vld [vmem:[#allocation2 + $0x88] sm:$0xff]
        %v1634 = vld [vmem:[#allocation2 + $0x90] sm:$0xff]
        %v1635 = vld [vmem:[#allocation2 + $0x98] sm:$0xff]
        %v1636 = vld [vmem:[#allocation2 + $0xa0] sm:$0xff]
        %v1637 = vld [vmem:[#allocation2 + $0xa8] sm:$0xff]
        %v1638 = vld [vmem:[#allocation2 + $0xb0] sm:$0xff]
        %v1639 = vld [vmem:[#allocation2 + $0xb8] sm:$0xff]
        %v1640 = vld [vmem:[#allocation2 + $0xc0] sm:$0xff]
        %v1641 = vld [vmem:[#allocation2 + $0xc8] sm:$0xff]
        %v1642 = vld [vmem:[#allocation2 + $0xd0] sm:$0xff]
        %v1643 = vld [vmem:[#allocation2 + $0xd8] sm:$0xff]
        %v1644 = vld [vmem:[#allocation2 + $0xe0] sm:$0xff]
        %v1645 = vld [vmem:[#allocation2 + $0xe8] sm:$0xff]
        %v1646 = vld [vmem:[#allocation2 + $0xf0] sm:$0xff]
        %v1647 = vld [vmem:[#allocation2 + $0xf8] sm:$0xff]
        %v1648 = vpack.c.bf16 %v1617, %v1616
        %v1649 = vpack.c.bf16 %v1619, %v1618
        %v1650 = vpack.c.bf16 %v1621, %v1620
        %v1651 = vpack.c.bf16 %v1623, %v1622
        %v1652 = vpack.c.bf16 %v1625, %v1624
        %v1653 = vpack.c.bf16 %v1627, %v1626
        %v1654 = vpack.c.bf16 %v1629, %v1628
        %v1655 = vpack.c.bf16 %v1631, %v1630
        %v1656 = vpack.c.bf16 %v1633, %v1632
        %v1657 = vpack.c.bf16 %v1635, %v1634
        %v1658 = vpack.c.bf16 %v1637, %v1636
        %v1659 = vpack.c.bf16 %v1639, %v1638
        %v1660 = vpack.c.bf16 %v1641, %v1640
        %v1661 = vpack.c.bf16 %v1643, %v1642
        %v1662 = vpack.c.bf16 %v1645, %v1644
        %v1663 = vpack.c.bf16 %v1647, %v1646
        %v1680 = vunpack.c.l.b16 %v1648
        %v1681 = vunpack.c.h.b16 %v1648
        %v1682 = vunpack.c.l.b16 %v1649
        %v1683 = vunpack.c.h.b16 %v1649
        %v1684 = vunpack.c.l.b16 %v1650
        %v1685 = vunpack.c.h.b16 %v1650
        %v1686 = vunpack.c.l.b16 %v1651
        %v1687 = vunpack.c.h.b16 %v1651
        %v1688 = vunpack.c.l.b16 %v1652
        %v1689 = vunpack.c.h.b16 %v1652
        %v1690 = vunpack.c.l.b16 %v1653
        %v1691 = vunpack.c.h.b16 %v1653
        %v1692 = vunpack.c.l.b16 %v1654
        %v1693 = vunpack.c.h.b16 %v1654
        %v1694 = vunpack.c.l.b16 %v1655
        %v1695 = vunpack.c.h.b16 %v1655
        %v1696 = vunpack.c.l.b16 %v1656
        %v1697 = vunpack.c.h.b16 %v1656
        %v1698 = vunpack.c.l.b16 %v1657
        %v1699 = vunpack.c.h.b16 %v1657
        %v1700 = vunpack.c.l.b16 %v1658
        %v1701 = vunpack.c.h.b16 %v1658
        %v1702 = vunpack.c.l.b16 %v1659
        %v1703 = vunpack.c.h.b16 %v1659
        %v1704 = vunpack.c.l.b16 %v1660
        %v1705 = vunpack.c.h.b16 %v1660
        %v1706 = vunpack.c.l.b16 %v1661
        %v1707 = vunpack.c.h.b16 %v1661
        %v1708 = vunpack.c.l.b16 %v1662
        %v1709 = vunpack.c.h.b16 %v1662
        %v1710 = vunpack.c.l.b16 %v1663
        %v1711 = vunpack.c.h.b16 %v1663
        %v1712 = vpack.c.b16 %v1680, %v1680
        %v1713 = vpack.c.b16 %v1681, %v1681
        %v1714 = vpack.c.b16 %v1682, %v1682
        %v1715 = vpack.c.b16 %v1683, %v1683
        %v1716 = vpack.c.b16 %v1684, %v1684
        %v1717 = vpack.c.b16 %v1685, %v1685
        %v1718 = vpack.c.b16 %v1686, %v1686
        %v1719 = vpack.c.b16 %v1687, %v1687
        %v1720 = vpack.c.b16 %v1688, %v1688
        %v1721 = vpack.c.b16 %v1689, %v1689
        %v1722 = vpack.c.b16 %v1690, %v1690
        %v1723 = vpack.c.b16 %v1691, %v1691
        %v1724 = vpack.c.b16 %v1692, %v1692
        %v1725 = vpack.c.b16 %v1693, %v1693
        %v1726 = vpack.c.b16 %v1694, %v1694
        %v1727 = vpack.c.b16 %v1695, %v1695
        %v1728 = vpack.c.b16 %v1696, %v1696
        %v1729 = vpack.c.b16 %v1697, %v1697
        %v1730 = vpack.c.b16 %v1698, %v1698
        %v1731 = vpack.c.b16 %v1699, %v1699
        %v1732 = vpack.c.b16 %v1700, %v1700
        %v1733 = vpack.c.b16 %v1701, %v1701
        %v1734 = vpack.c.b16 %v1702, %v1702
        %v1735 = vpack.c.b16 %v1703, %v1703
        %v1736 = vpack.c.b16 %v1704, %v1704
        %v1737 = vpack.c.b16 %v1705, %v1705
        %v1738 = vpack.c.b16 %v1706, %v1706
        %v1739 = vpack.c.b16 %v1707, %v1707
        %v1740 = vpack.c.b16 %v1708, %v1708
        %v1741 = vpack.c.b16 %v1709, %v1709
        %v1742 = vpack.c.b16 %v1710, %v1710
        %v1743 = vpack.c.b16 %v1711, %v1711
        %1776 = vst [vmem:[%s357] sm:$0xf] %v1712
        %1777 = vst [vmem:[%s357 + $0x4] sm:$0xf] %v1713
        %1778 = vst [vmem:[%s357 + $0x8] sm:$0xf] %v1714
        %1779 = vst [vmem:[%s357 + $0xc] sm:$0xf] %v1715
        %1780 = vst [vmem:[%s357 + $0x10] sm:$0xf] %v1716
        %1781 = vst [vmem:[%s357 + $0x14] sm:$0xf] %v1717
        %1782 = vst [vmem:[%s357 + $0x18] sm:$0xf] %v1718
        %1783 = vst [vmem:[%s357 + $0x1c] sm:$0xf] %v1719
        %1784 = vst [vmem:[%s357 + $0x20] sm:$0xf] %v1720
        %1785 = vst [vmem:[%s357 + $0x24] sm:$0xf] %v1721
        %1786 = vst [vmem:[%s357 + $0x28] sm:$0xf] %v1722
        %1787 = vst [vmem:[%s357 + $0x2c] sm:$0xf] %v1723
        %1788 = vst [vmem:[%s357 + $0x30] sm:$0xf] %v1724
        %1789 = vst [vmem:[%s357 + $0x34] sm:$0xf] %v1725
        %1790 = vst [vmem:[%s357 + $0x38] sm:$0xf] %v1726
        %1791 = vst [vmem:[%s357 + $0x3c] sm:$0xf] %v1727
        %1792 = vst [vmem:[%s357 + $0x40] sm:$0xf] %v1728
        %1793 = vst [vmem:[%s357 + $0x44] sm:$0xf] %v1729
        %1794 = vst [vmem:[%s357 + $0x48] sm:$0xf] %v1730
        %1795 = vst [vmem:[%s357 + $0x4c] sm:$0xf] %v1731
        %1796 = vst [vmem:[%s357 + $0x50] sm:$0xf] %v1732
        %1797 = vst [vmem:[%s357 + $0x54] sm:$0xf] %v1733
        %1798 = vst [vmem:[%s357 + $0x58] sm:$0xf] %v1734
        %1799 = vst [vmem:[%s357 + $0x5c] sm:$0xf] %v1735
        %1800 = vst [vmem:[%s357 + $0x60] sm:$0xf] %v1736
        %1801 = vst [vmem:[%s357 + $0x64] sm:$0xf] %v1737
        %1802 = vst [vmem:[%s357 + $0x68] sm:$0xf] %v1738
        %1803 = vst [vmem:[%s357 + $0x6c] sm:$0xf] %v1739
        %1804 = vst [vmem:[%s357 + $0x70] sm:$0xf] %v1740
        %1805 = vst [vmem:[%s357 + $0x74] sm:$0xf] %v1741
        %1806 = vst [vmem:[%s357 + $0x78] sm:$0xf] %v1742
        %1807 = vst [vmem:[%s357 + $0x7c] sm:$0xf] %v1743
        %v1808 = vadd.f32 %v1616, %v1617
        %v1809 = vadd.f32 %v1808, %v1618
        %v1810 = vadd.f32 %v1809, %v1619
        %v1811 = vadd.f32 %v1810, %v1620
        %v1812 = vadd.f32 %v1811, %v1621
        %v1813 = vadd.f32 %v1812, %v1622
        %v1814 = vadd.f32 %v1813, %v1623
        %v1815 = vadd.f32 %v1814, %v1624
        %v1816 = vadd.f32 %v1815, %v1625
        %v1817 = vadd.f32 %v1816, %v1626
        %v1818 = vadd.f32 %v1817, %v1627
        %v1819 = vadd.f32 %v1818, %v1628
        %v1820 = vadd.f32 %v1819, %v1629
        %v1821 = vadd.f32 %v1820, %v1630
        %v1822 = vadd.f32 %v1821, %v1631
        %v1823 = vadd.f32 %v1822, %v1632
        %v1824 = vadd.f32 %v1823, %v1633
        %v1825 = vadd.f32 %v1824, %v1634
        %v1826 = vadd.f32 %v1825, %v1635
        %v1827 = vadd.f32 %v1826, %v1636
        %v1828 = vadd.f32 %v1827, %v1637
        %v1829 = vadd.f32 %v1828, %v1638
        %v1830 = vadd.f32 %v1829, %v1639
        %v1831 = vadd.f32 %v1830, %v1640
        %v1832 = vadd.f32 %v1831, %v1641
        %v1833 = vadd.f32 %v1832, %v1642
        %v1834 = vadd.f32 %v1833, %v1643
        %v1835 = vadd.f32 %v1834, %v1644
        %v1836 = vadd.f32 %v1835, %v1645
        %v1837 = vadd.f32 %v1836, %v1646
        %v1838 = vadd.f32 %v1837, %v1647
        %1839 = vst [vmem:[%s362] sm:$0xff] %v1838
        %v1840 = vmul.f32 %v1616, %v1616
        %v1841 = vmul.f32 %v1617, %v1617
        %v1842 = vmul.f32 %v1618, %v1618
        %v1843 = vmul.f32 %v1619, %v1619
        %v1844 = vmul.f32 %v1620, %v1620
        %v1845 = vmul.f32 %v1621, %v1621
        %v1846 = vmul.f32 %v1622, %v1622
        %v1847 = vmul.f32 %v1623, %v1623
        %v1848 = vmul.f32 %v1624, %v1624
        %v1849 = vmul.f32 %v1625, %v1625
        %v1850 = vmul.f32 %v1626, %v1626
        %v1851 = vmul.f32 %v1627, %v1627
        %v1852 = vmul.f32 %v1628, %v1628
        %v1853 = vmul.f32 %v1629, %v1629
        %v1854 = vmul.f32 %v1630, %v1630
        %v1855 = vmul.f32 %v1631, %v1631
        %v1856 = vmul.f32 %v1632, %v1632
        %v1857 = vmul.f32 %v1633, %v1633
        %v1858 = vmul.f32 %v1634, %v1634
        %v1859 = vmul.f32 %v1635, %v1635
        %v1860 = vmul.f32 %v1636, %v1636
        %v1861 = vmul.f32 %v1637, %v1637
        %v1862 = vmul.f32 %v1638, %v1638
        %v1863 = vmul.f32 %v1639, %v1639
        %v1864 = vmul.f32 %v1640, %v1640
        %v1865 = vmul.f32 %v1641, %v1641
        %v1866 = vmul.f32 %v1642, %v1642
        %v1867 = vmul.f32 %v1643, %v1643
        %v1868 = vmul.f32 %v1644, %v1644
        %v1869 = vmul.f32 %v1645, %v1645
        %v1870 = vmul.f32 %v1646, %v1646
        %v1871 = vmul.f32 %v1647, %v1647
        %v1872 = vadd.f32 %v1840, %v1841
        %v1873 = vadd.f32 %v1872, %v1842
        %v1874 = vadd.f32 %v1873, %v1843
        %v1875 = vadd.f32 %v1874, %v1844
        %v1876 = vadd.f32 %v1875, %v1845
        %v1877 = vadd.f32 %v1876, %v1846
        %v1878 = vadd.f32 %v1877, %v1847
        %v1879 = vadd.f32 %v1878, %v1848
        %v1880 = vadd.f32 %v1879, %v1849
        %v1881 = vadd.f32 %v1880, %v1850
        %v1882 = vadd.f32 %v1881, %v1851
        %v1883 = vadd.f32 %v1882, %v1852
        %v1884 = vadd.f32 %v1883, %v1853
        %v1885 = vadd.f32 %v1884, %v1854
        %v1886 = vadd.f32 %v1885, %v1855
        %v1887 = vadd.f32 %v1886, %v1856
        %v1888 = vadd.f32 %v1887, %v1857
        %v1889 = vadd.f32 %v1888, %v1858
        %v1890 = vadd.f32 %v1889, %v1859
        %v1891 = vadd.f32 %v1890, %v1860
        %v1892 = vadd.f32 %v1891, %v1861
        %v1893 = vadd.f32 %v1892, %v1862
        %v1894 = vadd.f32 %v1893, %v1863
        %v1895 = vadd.f32 %v1894, %v1864
        %v1896 = vadd.f32 %v1895, %v1865
        %v1897 = vadd.f32 %v1896, %v1866
        %v1898 = vadd.f32 %v1897, %v1867
        %v1899 = vadd.f32 %v1898, %v1868
        %v1900 = vadd.f32 %v1899, %v1869
        %v1901 = vadd.f32 %v1900, %v1870
        %v1902 = vadd.f32 %v1901, %v1871
        %1903 = vst [vmem:[%s366] sm:$0xff] %v1902
      $region44: #{attention_block_b_forward.4} parent=35 // pred_fallthru
        _
      %s1904 = smul.u32 32, %s22
      %p1905 = scmp.lt.s32.totalorder %s1904, 63
      %s1906 = scalar_select %p1905, %s1904, 63
      %s1907 = smul.addr %s1906, 4
      %s1908 = scalar_lea.vmem %s4, %s1907
      %p1909 = scmp.lt.s32.totalorder %s22, 1
      %s1910 = scalar_select %p1909, %s22, 1
      %s1911 = smul.addr %s1910, 8
      %s1912 = scalar_lea.vmem %s5, %s1911
      %p1913 = scmp.lt.s32.totalorder %s22, 1
      %s1914 = scalar_select %p1913, %s22, 1
      %s1915 = smul.addr %s1914, 8
      %s1916 = scalar_lea.vmem %s6, %s1915
      // Predicated region
      $region45: #{attention_block_b_forward.4} parent=35 // pred_check
        %p1917 = pneg %p154
      $region46: #{attention_block_b_forward.4} parent=35 // pred_check_branch
        %1919 = sbr.rel (%p1917) target = $region48
      $region47: #{attention_block_b_forward.4} parent=35 // pred_region
        %s1920 = smul.u32 32, %s22
      $region48: #{attention_block_b_forward.4} parent=35 // pred_fallthru
        _
      // Predicated region
      $region49: #{attention_block_b_forward.4} parent=35 // pred_check
        %p1921 = pneg %p180
      $region50: #{attention_block_b_forward.4} parent=35 // pred_check_branch
        %1923 = sbr.rel (%p1921) target = $region52
      $region51: #{attention_block_b_forward.4} parent=35 // pred_region
        _
      $region52: #{attention_block_b_forward.4} parent=35 // pred_fallthru
        _
      // Predicated region
      $region53: #{attention_block_b_forward.4} parent=35 // pred_check
        %p1924 = pneg %p206
      $region54: #{attention_block_b_forward.4} parent=35 // pred_check_branch
        %1926 = sbr.rel (%p1924) target = $region56
      $region55: #{attention_block_b_forward.4} parent=35 // pred_region
        _
      $region56: #{attention_block_b_forward.4} parent=35 // pred_fallthru
        _
    $region36: #{attention_block_b_forward.4} parent=5 // pred_fallthru
      _
    %p1927 = scmp.le.s32.totalorder 2, %s13
    // Predicated region
    $region57: #{attention_block_b_forward.4} parent=5 // pred_check
      %p1928 = pneg %p1927
    $region58: #{attention_block_b_forward.4} parent=5 // pred_check_branch
      %1930 = sbr.rel (%p1928) target = $region60
    $region59: #{attention_block_b_forward.4} parent=5 // pred_region
      %s1931 = ssub.s32 %s13, 2
      // Predicated region
      $region61: #{attention_block_b_forward.4} parent=59 // pred_check
        %p1932 = pneg %p160
      $region62: #{attention_block_b_forward.4} parent=59 // pred_check_branch
        %1934 = sbr.rel (%p1932) target = $region64
      $region63: #{attention_block_b_forward.4} parent=59 // pred_region
        %s1935 = smul.u32 32, %s24
        %p1936 = scmp.lt.s32.totalorder %s1935, 63
        %s1937 = scalar_select %p1936, %s1935, 63
        %s1938 = smul.addr %s1937, 4
        %s1939 = scalar_lea.vmem %s4, %s1938
      $region64: #{attention_block_b_forward.4} parent=59 // pred_fallthru
        _
      // Predicated region
      $region65: #{attention_block_b_forward.4} parent=59 // pred_check
        %p1940 = pneg %p186
      $region66: #{attention_block_b_forward.4} parent=59 // pred_check_branch
        %1942 = sbr.rel (%p1940) target = $region68
      $region67: #{attention_block_b_forward.4} parent=59 // pred_region
        %p1943 = scmp.lt.s32.totalorder %s24, 1
        %s1944 = scalar_select %p1943, %s24, 1
        %s1945 = smul.addr %s1944, 8
        %s1946 = scalar_lea.vmem %s5, %s1945
      $region68: #{attention_block_b_forward.4} parent=59 // pred_fallthru
        _
      // Predicated region
      $region69: #{attention_block_b_forward.4} parent=59 // pred_check
        %p1947 = pneg %p212
      $region70: #{attention_block_b_forward.4} parent=59 // pred_check_branch
        %1949 = sbr.rel (%p1947) target = $region72
      $region71: #{attention_block_b_forward.4} parent=59 // pred_region
        %p1950 = scmp.lt.s32.totalorder %s24, 1
        %s1951 = scalar_select %p1950, %s24, 1
        %s1952 = smul.addr %s1951, 8
        %s1953 = scalar_lea.vmem %s6, %s1952
      $region72: #{attention_block_b_forward.4} parent=59 // pred_fallthru
        _
    $region60: #{attention_block_b_forward.4} parent=5 // pred_fallthru
      _
  $region6: #{attention_block_b_forward.4} parent=0 // loop_footer
    %s17 = sadd.s32 1, %s13
  $region7: #{attention_block_b_forward.4} parent=0 // loop_footer_branch
    %12 = sbr.rel target = $region3
  $region8: #{attention_block_b_forward.4} parent=0 // loop_exit
    _

// kernel: attention_block_b_forward.5
$region0: #{attention_block_b_forward.5}
  #allocation0 [shape = 'u32[]', space=smem, size = 0x4, offset = 0x4, fixed_abs, tag = 'smem constant byte address 0x4 - core index']
  #allocation1 [shape = 'u32[144,128]{1,0:T(1,128)}', space=vmem, size = 0x12000, scoped, tag = 'internal scratch']
  %s0 = inlined_call_operand.vmem [shape: bf16[512,128], index: 0, kind: input, shape index: {}]
  %s1 = inlined_call_operand.vmem [shape: f32[512,256], index: 1, kind: input, shape index: {}]
  %s2 = inlined_call_operand.vmem [shape: bf16[128,384], index: 2, kind: input, shape index: {}]
  %s3 = inlined_call_operand.vmem [shape: f32[1,384], index: 3, kind: input, shape index: {}]
  %s4 = inlined_call_operand.vmem [shape: bf16[128,256], index: 4, kind: input, shape index: {}]
  %s5 = inlined_call_operand.vmem [shape: f32[1,256], index: 5, kind: input, shape index: {}]
  %s6 = inlined_call_operand.vmem [shape: f32[16,16], index: 6, kind: input, shape index: {}]
  %s7 = inlined_call_operand.hbm [shape: f32[512,256], index: 7, kind: output, shape index: {}]
  %s8 = sld [smem:[#allocation0]]
  $region61: #{attention_block_b_forward.5} parent=0
    _
  %s10 = ssub.s32 1, %s8
  %s11 = scalar_select 0, %s10, %s8
  $region1: #{attention_block_b_forward.5} parent=0
    #allocation2 [shape = 'u8[131072]{0}', space=vmem, size = 0x20000, scoped, tag = 'output window, operand 0']
    #allocation3 [shape = 's32[2]{0}', space=sflag, size = 0x8, scoped, tag = 'scoped memory for attention_block_b_forward.5']
    %12 = vsyncpa [#allocation3], 0
    %s13 = scalar_lea.sflag [#allocation3], 1
    %14 = vsyncpa %s13, 0
    loop: start=0, step=1, limit=10
    $region2: #{attention_block_b_forward.5} parent=1 // loop_pre_header
      _
    $region3: #{attention_block_b_forward.5} parent=1 // loop_header
      %s16 = sphi 0, %s20
      %p17 = scmp.ge.s32.totalorder %s16, 10
      %s26 = sphi 0, %s28
      %s29 = sphi 0, %s26
      %s30 = sphi 0, %s29
      %s46 = sphi 0, %s30
      %s52 = sphi 0, %s54
      %s55 = sphi 0, %s52
      %s56 = sphi 0, %s55
      %s72 = sphi 0, %s56
      %s76 = sphi 0, %s76
      %s78 = sphi 0, %s76
      %s79 = sphi 0, %s78
      %s93 = sphi 0, %s79
      %s97 = sphi 0, %s97
      %s99 = sphi 0, %s97
      %s100 = sphi 0, %s99
      %s114 = sphi 0, %s100
      %s118 = sphi 0, %s118
      %s120 = sphi 0, %s118
      %s121 = sphi 0, %s120
      %s135 = sphi 0, %s121
      %s139 = sphi 0, %s139
      %s141 = sphi 0, %s139
      %s142 = sphi 0, %s141
      %s156 = sphi 0, %s142
      %s160 = sphi 0, %s160
      %s162 = sphi 0, %s160
      %s163 = sphi 0, %s162
      %s177 = sphi 0, %s163
      %s183 = sphi 0, %s185
      %s186 = sphi 0, %s183
      %s187 = sphi 0, %s186
      %s203 = sphi 0, %s187
    $region4: #{attention_block_b_forward.5} parent=1 // loop_header_branch
      %19 = sbr.rel (%p17) target = $region8
    $region5: #{attention_block_b_forward.5} parent=1 // loop_body
      %s21 = ssub.s32 %s16, 1
      %s22 = ssub.s32 %s16, 2
      %s23 = sadd.s32 %s16, 1
      %s24 = ssub.s32 %s16, %s23
      %p25 = scmp.eq.s32.totalorder %s24, 0
      %s27 = sadd.s32 %s26, 1
      %s28 = scalar_select %p25, %s26, %s27
      %p31 = pneg %p25
      %p32 = scmp.eq.s32.totalorder %s16, 7
      %p33 = por %p31, %p32
      %p34 = scmp.ne.s32.totalorder %s26, %s29
      %p35 = scmp.eq.s32.totalorder %s16, 0
      %p36 = por %p34, %p35
      %p37 = scmp.ne.s32.totalorder %s26, %s29
      %p38 = scmp.eq.s32.totalorder %s21, 7
      %p39 = por %p37, %p38
      %p40 = scmp.ne.s32.totalorder %s29, %s30
      %p41 = scmp.eq.s32.totalorder %s21, 0
      %p42 = por %p40, %p41
      %p43 = scmp.ne.s32.totalorder %s29, %s30
      %p44 = scmp.eq.s32.totalorder %s22, 7
      %p45 = por %p43, %p44
      %p47 = scmp.ne.s32.totalorder %s30, %s46
      %p48 = scmp.eq.s32.totalorder %s22, 0
      %p49 = por %p47, %p48
      %s50 = ssub.s32 %s16, %s23
      %p51 = scmp.eq.s32.totalorder %s50, 0
      %s53 = sadd.s32 %s52, 1
      %s54 = scalar_select %p51, %s52, %s53
      %p57 = pneg %p51
      %p58 = scmp.eq.s32.totalorder %s16, 7
      %p59 = por %p57, %p58
      %p60 = scmp.ne.s32.totalorder %s52, %s55
      %p61 = scmp.eq.s32.totalorder %s16, 0
      %p62 = por %p60, %p61
      %p63 = scmp.ne.s32.totalorder %s52, %s55
      %p64 = scmp.eq.s32.totalorder %s21, 7
      %p65 = por %p63, %p64
      %p66 = scmp.ne.s32.totalorder %s55, %s56
      %p67 = scmp.eq.s32.totalorder %s21, 0
      %p68 = por %p66, %p67
      %p69 = scmp.ne.s32.totalorder %s55, %s56
      %p70 = scmp.eq.s32.totalorder %s22, 7
      %p71 = por %p69, %p70
      %p73 = scmp.ne.s32.totalorder %s56, %s72
      %p74 = scmp.eq.s32.totalorder %s22, 0
      %p75 = por %p73, %p74
      %s77 = sadd.s32 %s76, 1
      %p80 = scmp.eq.s32.totalorder %s16, 7
      %p81 = scmp.ne.s32.totalorder %s76, %s78
      %p82 = scmp.eq.s32.totalorder %s16, 0
      %p83 = por %p81, %p82
      %p84 = scmp.ne.s32.totalorder %s76, %s78
      %p85 = scmp.eq.s32.totalorder %s21, 7
      %p86 = por %p84, %p85
      %p87 = scmp.ne.s32.totalorder %s78, %s79
      %p88 = scmp.eq.s32.totalorder %s21, 0
      %p89 = por %p87, %p88
      %p90 = scmp.ne.s32.totalorder %s78, %s79
      %p91 = scmp.eq.s32.totalorder %s22, 7
      %p92 = por %p90, %p91
      %p94 = scmp.ne.s32.totalorder %s79, %s93
      %p95 = scmp.eq.s32.totalorder %s22, 0
      %p96 = por %p94, %p95
      %s98 = sadd.s32 %s97, 1
      %p101 = scmp.eq.s32.totalorder %s16, 7
      %p102 = scmp.ne.s32.totalorder %s97, %s99
      %p103 = scmp.eq.s32.totalorder %s16, 0
      %p104 = por %p102, %p103
      %p105 = scmp.ne.s32.totalorder %s97, %s99
      %p106 = scmp.eq.s32.totalorder %s21, 7
      %p107 = por %p105, %p106
      %p108 = scmp.ne.s32.totalorder %s99, %s100
      %p109 = scmp.eq.s32.totalorder %s21, 0
      %p110 = por %p108, %p109
      %p111 = scmp.ne.s32.totalorder %s99, %s100
      %p112 = scmp.eq.s32.totalorder %s22, 7
      %p113 = por %p111, %p112
      %p115 = scmp.ne.s32.totalorder %s100, %s114
      %p116 = scmp.eq.s32.totalorder %s22, 0
      %p117 = por %p115, %p116
      %s119 = sadd.s32 %s118, 1
      %p122 = scmp.eq.s32.totalorder %s16, 7
      %p123 = scmp.ne.s32.totalorder %s118, %s120
      %p124 = scmp.eq.s32.totalorder %s16, 0
      %p125 = por %p123, %p124
      %p126 = scmp.ne.s32.totalorder %s118, %s120
      %p127 = scmp.eq.s32.totalorder %s21, 7
      %p128 = por %p126, %p127
      %p129 = scmp.ne.s32.totalorder %s120, %s121
      %p130 = scmp.eq.s32.totalorder %s21, 0
      %p131 = por %p129, %p130
      %p132 = scmp.ne.s32.totalorder %s120, %s121
      %p133 = scmp.eq.s32.totalorder %s22, 7
      %p134 = por %p132, %p133
      %p136 = scmp.ne.s32.totalorder %s121, %s135
      %p137 = scmp.eq.s32.totalorder %s22, 0
      %p138 = por %p136, %p137
      %s140 = sadd.s32 %s139, 1
      %p143 = scmp.eq.s32.totalorder %s16, 7
      %p144 = scmp.ne.s32.totalorder %s139, %s141
      %p145 = scmp.eq.s32.totalorder %s16, 0
      %p146 = por %p144, %p145
      %p147 = scmp.ne.s32.totalorder %s139, %s141
      %p148 = scmp.eq.s32.totalorder %s21, 7
      %p149 = por %p147, %p148
      %p150 = scmp.ne.s32.totalorder %s141, %s142
      %p151 = scmp.eq.s32.totalorder %s21, 0
      %p152 = por %p150, %p151
      %p153 = scmp.ne.s32.totalorder %s141, %s142
      %p154 = scmp.eq.s32.totalorder %s22, 7
      %p155 = por %p153, %p154
      %p157 = scmp.ne.s32.totalorder %s142, %s156
      %p158 = scmp.eq.s32.totalorder %s22, 0
      %p159 = por %p157, %p158
      %s161 = sadd.s32 %s160, 1
      %p164 = scmp.eq.s32.totalorder %s16, 7
      %p165 = scmp.ne.s32.totalorder %s160, %s162
      %p166 = scmp.eq.s32.totalorder %s16, 0
      %p167 = por %p165, %p166
      %p168 = scmp.ne.s32.totalorder %s160, %s162
      %p169 = scmp.eq.s32.totalorder %s21, 7
      %p170 = por %p168, %p169
      %p171 = scmp.ne.s32.totalorder %s162, %s163
      %p172 = scmp.eq.s32.totalorder %s21, 0
      %p173 = por %p171, %p172
      %p174 = scmp.ne.s32.totalorder %s162, %s163
      %p175 = scmp.eq.s32.totalorder %s22, 7
      %p176 = por %p174, %p175
      %p178 = scmp.ne.s32.totalorder %s163, %s177
      %p179 = scmp.eq.s32.totalorder %s22, 0
      %p180 = por %p178, %p179
      %s181 = ssub.s32 %s16, %s23
      %p182 = scmp.eq.s32.totalorder %s181, 0
      %s184 = sadd.s32 %s183, 1
      %s185 = scalar_select %p182, %s183, %s184
      %p188 = pneg %p182
      %p189 = scmp.eq.s32.totalorder %s16, 7
      %p190 = por %p188, %p189
      %p191 = scmp.ne.s32.totalorder %s183, %s186
      %p192 = scmp.eq.s32.totalorder %s16, 0
      %p193 = por %p191, %p192
      %p194 = scmp.ne.s32.totalorder %s183, %s186
      %p195 = scmp.eq.s32.totalorder %s21, 7
      %p196 = por %p194, %p195
      %p197 = scmp.ne.s32.totalorder %s186, %s187
      %p198 = scmp.eq.s32.totalorder %s21, 0
      %p199 = por %p197, %p198
      %p200 = scmp.ne.s32.totalorder %s186, %s187
      %p201 = scmp.eq.s32.totalorder %s22, 7
      %p202 = por %p200, %p201
      %p204 = scmp.ne.s32.totalorder %s187, %s203
      %p205 = scmp.eq.s32.totalorder %s22, 0
      %p206 = por %p204, %p205
      %p207 = scmp.le.s32.totalorder 1, %s16
      %p208 = scmp.lt.s32.totalorder %s16, 9
      %p209 = pnand %p207, %p208
      %p210 = pneg %p209
      // Predicated region
      $region9: #{attention_block_b_forward.5} parent=5 // pred_check
        _
      $region10: #{attention_block_b_forward.5} parent=5 // pred_check_branch
        %212 = sbr.rel (%p209) target = $region12
      $region11: #{attention_block_b_forward.5} parent=5 // pred_region
        %s213 = ssub.s32 %s16, 1
        // Predicated region
        $region13: #{attention_block_b_forward.5} parent=11 // pred_check
          %p214 = pneg %p89
        $region14: #{attention_block_b_forward.5} parent=11 // pred_check_branch
          %216 = sbr.rel (%p214) target = $region16
        $region15: #{attention_block_b_forward.5} parent=11 // pred_region
          _
        $region16: #{attention_block_b_forward.5} parent=11 // pred_fallthru
          _
        // Predicated region
        $region17: #{attention_block_b_forward.5} parent=11 // pred_check
          %p217 = pneg %p110
        $region18: #{attention_block_b_forward.5} parent=11 // pred_check_branch
          %219 = sbr.rel (%p217) target = $region20
        $region19: #{attention_block_b_forward.5} parent=11 // pred_region
          _
        $region20: #{attention_block_b_forward.5} parent=11 // pred_fallthru
          _
        // Predicated region
        $region21: #{attention_block_b_forward.5} parent=11 // pred_check
          %p220 = pneg %p131
        $region22: #{attention_block_b_forward.5} parent=11 // pred_check_branch
          %222 = sbr.rel (%p220) target = $region24
        $region23: #{attention_block_b_forward.5} parent=11 // pred_region
          _
        $region24: #{attention_block_b_forward.5} parent=11 // pred_fallthru
          _
        // Predicated region
        $region25: #{attention_block_b_forward.5} parent=11 // pred_check
          %p223 = pneg %p152
        $region26: #{attention_block_b_forward.5} parent=11 // pred_check_branch
          %225 = sbr.rel (%p223) target = $region28
        $region27: #{attention_block_b_forward.5} parent=11 // pred_region
          _
        $region28: #{attention_block_b_forward.5} parent=11 // pred_fallthru
          _
        // Predicated region
        $region29: #{attention_block_b_forward.5} parent=11 // pred_check
          %p226 = pneg %p173
        $region30: #{attention_block_b_forward.5} parent=11 // pred_check_branch
          %228 = sbr.rel (%p226) target = $region32
        $region31: #{attention_block_b_forward.5} parent=11 // pred_region
          _
        $region32: #{attention_block_b_forward.5} parent=11 // pred_fallthru
          _
      $region12: #{attention_block_b_forward.5} parent=5 // pred_fallthru
        _
      %p229 = scmp.lt.s32.totalorder %s16, 8
      // Predicated region
      $region33: #{attention_block_b_forward.5} parent=5 // pred_check
        %p230 = pneg %p229
      $region34: #{attention_block_b_forward.5} parent=5 // pred_check_branch
        %232 = sbr.rel (%p230) target = $region36
      $region35: #{attention_block_b_forward.5} parent=5 // pred_region
        // Predicated region
        $region37: #{attention_block_b_forward.5} parent=35 // pred_check
          %p233 = pneg %p36
        $region38: #{attention_block_b_forward.5} parent=35 // pred_check_branch
          %235 = sbr.rel (%p233) target = $region40
        $region39: #{attention_block_b_forward.5} parent=35 // pred_region
          %s236 = smul.u32 8, %s16
          %p237 = scmp.lt.s32.totalorder %s236, 63
          %s238 = scalar_select %p237, %s236, 63
          %s239 = smul.addr %s238, 4
          %s240 = scalar_lea.vmem %s0, %s239
          %s241 = smul.u32 8, %s16
        $region40: #{attention_block_b_forward.5} parent=35 // pred_fallthru
          _
        // Predicated region
        $region41: #{attention_block_b_forward.5} parent=35 // pred_check
          %p242 = pneg %p62
        $region42: #{attention_block_b_forward.5} parent=35 // pred_check_branch
          %244 = sbr.rel (%p242) target = $region44
        $region43: #{attention_block_b_forward.5} parent=35 // pred_region
          %s245 = smul.u32 8, %s16
          %p246 = scmp.lt.s32.totalorder %s245, 63
          %s247 = scalar_select %p246, %s245, 63
          %s248 = smul.addr %s247, 2
          %s249 = smul.addr %s248, 8
          %s250 = scalar_lea.vmem %s1, %s249
          %s251 = smul.u32 8, %s16
        $region44: #{attention_block_b_forward.5} parent=35 // pred_fallthru
          _
      $region36: #{attention_block_b_forward.5} parent=5 // pred_fallthru
        _
      %p252 = scmp.le.s32.totalorder 1, %s16
      %p253 = scmp.lt.s32.totalorder %s16, 9
      %p254 = pnand %p252, %p253
      %p255 = pneg %p254
      // Predicated region
      $region45: #{attention_block_b_forward.5} parent=5 // pred_check
        _
      $region46: #{attention_block_b_forward.5} parent=5 // pred_check_branch
        %257 = sbr.rel (%p254) target = $region48
      $region47: #{attention_block_b_forward.5} parent=5 // pred_region
        %s258 = ssub.s32 %s16, 1
        %s259 = smul.u32 8, %s21
        %p260 = scmp.lt.s32.totalorder %s259, 63
        %s261 = scalar_select %p260, %s259, 63
        %s262 = smul.addr %s261, 4
        %s263 = scalar_lea.vmem %s0, %s262
        %p264 = pneg %p42
        %p265 = pneg %p39
        %s266 = smul.u32 8, %s21
        %p267 = scmp.lt.s32.totalorder %s266, 63
        %s268 = scalar_select %p267, %s266, 63
        %s269 = smul.addr %s268, 2
        %s270 = smul.addr %s269, 8
        %s271 = scalar_lea.vmem %s1, %s270
        %p272 = pneg %p68
        %p273 = pneg %p65
        %p274 = pneg %p89
        %p275 = pneg %p86
        %p276 = pneg %p110
        %p277 = pneg %p107
        %p278 = pneg %p131
        %p279 = pneg %p128
        %p280 = pneg %p152
        %p281 = pneg %p149
        %p282 = pneg %p173
        %p283 = pneg %p170
        %p284 = pneg %p199
        %p285 = pneg %p196
        %s286 = sand.u32 %s186, 1
        %s287 = scalar_lea.sflag [#allocation3], %s286
        %s288 = sand.u32 %s186, 1
        %s289 = smul.addr %s288, 128
        %s290 = scalar_lea.vmem [#allocation2], %s289
        %s291 = smul.u32 8, %s21
        %p292 = scmp.lt.s32.totalorder %s291, 63
        %s293 = scalar_select %p292, %s291, 63
        %s294 = smul.addr %s293, 4
        %s295 = scalar_lea.vmem %s0, %s294
        %s296 = smul.u32 8, %s21
        %s297 = smul.u32 8, %s21
        %p298 = scmp.lt.s32.totalorder %s297, 63
        %s299 = scalar_select %p298, %s297, 63
        %s300 = smul.addr %s299, 2
        %s301 = smul.addr %s300, 8
        %s302 = scalar_lea.vmem %s1, %s301
        %s303 = smul.u32 8, %s21
        %s304 = smul.u32 8, %s21
        %v306 = vld [vmem:[%s295] sm:$0xf]
        %v307 = vld [vmem:[%s295 + $0x4] sm:$0xf]
        %v308 = vld [vmem:[%s295 + $0x8] sm:$0xf]
        %v309 = vld [vmem:[%s295 + $0xc] sm:$0xf]
        %v310 = vld [vmem:[%s295 + $0x10] sm:$0xf]
        %v311 = vld [vmem:[%s295 + $0x14] sm:$0xf]
        %v312 = vld [vmem:[%s295 + $0x18] sm:$0xf]
        %v313 = vld [vmem:[%s295 + $0x1c] sm:$0xf]
        %v323 = vunpack.c.l.s4 1983009808
        %v324 = vunpack.c.0.s8 %v323
        %v325 = vlaneseq
        %v326 = vshrl.u32 %v325, 7
        %v327 = vsub.s32 %v324, %v326
        %v328 = vrot.slane %v306, %v327
        %v329 = vcombine.high %v328, %v328
        %v331 = vunpack.c.l.s4 1983009808
        %v332 = vunpack.c.0.s8 %v331
        %v333 = vlaneseq
        %v334 = vshrl.u32 %v333, 7
        %v335 = vsub.s32 %v332, %v334
        %v336 = vrot.slane %v307, %v335
        %v337 = vcombine.high %v336, %v336
        %v339 = vunpack.c.l.s4 1983009808
        %v340 = vunpack.c.0.s8 %v339
        %v341 = vlaneseq
        %v342 = vshrl.u32 %v341, 7
        %v343 = vsub.s32 %v340, %v342
        %v344 = vrot.slane %v308, %v343
        %v345 = vcombine.high %v344, %v344
        %v347 = vunpack.c.l.s4 1983009808
        %v348 = vunpack.c.0.s8 %v347
        %v349 = vlaneseq
        %v350 = vshrl.u32 %v349, 7
        %v351 = vsub.s32 %v348, %v350
        %v352 = vrot.slane %v309, %v351
        %v353 = vcombine.high %v352, %v352
        %v355 = vunpack.c.l.s4 1983009808
        %v356 = vunpack.c.0.s8 %v355
        %v357 = vlaneseq
        %v358 = vshrl.u32 %v357, 7
        %v359 = vsub.s32 %v356, %v358
        %v360 = vrot.slane %v310, %v359
        %v361 = vcombine.high %v360, %v360
        %v363 = vunpack.c.l.s4 1983009808
        %v364 = vunpack.c.0.s8 %v363
        %v365 = vlaneseq
        %v366 = vshrl.u32 %v365, 7
        %v367 = vsub.s32 %v364, %v366
        %v368 = vrot.slane %v311, %v367
        %v369 = vcombine.high %v368, %v368
        %v371 = vunpack.c.l.s4 1983009808
        %v372 = vunpack.c.0.s8 %v371
        %v373 = vlaneseq
        %v374 = vshrl.u32 %v373, 7
        %v375 = vsub.s32 %v372, %v374
        %v376 = vrot.slane %v312, %v375
        %v377 = vcombine.high %v376, %v376
        %v379 = vunpack.c.l.s4 1983009808
        %v380 = vunpack.c.0.s8 %v379
        %v381 = vlaneseq
        %v382 = vshrl.u32 %v381, 7
        %v383 = vsub.s32 %v380, %v382
        %v384 = vrot.slane %v313, %v383
        %v385 = vcombine.high %v384, %v384
        %v386 = vld [vmem:[%s2] sm:$0xff]
        %v387 = vld [vmem:[%s2 + $0x8] sm:$0xf]
        %v388 = vld [vmem:[%s2 + $0xc] sm:$0xff]
        %v389 = vld [vmem:[%s2 + $0x14] sm:$0xf]
        %v390 = vld [vmem:[%s2 + $0x18] sm:$0xff]
        %v391 = vld [vmem:[%s2 + $0x20] sm:$0xf]
        %v392 = vld [vmem:[%s2 + $0x24] sm:$0xff]
        %v393 = vld [vmem:[%s2 + $0x2c] sm:$0xf]
        %v394 = vld [vmem:[%s2 + $0x30] sm:$0xff]
        %v395 = vld [vmem:[%s2 + $0x38] sm:$0xf]
        %v396 = vld [vmem:[%s2 + $0x3c] sm:$0xff]
        %v397 = vld [vmem:[%s2 + $0x44] sm:$0xf]
        %v398 = vld [vmem:[%s2 + $0x48] sm:$0xff]
        %v399 = vld [vmem:[%s2 + $0x50] sm:$0xf]
        %v400 = vld [vmem:[%s2 + $0x54] sm:$0xff]
        %v401 = vld [vmem:[%s2 + $0x5c] sm:$0xf]
        %v402 = vld [vmem:[%s2 + $0x60] sm:$0xff]
        %v403 = vld [vmem:[%s2 + $0x68] sm:$0xf]
        %v404 = vld [vmem:[%s2 + $0x6c] sm:$0xff]
        %v405 = vld [vmem:[%s2 + $0x74] sm:$0xf]
        %v406 = vld [vmem:[%s2 + $0x78] sm:$0xff]
        %v407 = vld [vmem:[%s2 + $0x80] sm:$0xf]
        %v408 = vld [vmem:[%s2 + $0x84] sm:$0xff]
        %v409 = vld [vmem:[%s2 + $0x8c] sm:$0xf]
        %v410 = vld [vmem:[%s2 + $0x90] sm:$0xff]
        %v411 = vld [vmem:[%s2 + $0x98] sm:$0xf]
        %v412 = vld [vmem:[%s2 + $0x9c] sm:$0xff]
        %v413 = vld [vmem:[%s2 + $0xa4] sm:$0xf]
        %v414 = vld [vmem:[%s2 + $0xa8] sm:$0xff]
        %v415 = vld [vmem:[%s2 + $0xb0] sm:$0xf]
        %v416 = vld [vmem:[%s2 + $0xb4] sm:$0xff]
        %v417 = vld [vmem:[%s2 + $0xbc] sm:$0xf]
        %v418 = vld [vmem:[%s3] sm:$0x7]
        %v420 = vlaneseq
        %v421 = vshrl.u32 %v420, 7
        %v422 = vsub.s32 0, %v421
        %v423 = vrot.slane %v418, %v422
        %v424 = vlaneseq
        %v425 = vshrl.u32 %v424, 7
        %v426 = vsub.s32 1, %v425
        %v427 = vrot.slane %v418, %v426
        %v428 = vlaneseq
        %v429 = vshrl.u32 %v428, 7
        %v430 = vsub.s32 2, %v429
        %v431 = vrot.slane %v418, %v430
        %v435 = vcombine.low %v328, %v344
        %v436 = vcombine.low %v360, %v376
        %v438 = vunpack.c.l.s4 1983009808
        %v439 = vunpack.c.0.s8 %v438
        %v440 = vlaneseq
        %v441 = vshrl.u32 %v440, 7
        %v442 = vsub.s32 %v439, %v441
        %v443 = vrot.slane %v435, %v442
        %v445 = vunpack.c.l.s4 1983009808
        %v446 = vunpack.c.0.s8 %v445
        %v447 = vlaneseq
        %v448 = vshrl.u32 %v447, 7
        %v449 = vsub.s32 %v446, %v448
        %v450 = vrot.slane %v436, %v449
        %v451 = vcombine.low %v443, %v450
        %v452 = vcombine.low %v329, %v345
        %v453 = vcombine.low %v361, %v377
        %v455 = vunpack.c.l.s4 1983009808
        %v456 = vunpack.c.0.s8 %v455
        %v457 = vlaneseq
        %v458 = vshrl.u32 %v457, 7
        %v459 = vsub.s32 %v456, %v458
        %v460 = vrot.slane %v452, %v459
        %v462 = vunpack.c.l.s4 1983009808
        %v463 = vunpack.c.0.s8 %v462
        %v464 = vlaneseq
        %v465 = vshrl.u32 %v464, 7
        %v466 = vsub.s32 %v463, %v465
        %v467 = vrot.slane %v453, %v466
        %v468 = vcombine.low %v460, %v467
        %v469 = vcombine.low %v336, %v352
        %v470 = vcombine.low %v368, %v384
        %v472 = vunpack.c.l.s4 1983009808
        %v473 = vunpack.c.0.s8 %v472
        %v474 = vlaneseq
        %v475 = vshrl.u32 %v474, 7
        %v476 = vsub.s32 %v473, %v475
        %v477 = vrot.slane %v469, %v476
        %v479 = vunpack.c.l.s4 1983009808
        %v480 = vunpack.c.0.s8 %v479
        %v481 = vlaneseq
        %v482 = vshrl.u32 %v481, 7
        %v483 = vsub.s32 %v480, %v482
        %v484 = vrot.slane %v470, %v483
        %v485 = vcombine.low %v477, %v484
        %v486 = vcombine.low %v337, %v353
        %v487 = vcombine.low %v369, %v385
        %v489 = vunpack.c.l.s4 1983009808
        %v490 = vunpack.c.0.s8 %v489
        %v491 = vlaneseq
        %v492 = vshrl.u32 %v491, 7
        %v493 = vsub.s32 %v490, %v492
        %v494 = vrot.slane %v486, %v493
        %v496 = vunpack.c.l.s4 1983009808
        %v497 = vunpack.c.0.s8 %v496
        %v498 = vlaneseq
        %v499 = vshrl.u32 %v498, 7
        %v500 = vsub.s32 %v497, %v499
        %v501 = vrot.slane %v487, %v500
        %v502 = vcombine.low %v494, %v501
        %v539 = vunpack.c.l.b16 %v386
        %v540 = vunpack.c.h.b16 %v386
        %v541 = vunpack.c.l.b16 %v387
        %v542 = vunpack.c.l.b16 %v388
        %v543 = vunpack.c.h.b16 %v388
        %v544 = vunpack.c.l.b16 %v389
        %v545 = vunpack.c.l.b16 %v390
        %v546 = vunpack.c.h.b16 %v390
        %v547 = vunpack.c.l.b16 %v391
        %v548 = vunpack.c.l.b16 %v392
        %v549 = vunpack.c.h.b16 %v392
        %v550 = vunpack.c.l.b16 %v393
        %v551 = vunpack.c.l.b16 %v394
        %v552 = vunpack.c.h.b16 %v394
        %v553 = vunpack.c.l.b16 %v395
        %v554 = vunpack.c.l.b16 %v396
        %v555 = vunpack.c.h.b16 %v396
        %v556 = vunpack.c.l.b16 %v397
        %v557 = vunpack.c.l.b16 %v398
        %v558 = vunpack.c.h.b16 %v398
        %v559 = vunpack.c.l.b16 %v399
        %v560 = vunpack.c.l.b16 %v400
        %v561 = vunpack.c.h.b16 %v400
        %v562 = vunpack.c.l.b16 %v401
        %v563 = vunpack.c.l.b16 %v402
        %v564 = vunpack.c.h.b16 %v402
        %v565 = vunpack.c.l.b16 %v403
        %v566 = vunpack.c.l.b16 %v404
        %v567 = vunpack.c.h.b16 %v404
        %v568 = vunpack.c.l.b16 %v405
        %v569 = vunpack.c.l.b16 %v406
        %v570 = vunpack.c.h.b16 %v406
        %v571 = vunpack.c.l.b16 %v407
        %v572 = vunpack.c.l.b16 %v408
        %v573 = vunpack.c.h.b16 %v408
        %v574 = vunpack.c.l.b16 %v409
        %v575 = vunpack.c.l.b16 %v410
        %v576 = vunpack.c.h.b16 %v410
        %v577 = vunpack.c.l.b16 %v411
        %v578 = vunpack.c.l.b16 %v412
        %v579 = vunpack.c.h.b16 %v412
        %v580 = vunpack.c.l.b16 %v413
        %v581 = vunpack.c.l.b16 %v414
        %v582 = vunpack.c.h.b16 %v414
        %v583 = vunpack.c.l.b16 %v415
        %v584 = vunpack.c.l.b16 %v416
        %v585 = vunpack.c.h.b16 %v416
        %v586 = vunpack.c.l.b16 %v417
        %v587 = vpack.c.b16 %v542, %v539
        %v588 = vpack.c.b16 %v543, %v540
        %v589 = vpack.c.b16 %v544, %v541
        %v590 = vpack.c.b16 %v548, %v545
        %v591 = vpack.c.b16 %v549, %v546
        %v592 = vpack.c.b16 %v550, %v547
        %v593 = vpack.c.b16 %v554, %v551
        %v594 = vpack.c.b16 %v555, %v552
        %v595 = vpack.c.b16 %v556, %v553
        %v596 = vpack.c.b16 %v560, %v557
        %v597 = vpack.c.b16 %v561, %v558
        %v598 = vpack.c.b16 %v562, %v559
        %v599 = vpack.c.b16 %v566, %v563
        %v600 = vpack.c.b16 %v567, %v564
        %v601 = vpack.c.b16 %v568, %v565
        %v602 = vpack.c.b16 %v572, %v569
        %v603 = vpack.c.b16 %v573, %v570
        %v604 = vpack.c.b16 %v574, %v571
        %v605 = vpack.c.b16 %v578, %v575
        %v606 = vpack.c.b16 %v579, %v576
        %v607 = vpack.c.b16 %v580, %v577
        %v608 = vpack.c.b16 %v584, %v581
        %v609 = vpack.c.b16 %v585, %v582
        %v610 = vpack.c.b16 %v586, %v583
        %635 = vmatprep.subr.bf16.mxu0 %v588
        %636 = vmatpush1.bf16.msra.mxu0 %v587
        %637 = vmatprep.subr.bf16.mxu0 %v591
        %638 = vmatpush1.bf16.msra.mxu0 %v590
        %639 = vmatprep.subr.bf16.mxu0 %v594
        %640 = vmatpush1.bf16.msra.mxu0 %v593
        %641 = vmatprep.subr.bf16.mxu0 %v597
        %642 = vmatpush1.bf16.msra.mxu0 %v596
        %643 = vmatprep.subr.bf16.mxu0 %v600
        %644 = vmatpush1.bf16.msra.mxu0 %v599
        %645 = vmatprep.subr.bf16.mxu0 %v603
        %646 = vmatpush1.bf16.msra.mxu0 %v602
        %647 = vmatprep.subr.bf16.mxu0 %v606
        %648 = vmatpush1.bf16.msra.mxu0 %v605
        %649 = vmatprep.subr.bf16.mxu0 %v609
        %650 = vmatpush1.bf16.msra.mxu0 %v608
        %651 = vmatprep.subr.bf16.mxu0 0
        %652 = vmatpush1.bf16.msra.mxu0 0
        %653 = vmatprep.subr.bf16.mxu0 0
        %654 = vmatpush1.bf16.msra.mxu0 0
        %655 = vmatprep.subr.bf16.mxu0 0
        %656 = vmatpush1.bf16.msra.mxu0 0
        %657 = vmatprep.subr.bf16.mxu0 0
        %658 = vmatpush1.bf16.msra.mxu0 0
        %659 = vmatprep.subr.bf16.mxu0 0
        %660 = vmatpush1.bf16.msra.mxu0 0
        %661 = vmatprep.subr.bf16.mxu0 0
        %662 = vmatpush1.bf16.msra.mxu0 0
        %663 = vmatprep.subr.bf16.mxu0 0
        %664 = vmatpush1.bf16.msra.mxu0 0
        %665 = vmatprep.subr.bf16.mxu0 0
        %666 = vmatpush1.bf16.msra.mxu0 0
        %667 = vmatprep.mubr.bf16.mxu0 0
        %668 = vmatmul.mubr.bf16.gmra.mrb[0].mxu0 %v451
        %v669 = vpop.f32.mrb[0].mxu0
        %v670 = vadd.f32 %v423, %v669
        %v671 = vpop.f32.mrb[0].mxu0
        %v672 = vadd.f32 %v427, %v671
        %v673 = vpop.f32.mrb[0].mxu0
        %v674 = vadd.f32 %v423, %v673
        %v675 = vpop.f32.mrb[0].mxu0
        %v676 = vadd.f32 %v427, %v675
        %677 = vmatprep.mubr.bf16.mxu0 0
        %678 = vmatmul.mubr.bf16.gmra.mrb[0].mxu0 %v468
        %v679 = vpop.f32.mrb[0].mxu0
        %v680 = vadd.f32 %v423, %v679
        %v681 = vpop.f32.mrb[0].mxu0
        %v682 = vadd.f32 %v427, %v681
        %v683 = vpop.f32.mrb[0].mxu0
        %v684 = vadd.f32 %v423, %v683
        %v685 = vpop.f32.mrb[0].mxu0
        %v686 = vadd.f32 %v427, %v685
        %687 = vmatprep.mubr.bf16.mxu0 0
        %688 = vmatmul.mubr.bf16.gmra.mrb[0].mxu0 %v485
        %v689 = vpop.f32.mrb[0].mxu0
        %v690 = vadd.f32 %v423, %v689
        %v691 = vpop.f32.mrb[0].mxu0
        %v692 = vadd.f32 %v427, %v691
        %v693 = vpop.f32.mrb[0].mxu0
        %v694 = vadd.f32 %v423, %v693
        %v695 = vpop.f32.mrb[0].mxu0
        %v696 = vadd.f32 %v427, %v695
        %697 = vmatprep.mubr.bf16.mxu0 0
        %698 = vmatmul.mubr.bf16.gmra.mrb[0].mxu0 %v502
        %v699 = vpop.f32.mrb[0].mxu0
        %v700 = vadd.f32 %v423, %v699
        %v701 = vpop.f32.mrb[0].mxu0
        %v702 = vadd.f32 %v427, %v701
        %v703 = vpop.f32.mrb[0].mxu0
        %v704 = vadd.f32 %v423, %v703
        %v705 = vpop.f32.mrb[0].mxu0
        %v706 = vadd.f32 %v427, %v705
        %707 = vdwg.mxu0
        %708 = vmatprep.subr.bf16.mxu0 0
        %709 = vmatpush1.bf16.msra.mxu0 %v589
        %710 = vmatprep.subr.bf16.mxu0 0
        %711 = vmatpush1.bf16.msra.mxu0 %v592
        %712 = vmatprep.subr.bf16.mxu0 0
        %713 = vmatpush1.bf16.msra.mxu0 %v595
        %714 = vmatprep.subr.bf16.mxu0 0
        %715 = vmatpush1.bf16.msra.mxu0 %v598
        %716 = vmatprep.subr.bf16.mxu0 0
        %717 = vmatpush1.bf16.msra.mxu0 %v601
        %718 = vmatprep.subr.bf16.mxu0 0
        %719 = vmatpush1.bf16.msra.mxu0 %v604
        %720 = vmatprep.subr.bf16.mxu0 0
        %721 = vmatpush1.bf16.msra.mxu0 %v607
        %722 = vmatprep.subr.bf16.mxu0 0
        %723 = vmatpush1.bf16.msra.mxu0 %v610
        %724 = vmatprep.subr.bf16.mxu0 0
        %725 = vmatpush1.bf16.msra.mxu0 0
        %726 = vmatprep.subr.bf16.mxu0 0
        %727 = vmatpush1.bf16.msra.mxu0 0
        %728 = vmatprep.subr.bf16.mxu0 0
        %729 = vmatpush1.bf16.msra.mxu0 0
        %730 = vmatprep.subr.bf16.mxu0 0
        %731 = vmatpush1.bf16.msra.mxu0 0
        %732 = vmatprep.subr.bf16.mxu0 0
        %733 = vmatpush1.bf16.msra.mxu0 0
        %734 = vmatprep.subr.bf16.mxu0 0
        %735 = vmatpush1.bf16.msra.mxu0 0
        %736 = vmatprep.subr.bf16.mxu0 0
        %737 = vmatpush1.bf16.msra.mxu0 0
        %738 = vmatprep.subr.bf16.mxu0 0
        %739 = vmatpush1.bf16.msra.mxu0 0
        %740 = vmatprep.mubr.bf16.mxu0 0
        %741 = vmatmul.mubr.bf16.gmra.mrb[0].mxu0 %v451
        %v742 = vpop.f32.mrb[0].mxu0
        %v743 = vadd.f32 %v431, %v742
        %v744 = vpop.f32.mrb[0].mxu0
        %v745 = vpop.f32.mrb[0].mxu0
        %v746 = vadd.f32 %v431, %v745
        %v747 = vpop.f32.mrb[0].mxu0
        %748 = vmatprep.mubr.bf16.mxu0 0
        %749 = vmatmul.mubr.bf16.gmra.mrb[0].mxu0 %v468
        %v750 = vpop.f32.mrb[0].mxu0
        %v751 = vadd.f32 %v431, %v750
        %v752 = vpop.f32.mrb[0].mxu0
        %v753 = vpop.f32.mrb[0].mxu0
        %v754 = vadd.f32 %v431, %v753
        %v755 = vpop.f32.mrb[0].mxu0
        %756 = vmatprep.mubr.bf16.mxu0 0
        %757 = vmatmul.mubr.bf16.gmra.mrb[0].mxu0 %v485
        %v758 = vpop.f32.mrb[0].mxu0
        %v759 = vadd.f32 %v431, %v758
        %v760 = vpop.f32.mrb[0].mxu0
        %v761 = vpop.f32.mrb[0].mxu0
        %v762 = vadd.f32 %v431, %v761
        %v763 = vpop.f32.mrb[0].mxu0
        %764 = vmatprep.mubr.bf16.mxu0 0
        %765 = vmatmul.mubr.bf16.gmra.mrb[0].mxu0 %v502
        %v766 = vpop.f32.mrb[0].mxu0
        %v767 = vadd.f32 %v431, %v766
        %v768 = vpop.f32.mrb[0].mxu0
        %v769 = vpop.f32.mrb[0].mxu0
        %v770 = vadd.f32 %v431, %v769
        %v771 = vpop.f32.mrb[0].mxu0
        %772 = vdwg.mxu0
        %v773 = vpack.c.bf16 %v674, %v670
        %v774 = vpack.c.bf16 %v676, %v672
        %v775 = vpack.c.bf16 %v746, %v743
        %v776 = vpack.c.bf16 %v684, %v680
        %v777 = vpack.c.bf16 %v686, %v682
        %v778 = vpack.c.bf16 %v754, %v751
        %v779 = vpack.c.bf16 %v694, %v690
        %v780 = vpack.c.bf16 %v696, %v692
        %v781 = vpack.c.bf16 %v762, %v759
        %v782 = vpack.c.bf16 %v704, %v700
        %v783 = vpack.c.bf16 %v706, %v702
        %v784 = vpack.c.bf16 %v770, %v767
        %v785 = vld [vmem:[%s6] sm:$0xff]
        %v786 = vld [vmem:[%s6 + $0x8] sm:$0xff]
        %vm787 = vcmask 261120
        %v789 = vsel %vm787, %v773, 0
        %v792 = vsel %vm787, %v774, 0
        %794 = vmatprep.subr.bf16.mxu0 0
        %795 = vmatpush1.bf16.xpose.msra.mxu0 %v792
        %796 = vmatprep.subr.bf16.mxu0 0
        %797 = vmatpush1.bf16.xpose.msra.mxu0 0
        %798 = vmatprep.subr.bf16.mxu0 0
        %799 = vmatpush1.bf16.xpose.msra.mxu0 0
        %800 = vmatprep.subr.bf16.mxu0 0
        %801 = vmatpush1.bf16.xpose.msra.mxu0 0
        %802 = vmatprep.subr.bf16.mxu0 0
        %803 = vmatpush1.bf16.xpose.msra.mxu0 0
        %804 = vmatprep.subr.bf16.mxu0 0
        %805 = vmatpush1.bf16.xpose.msra.mxu0 0
        %806 = vmatprep.subr.bf16.mxu0 0
        %807 = vmatpush1.bf16.xpose.msra.mxu0 0
        %808 = vmatprep.subr.bf16.mxu0 0
        %809 = vmatpush1.bf16.xpose.msra.mxu0 0
        %810 = vmatprep.subr.bf16.mxu0 0
        %811 = vmatpush1.bf16.xpose.msra.mxu0 0
        %812 = vmatprep.subr.bf16.mxu0 0
        %813 = vmatpush1.bf16.xpose.msra.mxu0 0
        %814 = vmatprep.subr.bf16.mxu0 0
        %815 = vmatpush1.bf16.xpose.msra.mxu0 0
        %816 = vmatprep.subr.bf16.mxu0 0
        %817 = vmatpush1.bf16.xpose.msra.mxu0 0
        %818 = vmatprep.subr.bf16.mxu0 0
        %819 = vmatpush1.bf16.xpose.msra.mxu0 0
        %820 = vmatprep.subr.bf16.mxu0 0
        %821 = vmatpush1.bf16.xpose.msra.mxu0 0
        %822 = vmatprep.subr.bf16.mxu0 0
        %823 = vmatpush1.bf16.xpose.msra.mxu0 0
        %824 = vmatprep.subr.bf16.mxu0 0
        %825 = vmatpush1.bf16.xpose.msra.mxu0 0
        %826 = vmatprep.mubr.bf16.mxu0 0
        %827 = vmatmul.mubr.bf16.gmra.mrb[0].mxu0 %v789
        %v828 = vpop.f32.mrb[0].mxu0
        %v829 = vadd.f32 %v785, %v828
        %v830 = vpop.f32.mrb[0].mxu0
        %v831 = vpop.f32.mrb[0].mxu0
        %v832 = vadd.f32 %v786, %v831
        %v833 = vpop.f32.mrb[0].mxu0
        %834 = vdwg.mxu0
        %v836 = vsel %vm787, %v776, 0
        %v839 = vsel %vm787, %v777, 0
        %841 = vmatprep.subr.bf16.mxu0 0
        %842 = vmatpush1.bf16.xpose.msra.mxu0 %v839
        %843 = vmatprep.subr.bf16.mxu0 0
        %844 = vmatpush1.bf16.xpose.msra.mxu0 0
        %845 = vmatprep.subr.bf16.mxu0 0
        %846 = vmatpush1.bf16.xpose.msra.mxu0 0
        %847 = vmatprep.subr.bf16.mxu0 0
        %848 = vmatpush1.bf16.xpose.msra.mxu0 0
        %849 = vmatprep.subr.bf16.mxu0 0
        %850 = vmatpush1.bf16.xpose.msra.mxu0 0
        %851 = vmatprep.subr.bf16.mxu0 0
        %852 = vmatpush1.bf16.xpose.msra.mxu0 0
        %853 = vmatprep.subr.bf16.mxu0 0
        %854 = vmatpush1.bf16.xpose.msra.mxu0 0
        %855 = vmatprep.subr.bf16.mxu0 0
        %856 = vmatpush1.bf16.xpose.msra.mxu0 0
        %857 = vmatprep.subr.bf16.mxu0 0
        %858 = vmatpush1.bf16.xpose.msra.mxu0 0
        %859 = vmatprep.subr.bf16.mxu0 0
        %860 = vmatpush1.bf16.xpose.msra.mxu0 0
        %861 = vmatprep.subr.bf16.mxu0 0
        %862 = vmatpush1.bf16.xpose.msra.mxu0 0
        %863 = vmatprep.subr.bf16.mxu0 0
        %864 = vmatpush1.bf16.xpose.msra.mxu0 0
        %865 = vmatprep.subr.bf16.mxu0 0
        %866 = vmatpush1.bf16.xpose.msra.mxu0 0
        %867 = vmatprep.subr.bf16.mxu0 0
        %868 = vmatpush1.bf16.xpose.msra.mxu0 0
        %869 = vmatprep.subr.bf16.mxu0 0
        %870 = vmatpush1.bf16.xpose.msra.mxu0 0
        %871 = vmatprep.subr.bf16.mxu0 0
        %872 = vmatpush1.bf16.xpose.msra.mxu0 0
        %873 = vmatprep.mubr.bf16.mxu0 0
        %874 = vmatmul.mubr.bf16.gmra.mrb[0].mxu0 %v836
        %v875 = vpop.f32.mrb[0].mxu0
        %v876 = vadd.f32 %v785, %v875
        %v877 = vpop.f32.mrb[0].mxu0
        %v878 = vpop.f32.mrb[0].mxu0
        %v879 = vadd.f32 %v786, %v878
        %v880 = vpop.f32.mrb[0].mxu0
        %881 = vdwg.mxu0
        %v883 = vsel %vm787, %v779, 0
        %v886 = vsel %vm787, %v780, 0
        %888 = vmatprep.subr.bf16.mxu0 0
        %889 = vmatpush1.bf16.xpose.msra.mxu0 %v886
        %890 = vmatprep.subr.bf16.mxu0 0
        %891 = vmatpush1.bf16.xpose.msra.mxu0 0
        %892 = vmatprep.subr.bf16.mxu0 0
        %893 = vmatpush1.bf16.xpose.msra.mxu0 0
        %894 = vmatprep.subr.bf16.mxu0 0
        %895 = vmatpush1.bf16.xpose.msra.mxu0 0
        %896 = vmatprep.subr.bf16.mxu0 0
        %897 = vmatpush1.bf16.xpose.msra.mxu0 0
        %898 = vmatprep.subr.bf16.mxu0 0
        %899 = vmatpush1.bf16.xpose.msra.mxu0 0
        %900 = vmatprep.subr.bf16.mxu0 0
        %901 = vmatpush1.bf16.xpose.msra.mxu0 0
        %902 = vmatprep.subr.bf16.mxu0 0
        %903 = vmatpush1.bf16.xpose.msra.mxu0 0
        %904 = vmatprep.subr.bf16.mxu0 0
        %905 = vmatpush1.bf16.xpose.msra.mxu0 0
        %906 = vmatprep.subr.bf16.mxu0 0
        %907 = vmatpush1.bf16.xpose.msra.mxu0 0
        %908 = vmatprep.subr.bf16.mxu0 0
        %909 = vmatpush1.bf16.xpose.msra.mxu0 0
        %910 = vmatprep.subr.bf16.mxu0 0
        %911 = vmatpush1.bf16.xpose.msra.mxu0 0
        %912 = vmatprep.subr.bf16.mxu0 0
        %913 = vmatpush1.bf16.xpose.msra.mxu0 0
        %914 = vmatprep.subr.bf16.mxu0 0
        %915 = vmatpush1.bf16.xpose.msra.mxu0 0
        %916 = vmatprep.subr.bf16.mxu0 0
        %917 = vmatpush1.bf16.xpose.msra.mxu0 0
        %918 = vmatprep.subr.bf16.mxu0 0
        %919 = vmatpush1.bf16.xpose.msra.mxu0 0
        %920 = vmatprep.mubr.bf16.mxu0 0
        %921 = vmatmul.mubr.bf16.gmra.mrb[0].mxu0 %v883
        %v922 = vpop.f32.mrb[0].mxu0
        %v923 = vadd.f32 %v785, %v922
        %v924 = vpop.f32.mrb[0].mxu0
        %v925 = vpop.f32.mrb[0].mxu0
        %v926 = vadd.f32 %v786, %v925
        %v927 = vpop.f32.mrb[0].mxu0
        %928 = vdwg.mxu0
        %v930 = vsel %vm787, %v782, 0
        %v933 = vsel %vm787, %v783, 0
        %935 = vmatprep.subr.bf16.mxu0 0
        %936 = vmatpush1.bf16.xpose.msra.mxu0 %v933
        %937 = vmatprep.subr.bf16.mxu0 0
        %938 = vmatpush1.bf16.xpose.msra.mxu0 0
        %939 = vmatprep.subr.bf16.mxu0 0
        %940 = vmatpush1.bf16.xpose.msra.mxu0 0
        %941 = vmatprep.subr.bf16.mxu0 0
        %942 = vmatpush1.bf16.xpose.msra.mxu0 0
        %943 = vmatprep.subr.bf16.mxu0 0
        %944 = vmatpush1.bf16.xpose.msra.mxu0 0
        %945 = vmatprep.subr.bf16.mxu0 0
        %946 = vmatpush1.bf16.xpose.msra.mxu0 0
        %947 = vmatprep.subr.bf16.mxu0 0
        %948 = vmatpush1.bf16.xpose.msra.mxu0 0
        %949 = vmatprep.subr.bf16.mxu0 0
        %950 = vmatpush1.bf16.xpose.msra.mxu0 0
        %951 = vmatprep.subr.bf16.mxu0 0
        %952 = vmatpush1.bf16.xpose.msra.mxu0 0
        %953 = vmatprep.subr.bf16.mxu0 0
        %954 = vmatpush1.bf16.xpose.msra.mxu0 0
        %955 = vmatprep.subr.bf16.mxu0 0
        %956 = vmatpush1.bf16.xpose.msra.mxu0 0
        %957 = vmatprep.subr.bf16.mxu0 0
        %958 = vmatpush1.bf16.xpose.msra.mxu0 0
        %959 = vmatprep.subr.bf16.mxu0 0
        %960 = vmatpush1.bf16.xpose.msra.mxu0 0
        %961 = vmatprep.subr.bf16.mxu0 0
        %962 = vmatpush1.bf16.xpose.msra.mxu0 0
        %963 = vmatprep.subr.bf16.mxu0 0
        %964 = vmatpush1.bf16.xpose.msra.mxu0 0
        %965 = vmatprep.subr.bf16.mxu0 0
        %966 = vmatpush1.bf16.xpose.msra.mxu0 0
        %967 = vmatprep.mubr.bf16.mxu0 0
        %968 = vmatmul.mubr.bf16.gmra.mrb[0].mxu0 %v930
        %v969 = vpop.f32.mrb[0].mxu0
        %v970 = vadd.f32 %v785, %v969
        %v971 = vpop.f32.mrb[0].mxu0
        %v972 = vpop.f32.mrb[0].mxu0
        %v973 = vadd.f32 %v786, %v972
        %v974 = vpop.f32.mrb[0].mxu0
        %975 = vdwg.mxu0
        %vm976 = vcmask 130048
        %v977 = vsel %vm976, %v829, -inf
        %978 = vmax.xlane.f32.xlu0 %v977
        %v979 = vpop.xlane.xlu0 %978
        %v980 = vsel %vm976, %v832, -inf
        %981 = vmax.xlane.f32.xlu0 %v980
        %v982 = vpop.xlane.xlu0 %981
        %v983 = vsel %vm976, %v876, -inf
        %984 = vmax.xlane.f32.xlu0 %v983
        %v985 = vpop.xlane.xlu0 %984
        %v986 = vsel %vm976, %v879, -inf
        %987 = vmax.xlane.f32.xlu0 %v986
        %v988 = vpop.xlane.xlu0 %987
        %v989 = vsel %vm976, %v923, -inf
        %990 = vmax.xlane.f32.xlu0 %v989
        %v991 = vpop.xlane.xlu0 %990
        %v992 = vsel %vm976, %v926, -inf
        %993 = vmax.xlane.f32.xlu0 %v992
        %v994 = vpop.xlane.xlu0 %993
        %v995 = vsel %vm976, %v970, -inf
        %996 = vmax.xlane.f32.xlu0 %v995
        %v997 = vpop.xlane.xlu0 %996
        %v998 = vsel %vm976, %v973, -inf
        %999 = vmax.xlane.f32.xlu0 %v998
        %v1000 = vpop.xlane.xlu0 %999
        %v1001 = vsub.f32 %v829, %v979
        %v1002 = vsub.f32 %v832, %v982
        %v1003 = vsub.f32 %v876, %v985
        %v1004 = vsub.f32 %v879, %v988
        %v1005 = vsub.f32 %v923, %v991
        %v1006 = vsub.f32 %v926, %v994
        %v1007 = vsub.f32 %v970, %v997
        %v1008 = vsub.f32 %v973, %v1000
        %v1009 = vmul.f32 %v1001, 1.442695
        %v1010 = vpow.pop %v1009
        %v1011 = vmul.f32 %v1002, 1.442695
        %v1012 = vpow.pop %v1011
        %v1013 = vmul.f32 %v1003, 1.442695
        %v1014 = vpow.pop %v1013
        %v1015 = vmul.f32 %v1004, 1.442695
        %v1016 = vpow.pop %v1015
        %v1017 = vmul.f32 %v1005, 1.442695
        %v1018 = vpow.pop %v1017
        %v1019 = vmul.f32 %v1006, 1.442695
        %v1020 = vpow.pop %v1019
        %v1021 = vmul.f32 %v1007, 1.442695
        %v1022 = vpow.pop %v1021
        %v1023 = vmul.f32 %v1008, 1.442695
        %v1024 = vpow.pop %v1023
        %v1025 = vsel %vm976, %v1010, 0.0
        %1026 = vadd.xlane.f32.xlu0 %v1025
        %v1027 = vpop.xlane.xlu0 %1026
        %v1028 = vsel %vm976, %v1012, 0.0
        %1029 = vadd.xlane.f32.xlu0 %v1028
        %v1030 = vpop.xlane.xlu0 %1029
        %v1031 = vsel %vm976, %v1014, 0.0
        %1032 = vadd.xlane.f32.xlu0 %v1031
        %v1033 = vpop.xlane.xlu0 %1032
        %v1034 = vsel %vm976, %v1016, 0.0
        %1035 = vadd.xlane.f32.xlu0 %v1034
        %v1036 = vpop.xlane.xlu0 %1035
        %v1037 = vsel %vm976, %v1018, 0.0
        %1038 = vadd.xlane.f32.xlu0 %v1037
        %v1039 = vpop.xlane.xlu0 %1038
        %v1040 = vsel %vm976, %v1020, 0.0
        %1041 = vadd.xlane.f32.xlu0 %v1040
        %v1042 = vpop.xlane.xlu0 %1041
        %v1043 = vsel %vm976, %v1022, 0.0
        %1044 = vadd.xlane.f32.xlu0 %v1043
        %v1045 = vpop.xlane.xlu0 %1044
        %v1046 = vsel %vm976, %v1024, 0.0
        %1047 = vadd.xlane.f32.xlu0 %v1046
        %v1048 = vpop.xlane.xlu0 %1047
        %v1049 = vrcp.pop %v1027
        %v1050 = vrcp.pop %v1030
        %v1051 = vrcp.pop %v1033
        %v1052 = vrcp.pop %v1036
        %v1053 = vrcp.pop %v1039
        %v1054 = vrcp.pop %v1042
        %v1055 = vrcp.pop %v1045
        %v1056 = vrcp.pop %v1048
        %v1057 = vmul.f32 %v1010, %v1049
        %v1058 = vmul.f32 %v1012, %v1050
        %v1059 = vmul.f32 %v1014, %v1051
        %v1060 = vmul.f32 %v1016, %v1052
        %v1061 = vmul.f32 %v1018, %v1053
        %v1062 = vmul.f32 %v1020, %v1054
        %v1063 = vmul.f32 %v1022, %v1055
        %v1064 = vmul.f32 %v1024, %v1056
        %v1065 = vpack.c.bf16 %v1058, %v1057
        %v1066 = vpack.c.bf16 %v1060, %v1059
        %v1067 = vpack.c.bf16 %v1062, %v1061
        %v1068 = vpack.c.bf16 %v1064, %v1063
        %v1070 = vsel %vm976, %v1065, 0
        %1072 = vmatprep.subr.bf16.mxu0 0
        %1073 = vmatpush1.bf16.msra.mxu0 %v775
        %1074 = vmatprep.subr.bf16.mxu0 0
        %1075 = vmatpush1.bf16.msra.mxu0 0
        %1076 = vmatprep.subr.bf16.mxu0 0
        %1077 = vmatpush1.bf16.msra.mxu0 0
        %1078 = vmatprep.subr.bf16.mxu0 0
        %1079 = vmatpush1.bf16.msra.mxu0 0
        %1080 = vmatprep.subr.bf16.mxu0 0
        %1081 = vmatpush1.bf16.msra.mxu0 0
        %1082 = vmatprep.subr.bf16.mxu0 0
        %1083 = vmatpush1.bf16.msra.mxu0 0
        %1084 = vmatprep.subr.bf16.mxu0 0
        %1085 = vmatpush1.bf16.msra.mxu0 0
        %1086 = vmatprep.subr.bf16.mxu0 0
        %1087 = vmatpush1.bf16.msra.mxu0 0
        %1088 = vmatprep.subr.bf16.mxu0 0
        %1089 = vmatpush1.bf16.msra.mxu0 0
        %1090 = vmatprep.subr.bf16.mxu0 0
        %1091 = vmatpush1.bf16.msra.mxu0 0
        %1092 = vmatprep.subr.bf16.mxu0 0
        %1093 = vmatpush1.bf16.msra.mxu0 0
        %1094 = vmatprep.subr.bf16.mxu0 0
        %1095 = vmatpush1.bf16.msra.mxu0 0
        %1096 = vmatprep.subr.bf16.mxu0 0
        %1097 = vmatpush1.bf16.msra.mxu0 0
        %1098 = vmatprep.subr.bf16.mxu0 0
        %1099 = vmatpush1.bf16.msra.mxu0 0
        %1100 = vmatprep.subr.bf16.mxu0 0
        %1101 = vmatpush1.bf16.msra.mxu0 0
        %1102 = vmatprep.subr.bf16.mxu0 0
        %1103 = vmatpush1.bf16.msra.mxu0 0
        %1104 = vmatprep.mubr.bf16.mxu0 0
        %1105 = vmatmul.mubr.bf16.gmra.mrb[0].mxu0 %v1070
        %v1106 = vpop.f32.mrb[0].mxu0
        %v1107 = vadd.f32 0.0, %v1106
        %v1108 = vpop.f32.mrb[0].mxu0
        %v1109 = vpop.f32.mrb[0].mxu0
        %v1110 = vadd.f32 0.0, %v1109
        %v1111 = vpop.f32.mrb[0].mxu0
        %1112 = vdwg.mxu0
        %v1114 = vsel %vm976, %v1066, 0
        %1116 = vmatprep.subr.bf16.mxu0 0
        %1117 = vmatpush1.bf16.msra.mxu0 %v778
        %1118 = vmatprep.subr.bf16.mxu0 0
        %1119 = vmatpush1.bf16.msra.mxu0 0
        %1120 = vmatprep.subr.bf16.mxu0 0
        %1121 = vmatpush1.bf16.msra.mxu0 0
        %1122 = vmatprep.subr.bf16.mxu0 0
        %1123 = vmatpush1.bf16.msra.mxu0 0
        %1124 = vmatprep.subr.bf16.mxu0 0
        %1125 = vmatpush1.bf16.msra.mxu0 0
        %1126 = vmatprep.subr.bf16.mxu0 0
        %1127 = vmatpush1.bf16.msra.mxu0 0
        %1128 = vmatprep.subr.bf16.mxu0 0
        %1129 = vmatpush1.bf16.msra.mxu0 0
        %1130 = vmatprep.subr.bf16.mxu0 0
        %1131 = vmatpush1.bf16.msra.mxu0 0
        %1132 = vmatprep.subr.bf16.mxu0 0
        %1133 = vmatpush1.bf16.msra.mxu0 0
        %1134 = vmatprep.subr.bf16.mxu0 0
        %1135 = vmatpush1.bf16.msra.mxu0 0
        %1136 = vmatprep.subr.bf16.mxu0 0
        %1137 = vmatpush1.bf16.msra.mxu0 0
        %1138 = vmatprep.subr.bf16.mxu0 0
        %1139 = vmatpush1.bf16.msra.mxu0 0
        %1140 = vmatprep.subr.bf16.mxu0 0
        %1141 = vmatpush1.bf16.msra.mxu0 0
        %1142 = vmatprep.subr.bf16.mxu0 0
        %1143 = vmatpush1.bf16.msra.mxu0 0
        %1144 = vmatprep.subr.bf16.mxu0 0
        %1145 = vmatpush1.bf16.msra.mxu0 0
        %1146 = vmatprep.subr.bf16.mxu0 0
        %1147 = vmatpush1.bf16.msra.mxu0 0
        %1148 = vmatprep.mubr.bf16.mxu0 0
        %1149 = vmatmul.mubr.bf16.gmra.mrb[0].mxu0 %v1114
        %v1150 = vpop.f32.mrb[0].mxu0
        %v1151 = vadd.f32 0.0, %v1150
        %v1152 = vpop.f32.mrb[0].mxu0
        %v1153 = vpop.f32.mrb[0].mxu0
        %v1154 = vadd.f32 0.0, %v1153
        %v1155 = vpop.f32.mrb[0].mxu0
        %1156 = vdwg.mxu0
        %v1158 = vsel %vm976, %v1067, 0
        %1160 = vmatprep.subr.bf16.mxu0 0
        %1161 = vmatpush1.bf16.msra.mxu0 %v781
        %1162 = vmatprep.subr.bf16.mxu0 0
        %1163 = vmatpush1.bf16.msra.mxu0 0
        %1164 = vmatprep.subr.bf16.mxu0 0
        %1165 = vmatpush1.bf16.msra.mxu0 0
        %1166 = vmatprep.subr.bf16.mxu0 0
        %1167 = vmatpush1.bf16.msra.mxu0 0
        %1168 = vmatprep.subr.bf16.mxu0 0
        %1169 = vmatpush1.bf16.msra.mxu0 0
        %1170 = vmatprep.subr.bf16.mxu0 0
        %1171 = vmatpush1.bf16.msra.mxu0 0
        %1172 = vmatprep.subr.bf16.mxu0 0
        %1173 = vmatpush1.bf16.msra.mxu0 0
        %1174 = vmatprep.subr.bf16.mxu0 0
        %1175 = vmatpush1.bf16.msra.mxu0 0
        %1176 = vmatprep.subr.bf16.mxu0 0
        %1177 = vmatpush1.bf16.msra.mxu0 0
        %1178 = vmatprep.subr.bf16.mxu0 0
        %1179 = vmatpush1.bf16.msra.mxu0 0
        %1180 = vmatprep.subr.bf16.mxu0 0
        %1181 = vmatpush1.bf16.msra.mxu0 0
        %1182 = vmatprep.subr.bf16.mxu0 0
        %1183 = vmatpush1.bf16.msra.mxu0 0
        %1184 = vmatprep.subr.bf16.mxu0 0
        %1185 = vmatpush1.bf16.msra.mxu0 0
        %1186 = vmatprep.subr.bf16.mxu0 0
        %1187 = vmatpush1.bf16.msra.mxu0 0
        %1188 = vmatprep.subr.bf16.mxu0 0
        %1189 = vmatpush1.bf16.msra.mxu0 0
        %1190 = vmatprep.subr.bf16.mxu0 0
        %1191 = vmatpush1.bf16.msra.mxu0 0
        %1192 = vmatprep.mubr.bf16.mxu0 0
        %1193 = vmatmul.mubr.bf16.gmra.mrb[0].mxu0 %v1158
        %v1194 = vpop.f32.mrb[0].mxu0
        %v1195 = vadd.f32 0.0, %v1194
        %v1196 = vpop.f32.mrb[0].mxu0
        %v1197 = vpop.f32.mrb[0].mxu0
        %v1198 = vadd.f32 0.0, %v1197
        %v1199 = vpop.f32.mrb[0].mxu0
        %1200 = vdwg.mxu0
        %v1202 = vsel %vm976, %v1068, 0
        %1204 = vmatprep.subr.bf16.mxu0 0
        %1205 = vmatpush1.bf16.msra.mxu0 %v784
        %1206 = vmatprep.subr.bf16.mxu0 0
        %1207 = vmatpush1.bf16.msra.mxu0 0
        %1208 = vmatprep.subr.bf16.mxu0 0
        %1209 = vmatpush1.bf16.msra.mxu0 0
        %1210 = vmatprep.subr.bf16.mxu0 0
        %1211 = vmatpush1.bf16.msra.mxu0 0
        %1212 = vmatprep.subr.bf16.mxu0 0
        %1213 = vmatpush1.bf16.msra.mxu0 0
        %1214 = vmatprep.subr.bf16.mxu0 0
        %1215 = vmatpush1.bf16.msra.mxu0 0
        %1216 = vmatprep.subr.bf16.mxu0 0
        %1217 = vmatpush1.bf16.msra.mxu0 0
        %1218 = vmatprep.subr.bf16.mxu0 0
        %1219 = vmatpush1.bf16.msra.mxu0 0
        %1220 = vmatprep.subr.bf16.mxu0 0
        %1221 = vmatpush1.bf16.msra.mxu0 0
        %1222 = vmatprep.subr.bf16.mxu0 0
        %1223 = vmatpush1.bf16.msra.mxu0 0
        %1224 = vmatprep.subr.bf16.mxu0 0
        %1225 = vmatpush1.bf16.msra.mxu0 0
        %1226 = vmatprep.subr.bf16.mxu0 0
        %1227 = vmatpush1.bf16.msra.mxu0 0
        %1228 = vmatprep.subr.bf16.mxu0 0
        %1229 = vmatpush1.bf16.msra.mxu0 0
        %1230 = vmatprep.subr.bf16.mxu0 0
        %1231 = vmatpush1.bf16.msra.mxu0 0
        %1232 = vmatprep.subr.bf16.mxu0 0
        %1233 = vmatpush1.bf16.msra.mxu0 0
        %1234 = vmatprep.subr.bf16.mxu0 0
        %1235 = vmatpush1.bf16.msra.mxu0 0
        %1236 = vmatprep.mubr.bf16.mxu0 0
        %1237 = vmatmul.mubr.bf16.gmra.mrb[0].mxu0 %v1202
        %v1238 = vpop.f32.mrb[0].mxu0
        %v1239 = vadd.f32 0.0, %v1238
        %v1240 = vpop.f32.mrb[0].mxu0
        %v1241 = vpop.f32.mrb[0].mxu0
        %v1242 = vadd.f32 0.0, %v1241
        %v1243 = vpop.f32.mrb[0].mxu0
        %1244 = vdwg.mxu0
        %v1245 = vpack.c.bf16 %v1110, %v1107
        %v1246 = vpack.c.bf16 %v1154, %v1151
        %v1247 = vpack.c.bf16 %v1198, %v1195
        %v1248 = vpack.c.bf16 %v1242, %v1239
        %v1249 = vld [vmem:[%s4] sm:$0xff]
        %v1250 = vld [vmem:[%s4 + $0x8] sm:$0xff]
        %v1251 = vld [vmem:[%s4 + $0x10] sm:$0xff]
        %v1252 = vld [vmem:[%s4 + $0x18] sm:$0xff]
        %1254 = vrot.lane.b32.xlu0 %v773, 96
        %v1255 = vpop.permute.xlu0 %1254
        %1257 = vrot.lane.b32.xlu0 %v774, 96
        %v1258 = vpop.permute.xlu0 %1257
        %v1260 = vsel %vm787, %v1255, 0
        %v1263 = vsel %vm787, %v1258, 0
        %1265 = vmatprep.subr.bf16.mxu0 0
        %1266 = vmatpush1.bf16.xpose.msra.mxu0 %v1263
        %1267 = vmatprep.subr.bf16.mxu0 0
        %1268 = vmatpush1.bf16.xpose.msra.mxu0 0
        %1269 = vmatprep.subr.bf16.mxu0 0
        %1270 = vmatpush1.bf16.xpose.msra.mxu0 0
        %1271 = vmatprep.subr.bf16.mxu0 0
        %1272 = vmatpush1.bf16.xpose.msra.mxu0 0
        %1273 = vmatprep.subr.bf16.mxu0 0
        %1274 = vmatpush1.bf16.xpose.msra.mxu0 0
        %1275 = vmatprep.subr.bf16.mxu0 0
        %1276 = vmatpush1.bf16.xpose.msra.mxu0 0
        %1277 = vmatprep.subr.bf16.mxu0 0
        %1278 = vmatpush1.bf16.xpose.msra.mxu0 0
        %1279 = vmatprep.subr.bf16.mxu0 0
        %1280 = vmatpush1.bf16.xpose.msra.mxu0 0
        %1281 = vmatprep.subr.bf16.mxu0 0
        %1282 = vmatpush1.bf16.xpose.msra.mxu0 0
        %1283 = vmatprep.subr.bf16.mxu0 0
        %1284 = vmatpush1.bf16.xpose.msra.mxu0 0
        %1285 = vmatprep.subr.bf16.mxu0 0
        %1286 = vmatpush1.bf16.xpose.msra.mxu0 0
        %1287 = vmatprep.subr.bf16.mxu0 0
        %1288 = vmatpush1.bf16.xpose.msra.mxu0 0
        %1289 = vmatprep.subr.bf16.mxu0 0
        %1290 = vmatpush1.bf16.xpose.msra.mxu0 0
        %1291 = vmatprep.subr.bf16.mxu0 0
        %1292 = vmatpush1.bf16.xpose.msra.mxu0 0
        %1293 = vmatprep.subr.bf16.mxu0 0
        %1294 = vmatpush1.bf16.xpose.msra.mxu0 0
        %1295 = vmatprep.subr.bf16.mxu0 0
        %1296 = vmatpush1.bf16.xpose.msra.mxu0 0
        %1297 = vmatprep.mubr.bf16.mxu0 0
        %1298 = vmatmul.mubr.bf16.gmra.mrb[0].mxu0 %v1260
        %v1299 = vpop.f32.mrb[0].mxu0
        %v1300 = vadd.f32 %v785, %v1299
        %v1301 = vpop.f32.mrb[0].mxu0
        %v1302 = vpop.f32.mrb[0].mxu0
        %v1303 = vadd.f32 %v786, %v1302
        %v1304 = vpop.f32.mrb[0].mxu0
        %1305 = vdwg.mxu0
        %1307 = vrot.lane.b32.xlu0 %v776, 96
        %v1308 = vpop.permute.xlu0 %1307
        %1310 = vrot.lane.b32.xlu0 %v777, 96
        %v1311 = vpop.permute.xlu0 %1310
        %v1313 = vsel %vm787, %v1308, 0
        %v1316 = vsel %vm787, %v1311, 0
        %1318 = vmatprep.subr.bf16.mxu0 0
        %1319 = vmatpush1.bf16.xpose.msra.mxu0 %v1316
        %1320 = vmatprep.subr.bf16.mxu0 0
        %1321 = vmatpush1.bf16.xpose.msra.mxu0 0
        %1322 = vmatprep.subr.bf16.mxu0 0
        %1323 = vmatpush1.bf16.xpose.msra.mxu0 0
        %1324 = vmatprep.subr.bf16.mxu0 0
        %1325 = vmatpush1.bf16.xpose.msra.mxu0 0
        %1326 = vmatprep.subr.bf16.mxu0 0
        %1327 = vmatpush1.bf16.xpose.msra.mxu0 0
        %1328 = vmatprep.subr.bf16.mxu0 0
        %1329 = vmatpush1.bf16.xpose.msra.mxu0 0
        %1330 = vmatprep.subr.bf16.mxu0 0
        %1331 = vmatpush1.bf16.xpose.msra.mxu0 0
        %1332 = vmatprep.subr.bf16.mxu0 0
        %1333 = vmatpush1.bf16.xpose.msra.mxu0 0
        %1334 = vmatprep.subr.bf16.mxu0 0
        %1335 = vmatpush1.bf16.xpose.msra.mxu0 0
        %1336 = vmatprep.subr.bf16.mxu0 0
        %1337 = vmatpush1.bf16.xpose.msra.mxu0 0
        %1338 = vmatprep.subr.bf16.mxu0 0
        %1339 = vmatpush1.bf16.xpose.msra.mxu0 0
        %1340 = vmatprep.subr.bf16.mxu0 0
        %1341 = vmatpush1.bf16.xpose.msra.mxu0 0
        %1342 = vmatprep.subr.bf16.mxu0 0
        %1343 = vmatpush1.bf16.xpose.msra.mxu0 0
        %1344 = vmatprep.subr.bf16.mxu0 0
        %1345 = vmatpush1.bf16.xpose.msra.mxu0 0
        %1346 = vmatprep.subr.bf16.mxu0 0
        %1347 = vmatpush1.bf16.xpose.msra.mxu0 0
        %1348 = vmatprep.subr.bf16.mxu0 0
        %1349 = vmatpush1.bf16.xpose.msra.mxu0 0
        %1350 = vmatprep.mubr.bf16.mxu0 0
        %1351 = vmatmul.mubr.bf16.gmra.mrb[0].mxu0 %v1313
        %v1352 = vpop.f32.mrb[0].mxu0
        %v1353 = vadd.f32 %v785, %v1352
        %v1354 = vpop.f32.mrb[0].mxu0
        %v1355 = vpop.f32.mrb[0].mxu0
        %v1356 = vadd.f32 %v786, %v1355
        %v1357 = vpop.f32.mrb[0].mxu0
        %1358 = vdwg.mxu0
        %1360 = vrot.lane.b32.xlu0 %v779, 96
        %v1361 = vpop.permute.xlu0 %1360
        %1363 = vrot.lane.b32.xlu0 %v780, 96
        %v1364 = vpop.permute.xlu0 %1363
        %v1366 = vsel %vm787, %v1361, 0
        %v1369 = vsel %vm787, %v1364, 0
        %1371 = vmatprep.subr.bf16.mxu0 0
        %1372 = vmatpush1.bf16.xpose.msra.mxu0 %v1369
        %1373 = vmatprep.subr.bf16.mxu0 0
        %1374 = vmatpush1.bf16.xpose.msra.mxu0 0
        %1375 = vmatprep.subr.bf16.mxu0 0
        %1376 = vmatpush1.bf16.xpose.msra.mxu0 0
        %1377 = vmatprep.subr.bf16.mxu0 0
        %1378 = vmatpush1.bf16.xpose.msra.mxu0 0
        %1379 = vmatprep.subr.bf16.mxu0 0
        %1380 = vmatpush1.bf16.xpose.msra.mxu0 0
        %1381 = vmatprep.subr.bf16.mxu0 0
        %1382 = vmatpush1.bf16.xpose.msra.mxu0 0
        %1383 = vmatprep.subr.bf16.mxu0 0
        %1384 = vmatpush1.bf16.xpose.msra.mxu0 0
        %1385 = vmatprep.subr.bf16.mxu0 0
        %1386 = vmatpush1.bf16.xpose.msra.mxu0 0
        %1387 = vmatprep.subr.bf16.mxu0 0
        %1388 = vmatpush1.bf16.xpose.msra.mxu0 0
        %1389 = vmatprep.subr.bf16.mxu0 0
        %1390 = vmatpush1.bf16.xpose.msra.mxu0 0
        %1391 = vmatprep.subr.bf16.mxu0 0
        %1392 = vmatpush1.bf16.xpose.msra.mxu0 0
        %1393 = vmatprep.subr.bf16.mxu0 0
        %1394 = vmatpush1.bf16.xpose.msra.mxu0 0
        %1395 = vmatprep.subr.bf16.mxu0 0
        %1396 = vmatpush1.bf16.xpose.msra.mxu0 0
        %1397 = vmatprep.subr.bf16.mxu0 0
        %1398 = vmatpush1.bf16.xpose.msra.mxu0 0
        %1399 = vmatprep.subr.bf16.mxu0 0
        %1400 = vmatpush1.bf16.xpose.msra.mxu0 0
        %1401 = vmatprep.subr.bf16.mxu0 0
        %1402 = vmatpush1.bf16.xpose.msra.mxu0 0
        %1403 = vmatprep.mubr.bf16.mxu0 0
        %1404 = vmatmul.mubr.bf16.gmra.mrb[0].mxu0 %v1366
        %v1405 = vpop.f32.mrb[0].mxu0
        %v1406 = vadd.f32 %v785, %v1405
        %v1407 = vpop.f32.mrb[0].mxu0
        %v1408 = vpop.f32.mrb[0].mxu0
        %v1409 = vadd.f32 %v786, %v1408
        %v1410 = vpop.f32.mrb[0].mxu0
        %1411 = vdwg.mxu0
        %1413 = vrot.lane.b32.xlu0 %v782, 96
        %v1414 = vpop.permute.xlu0 %1413
        %1416 = vrot.lane.b32.xlu0 %v783, 96
        %v1417 = vpop.permute.xlu0 %1416
        %v1419 = vsel %vm787, %v1414, 0
        %v1422 = vsel %vm787, %v1417, 0
        %1424 = vmatprep.subr.bf16.mxu0 0
        %1425 = vmatpush1.bf16.xpose.msra.mxu0 %v1422
        %1426 = vmatprep.subr.bf16.mxu0 0
        %1427 = vmatpush1.bf16.xpose.msra.mxu0 0
        %1428 = vmatprep.subr.bf16.mxu0 0
        %1429 = vmatpush1.bf16.xpose.msra.mxu0 0
        %1430 = vmatprep.subr.bf16.mxu0 0
        %1431 = vmatpush1.bf16.xpose.msra.mxu0 0
        %1432 = vmatprep.subr.bf16.mxu0 0
        %1433 = vmatpush1.bf16.xpose.msra.mxu0 0
        %1434 = vmatprep.subr.bf16.mxu0 0
        %1435 = vmatpush1.bf16.xpose.msra.mxu0 0
        %1436 = vmatprep.subr.bf16.mxu0 0
        %1437 = vmatpush1.bf16.xpose.msra.mxu0 0
        %1438 = vmatprep.subr.bf16.mxu0 0
        %1439 = vmatpush1.bf16.xpose.msra.mxu0 0
        %1440 = vmatprep.subr.bf16.mxu0 0
        %1441 = vmatpush1.bf16.xpose.msra.mxu0 0
        %1442 = vmatprep.subr.bf16.mxu0 0
        %1443 = vmatpush1.bf16.xpose.msra.mxu0 0
        %1444 = vmatprep.subr.bf16.mxu0 0
        %1445 = vmatpush1.bf16.xpose.msra.mxu0 0
        %1446 = vmatprep.subr.bf16.mxu0 0
        %1447 = vmatpush1.bf16.xpose.msra.mxu0 0
        %1448 = vmatprep.subr.bf16.mxu0 0
        %1449 = vmatpush1.bf16.xpose.msra.mxu0 0
        %1450 = vmatprep.subr.bf16.mxu0 0
        %1451 = vmatpush1.bf16.xpose.msra.mxu0 0
        %1452 = vmatprep.subr.bf16.mxu0 0
        %1453 = vmatpush1.bf16.xpose.msra.mxu0 0
        %1454 = vmatprep.subr.bf16.mxu0 0
        %1455 = vmatpush1.bf16.xpose.msra.mxu0 0
        %1456 = vmatprep.mubr.bf16.mxu0 0
        %1457 = vmatmul.mubr.bf16.gmra.mrb[0].mxu0 %v1419
        %v1458 = vpop.f32.mrb[0].mxu0
        %v1459 = vadd.f32 %v785, %v1458
        %v1460 = vpop.f32.mrb[0].mxu0
        %v1461 = vpop.f32.mrb[0].mxu0
        %v1462 = vadd.f32 %v786, %v1461
        %v1463 = vpop.f32.mrb[0].mxu0
        %1464 = vdwg.mxu0
        %v1465 = vsel %vm976, %v1300, -inf
        %1466 = vmax.xlane.f32.xlu0 %v1465
        %v1467 = vpop.xlane.xlu0 %1466
        %v1468 = vsel %vm976, %v1303, -inf
        %1469 = vmax.xlane.f32.xlu0 %v1468
        %v1470 = vpop.xlane.xlu0 %1469
        %v1471 = vsel %vm976, %v1353, -inf
        %1472 = vmax.xlane.f32.xlu0 %v1471
        %v1473 = vpop.xlane.xlu0 %1472
        %v1474 = vsel %vm976, %v1356, -inf
        %1475 = vmax.xlane.f32.xlu0 %v1474
        %v1476 = vpop.xlane.xlu0 %1475
        %v1477 = vsel %vm976, %v1406, -inf
        %1478 = vmax.xlane.f32.xlu0 %v1477
        %v1479 = vpop.xlane.xlu0 %1478
        %v1480 = vsel %vm976, %v1409, -inf
        %1481 = vmax.xlane.f32.xlu0 %v1480
        %v1482 = vpop.xlane.xlu0 %1481
        %v1483 = vsel %vm976, %v1459, -inf
        %1484 = vmax.xlane.f32.xlu0 %v1483
        %v1485 = vpop.xlane.xlu0 %1484
        %v1486 = vsel %vm976, %v1462, -inf
        %1487 = vmax.xlane.f32.xlu0 %v1486
        %v1488 = vpop.xlane.xlu0 %1487
        %v1489 = vsub.f32 %v1300, %v1467
        %v1490 = vsub.f32 %v1303, %v1470
        %v1491 = vsub.f32 %v1353, %v1473
        %v1492 = vsub.f32 %v1356, %v1476
        %v1493 = vsub.f32 %v1406, %v1479
        %v1494 = vsub.f32 %v1409, %v1482
        %v1495 = vsub.f32 %v1459, %v1485
        %v1496 = vsub.f32 %v1462, %v1488
        %v1497 = vmul.f32 %v1489, 1.442695
        %v1498 = vpow.pop %v1497
        %v1499 = vmul.f32 %v1490, 1.442695
        %v1500 = vpow.pop %v1499
        %v1501 = vmul.f32 %v1491, 1.442695
        %v1502 = vpow.pop %v1501
        %v1503 = vmul.f32 %v1492, 1.442695
        %v1504 = vpow.pop %v1503
        %v1505 = vmul.f32 %v1493, 1.442695
        %v1506 = vpow.pop %v1505
        %v1507 = vmul.f32 %v1494, 1.442695
        %v1508 = vpow.pop %v1507
        %v1509 = vmul.f32 %v1495, 1.442695
        %v1510 = vpow.pop %v1509
        %v1511 = vmul.f32 %v1496, 1.442695
        %v1512 = vpow.pop %v1511
        %v1513 = vsel %vm976, %v1498, 0.0
        %1514 = vadd.xlane.f32.xlu0 %v1513
        %v1515 = vpop.xlane.xlu0 %1514
        %v1516 = vsel %vm976, %v1500, 0.0
        %1517 = vadd.xlane.f32.xlu0 %v1516
        %v1518 = vpop.xlane.xlu0 %1517
        %v1519 = vsel %vm976, %v1502, 0.0
        %1520 = vadd.xlane.f32.xlu0 %v1519
        %v1521 = vpop.xlane.xlu0 %1520
        %v1522 = vsel %vm976, %v1504, 0.0
        %1523 = vadd.xlane.f32.xlu0 %v1522
        %v1524 = vpop.xlane.xlu0 %1523
        %v1525 = vsel %vm976, %v1506, 0.0
        %1526 = vadd.xlane.f32.xlu0 %v1525
        %v1527 = vpop.xlane.xlu0 %1526
        %v1528 = vsel %vm976, %v1508, 0.0
        %1529 = vadd.xlane.f32.xlu0 %v1528
        %v1530 = vpop.xlane.xlu0 %1529
        %v1531 = vsel %vm976, %v1510, 0.0
        %1532 = vadd.xlane.f32.xlu0 %v1531
        %v1533 = vpop.xlane.xlu0 %1532
        %v1534 = vsel %vm976, %v1512, 0.0
        %1535 = vadd.xlane.f32.xlu0 %v1534
        %v1536 = vpop.xlane.xlu0 %1535
        %v1537 = vrcp.pop %v1515
        %v1538 = vrcp.pop %v1518
        %v1539 = vrcp.pop %v1521
        %v1540 = vrcp.pop %v1524
        %v1541 = vrcp.pop %v1527
        %v1542 = vrcp.pop %v1530
        %v1543 = vrcp.pop %v1533
        %v1544 = vrcp.pop %v1536
        %v1545 = vmul.f32 %v1498, %v1537
        %v1546 = vmul.f32 %v1500, %v1538
        %v1547 = vmul.f32 %v1502, %v1539
        %v1548 = vmul.f32 %v1504, %v1540
        %v1549 = vmul.f32 %v1506, %v1541
        %v1550 = vmul.f32 %v1508, %v1542
        %v1551 = vmul.f32 %v1510, %v1543
        %v1552 = vmul.f32 %v1512, %v1544
        %v1553 = vpack.c.bf16 %v1546, %v1545
        %v1554 = vpack.c.bf16 %v1548, %v1547
        %v1555 = vpack.c.bf16 %v1550, %v1549
        %v1556 = vpack.c.bf16 %v1552, %v1551
        %1558 = vrot.lane.b32.xlu0 %v775, 96
        %v1559 = vpop.permute.xlu0 %1558
        %v1562 = vsel %vm976, %v1553, 0
        %1564 = vmatprep.subr.bf16.mxu0 0
        %1565 = vmatpush1.bf16.msra.mxu0 %v1559
        %1566 = vmatprep.subr.bf16.mxu0 0
        %1567 = vmatpush1.bf16.msra.mxu0 0
        %1568 = vmatprep.subr.bf16.mxu0 0
        %1569 = vmatpush1.bf16.msra.mxu0 0
        %1570 = vmatprep.subr.bf16.mxu0 0
        %1571 = vmatpush1.bf16.msra.mxu0 0
        %1572 = vmatprep.subr.bf16.mxu0 0
        %1573 = vmatpush1.bf16.msra.mxu0 0
        %1574 = vmatprep.subr.bf16.mxu0 0
        %1575 = vmatpush1.bf16.msra.mxu0 0
        %1576 = vmatprep.subr.bf16.mxu0 0
        %1577 = vmatpush1.bf16.msra.mxu0 0
        %1578 = vmatprep.subr.bf16.mxu0 0
        %1579 = vmatpush1.bf16.msra.mxu0 0
        %1580 = vmatprep.subr.bf16.mxu0 0
        %1581 = vmatpush1.bf16.msra.mxu0 0
        %1582 = vmatprep.subr.bf16.mxu0 0
        %1583 = vmatpush1.bf16.msra.mxu0 0
        %1584 = vmatprep.subr.bf16.mxu0 0
        %1585 = vmatpush1.bf16.msra.mxu0 0
        %1586 = vmatprep.subr.bf16.mxu0 0
        %1587 = vmatpush1.bf16.msra.mxu0 0
        %1588 = vmatprep.subr.bf16.mxu0 0
        %1589 = vmatpush1.bf16.msra.mxu0 0
        %1590 = vmatprep.subr.bf16.mxu0 0
        %1591 = vmatpush1.bf16.msra.mxu0 0
        %1592 = vmatprep.subr.bf16.mxu0 0
        %1593 = vmatpush1.bf16.msra.mxu0 0
        %1594 = vmatprep.subr.bf16.mxu0 0
        %1595 = vmatpush1.bf16.msra.mxu0 0
        %1596 = vmatprep.mubr.bf16.mxu0 0
        %1597 = vmatmul.mubr.bf16.gmra.mrb[0].mxu0 %v1562
        %v1598 = vpop.f32.mrb[0].mxu0
        %v1599 = vadd.f32 0.0, %v1598
        %v1600 = vpop.f32.mrb[0].mxu0
        %v1601 = vpop.f32.mrb[0].mxu0
        %v1602 = vadd.f32 0.0, %v1601
        %v1603 = vpop.f32.mrb[0].mxu0
        %1604 = vdwg.mxu0
        %1606 = vrot.lane.b32.xlu0 %v778, 96
        %v1607 = vpop.permute.xlu0 %1606
        %v1610 = vsel %vm976, %v1554, 0
        %1612 = vmatprep.subr.bf16.mxu0 0
        %1613 = vmatpush1.bf16.msra.mxu0 %v1607
        %1614 = vmatprep.subr.bf16.mxu0 0
        %1615 = vmatpush1.bf16.msra.mxu0 0
        %1616 = vmatprep.subr.bf16.mxu0 0
        %1617 = vmatpush1.bf16.msra.mxu0 0
        %1618 = vmatprep.subr.bf16.mxu0 0
        %1619 = vmatpush1.bf16.msra.mxu0 0
        %1620 = vmatprep.subr.bf16.mxu0 0
        %1621 = vmatpush1.bf16.msra.mxu0 0
        %1622 = vmatprep.subr.bf16.mxu0 0
        %1623 = vmatpush1.bf16.msra.mxu0 0
        %1624 = vmatprep.subr.bf16.mxu0 0
        %1625 = vmatpush1.bf16.msra.mxu0 0
        %1626 = vmatprep.subr.bf16.mxu0 0
        %1627 = vmatpush1.bf16.msra.mxu0 0
        %1628 = vmatprep.subr.bf16.mxu0 0
        %1629 = vmatpush1.bf16.msra.mxu0 0
        %1630 = vmatprep.subr.bf16.mxu0 0
        %1631 = vmatpush1.bf16.msra.mxu0 0
        %1632 = vmatprep.subr.bf16.mxu0 0
        %1633 = vmatpush1.bf16.msra.mxu0 0
        %1634 = vmatprep.subr.bf16.mxu0 0
        %1635 = vmatpush1.bf16.msra.mxu0 0
        %1636 = vmatprep.subr.bf16.mxu0 0
        %1637 = vmatpush1.bf16.msra.mxu0 0
        %1638 = vmatprep.subr.bf16.mxu0 0
        %1639 = vmatpush1.bf16.msra.mxu0 0
        %1640 = vmatprep.subr.bf16.mxu0 0
        %1641 = vmatpush1.bf16.msra.mxu0 0
        %1642 = vmatprep.subr.bf16.mxu0 0
        %1643 = vmatpush1.bf16.msra.mxu0 0
        %1644 = vmatprep.mubr.bf16.mxu0 0
        %1645 = vmatmul.mubr.bf16.gmra.mrb[0].mxu0 %v1610
        %v1646 = vpop.f32.mrb[0].mxu0
        %v1647 = vadd.f32 0.0, %v1646
        %v1648 = vpop.f32.mrb[0].mxu0
        %v1649 = vpop.f32.mrb[0].mxu0
        %v1650 = vadd.f32 0.0, %v1649
        %v1651 = vpop.f32.mrb[0].mxu0
        %1652 = vdwg.mxu0
        %1654 = vrot.lane.b32.xlu0 %v781, 96
        %v1655 = vpop.permute.xlu0 %1654
        %v1658 = vsel %vm976, %v1555, 0
        %1660 = vmatprep.subr.bf16.mxu0 0
        %1661 = vmatpush1.bf16.msra.mxu0 %v1655
        %1662 = vmatprep.subr.bf16.mxu0 0
        %1663 = vmatpush1.bf16.msra.mxu0 0
        %1664 = vmatprep.subr.bf16.mxu0 0
        %1665 = vmatpush1.bf16.msra.mxu0 0
        %1666 = vmatprep.subr.bf16.mxu0 0
        %1667 = vmatpush1.bf16.msra.mxu0 0
        %1668 = vmatprep.subr.bf16.mxu0 0
        %1669 = vmatpush1.bf16.msra.mxu0 0
        %1670 = vmatprep.subr.bf16.mxu0 0
        %1671 = vmatpush1.bf16.msra.mxu0 0
        %1672 = vmatprep.subr.bf16.mxu0 0
        %1673 = vmatpush1.bf16.msra.mxu0 0
        %1674 = vmatprep.subr.bf16.mxu0 0
        %1675 = vmatpush1.bf16.msra.mxu0 0
        %1676 = vmatprep.subr.bf16.mxu0 0
        %1677 = vmatpush1.bf16.msra.mxu0 0
        %1678 = vmatprep.subr.bf16.mxu0 0
        %1679 = vmatpush1.bf16.msra.mxu0 0
        %1680 = vmatprep.subr.bf16.mxu0 0
        %1681 = vmatpush1.bf16.msra.mxu0 0
        %1682 = vmatprep.subr.bf16.mxu0 0
        %1683 = vmatpush1.bf16.msra.mxu0 0
        %1684 = vmatprep.subr.bf16.mxu0 0
        %1685 = vmatpush1.bf16.msra.mxu0 0
        %1686 = vmatprep.subr.bf16.mxu0 0
        %1687 = vmatpush1.bf16.msra.mxu0 0
        %1688 = vmatprep.subr.bf16.mxu0 0
        %1689 = vmatpush1.bf16.msra.mxu0 0
        %1690 = vmatprep.subr.bf16.mxu0 0
        %1691 = vmatpush1.bf16.msra.mxu0 0
        %1692 = vmatprep.mubr.bf16.mxu0 0
        %1693 = vmatmul.mubr.bf16.gmra.mrb[0].mxu0 %v1658
        %v1694 = vpop.f32.mrb[0].mxu0
        %v1695 = vadd.f32 0.0, %v1694
        %v1696 = vpop.f32.mrb[0].mxu0
        %v1697 = vpop.f32.mrb[0].mxu0
        %v1698 = vadd.f32 0.0, %v1697
        %v1699 = vpop.f32.mrb[0].mxu0
        %1700 = vdwg.mxu0
        %1702 = vrot.lane.b32.xlu0 %v784, 96
        %v1703 = vpop.permute.xlu0 %1702
        %v1706 = vsel %vm976, %v1556, 0
        %1708 = vmatprep.subr.bf16.mxu0 0
        %1709 = vmatpush1.bf16.msra.mxu0 %v1703
        %1710 = vmatprep.subr.bf16.mxu0 0
        %1711 = vmatpush1.bf16.msra.mxu0 0
        %1712 = vmatprep.subr.bf16.mxu0 0
        %1713 = vmatpush1.bf16.msra.mxu0 0
        %1714 = vmatprep.subr.bf16.mxu0 0
        %1715 = vmatpush1.bf16.msra.mxu0 0
        %1716 = vmatprep.subr.bf16.mxu0 0
        %1717 = vmatpush1.bf16.msra.mxu0 0
        %1718 = vmatprep.subr.bf16.mxu0 0
        %1719 = vmatpush1.bf16.msra.mxu0 0
        %1720 = vmatprep.subr.bf16.mxu0 0
        %1721 = vmatpush1.bf16.msra.mxu0 0
        %1722 = vmatprep.subr.bf16.mxu0 0
        %1723 = vmatpush1.bf16.msra.mxu0 0
        %1724 = vmatprep.subr.bf16.mxu0 0
        %1725 = vmatpush1.bf16.msra.mxu0 0
        %1726 = vmatprep.subr.bf16.mxu0 0
        %1727 = vmatpush1.bf16.msra.mxu0 0
        %1728 = vmatprep.subr.bf16.mxu0 0
        %1729 = vmatpush1.bf16.msra.mxu0 0
        %1730 = vmatprep.subr.bf16.mxu0 0
        %1731 = vmatpush1.bf16.msra.mxu0 0
        %1732 = vmatprep.subr.bf16.mxu0 0
        %1733 = vmatpush1.bf16.msra.mxu0 0
        %1734 = vmatprep.subr.bf16.mxu0 0
        %1735 = vmatpush1.bf16.msra.mxu0 0
        %1736 = vmatprep.subr.bf16.mxu0 0
        %1737 = vmatpush1.bf16.msra.mxu0 0
        %1738 = vmatprep.subr.bf16.mxu0 0
        %1739 = vmatpush1.bf16.msra.mxu0 0
        %1740 = vmatprep.mubr.bf16.mxu0 0
        %1741 = vmatmul.mubr.bf16.gmra.mrb[0].mxu0 %v1706
        %v1742 = vpop.f32.mrb[0].mxu0
        %v1743 = vadd.f32 0.0, %v1742
        %v1744 = vpop.f32.mrb[0].mxu0
        %v1745 = vpop.f32.mrb[0].mxu0
        %v1746 = vadd.f32 0.0, %v1745
        %v1747 = vpop.f32.mrb[0].mxu0
        %1748 = vdwg.mxu0
        %v1749 = vpack.c.bf16 %v1602, %v1599
        %v1750 = vpack.c.bf16 %v1650, %v1647
        %v1751 = vpack.c.bf16 %v1698, %v1695
        %v1752 = vpack.c.bf16 %v1746, %v1743
        %v1753 = vld [vmem:[%s4 + $0x20] sm:$0xff]
        %v1754 = vld [vmem:[%s4 + $0x28] sm:$0xff]
        %v1755 = vld [vmem:[%s4 + $0x30] sm:$0xff]
        %v1756 = vld [vmem:[%s4 + $0x38] sm:$0xff]
        %v1761 = vunpack.c.l.b16 %v1753
        %v1762 = vunpack.c.h.b16 %v1753
        %v1763 = vunpack.c.l.b16 %v1754
        %v1764 = vunpack.c.h.b16 %v1754
        %v1765 = vunpack.c.l.b16 %v1755
        %v1766 = vunpack.c.h.b16 %v1755
        %v1767 = vunpack.c.l.b16 %v1756
        %v1768 = vunpack.c.h.b16 %v1756
        %v1769 = vpack.c.b16 %v1763, %v1761
        %v1770 = vpack.c.b16 %v1764, %v1762
        %v1771 = vpack.c.b16 %v1767, %v1765
        %v1772 = vpack.c.b16 %v1768, %v1766
        %v1778 = vsel %vm787, %v1749, 0
        %v1781 = vsel %vm787, %v1750, 0
        %v1784 = vsel %vm787, %v1751, 0
        %v1787 = vsel %vm787, %v1752, 0
        %1789 = vmatprep.subr.bf16.mxu0 %v1770
        %1790 = vmatpush1.bf16.msra.mxu0 %v1769
        %1791 = vmatprep.subr.bf16.mxu0 %v1772
        %1792 = vmatpush1.bf16.msra.mxu0 %v1771
        %1793 = vmatprep.subr.bf16.mxu0 0
        %1794 = vmatpush1.bf16.msra.mxu0 0
        %1795 = vmatprep.subr.bf16.mxu0 0
        %1796 = vmatpush1.bf16.msra.mxu0 0
        %1797 = vmatprep.subr.bf16.mxu0 0
        %1798 = vmatpush1.bf16.msra.mxu0 0
        %1799 = vmatprep.subr.bf16.mxu0 0
        %1800 = vmatpush1.bf16.msra.mxu0 0
        %1801 = vmatprep.subr.bf16.mxu0 0
        %1802 = vmatpush1.bf16.msra.mxu0 0
        %1803 = vmatprep.subr.bf16.mxu0 0
        %1804 = vmatpush1.bf16.msra.mxu0 0
        %1805 = vmatprep.subr.bf16.mxu0 0
        %1806 = vmatpush1.bf16.msra.mxu0 0
        %1807 = vmatprep.subr.bf16.mxu0 0
        %1808 = vmatpush1.bf16.msra.mxu0 0
        %1809 = vmatprep.subr.bf16.mxu0 0
        %1810 = vmatpush1.bf16.msra.mxu0 0
        %1811 = vmatprep.subr.bf16.mxu0 0
        %1812 = vmatpush1.bf16.msra.mxu0 0
        %1813 = vmatprep.subr.bf16.mxu0 0
        %1814 = vmatpush1.bf16.msra.mxu0 0
        %1815 = vmatprep.subr.bf16.mxu0 0
        %1816 = vmatpush1.bf16.msra.mxu0 0
        %1817 = vmatprep.subr.bf16.mxu0 0
        %1818 = vmatpush1.bf16.msra.mxu0 0
        %1819 = vmatprep.subr.bf16.mxu0 0
        %1820 = vmatpush1.bf16.msra.mxu0 0
        %1821 = vmatprep.mubr.bf16.mxu0 0
        %1822 = vmatmul.mubr.bf16.gmra.mrb[0].mxu0 %v1778
        %v1823 = vpop.f32.mrb[0].mxu0
        %v1824 = vadd.f32 0.0, %v1823
        %v1825 = vpop.f32.mrb[0].mxu0
        %v1826 = vadd.f32 0.0, %v1825
        %v1827 = vpop.f32.mrb[0].mxu0
        %v1828 = vadd.f32 0.0, %v1827
        %v1829 = vpop.f32.mrb[0].mxu0
        %v1830 = vadd.f32 0.0, %v1829
        %1831 = vmatprep.mubr.bf16.mxu0 0
        %1832 = vmatmul.mubr.bf16.gmra.mrb[0].mxu0 %v1781
        %v1833 = vpop.f32.mrb[0].mxu0
        %v1834 = vadd.f32 0.0, %v1833
        %v1835 = vpop.f32.mrb[0].mxu0
        %v1836 = vadd.f32 0.0, %v1835
        %v1837 = vpop.f32.mrb[0].mxu0
        %v1838 = vadd.f32 0.0, %v1837
        %v1839 = vpop.f32.mrb[0].mxu0
        %v1840 = vadd.f32 0.0, %v1839
        %1841 = vmatprep.mubr.bf16.mxu0 0
        %1842 = vmatmul.mubr.bf16.gmra.mrb[0].mxu0 %v1784
        %v1843 = vpop.f32.mrb[0].mxu0
        %v1844 = vadd.f32 0.0, %v1843
        %v1845 = vpop.f32.mrb[0].mxu0
        %v1846 = vadd.f32 0.0, %v1845
        %v1847 = vpop.f32.mrb[0].mxu0
        %v1848 = vadd.f32 0.0, %v1847
        %v1849 = vpop.f32.mrb[0].mxu0
        %v1850 = vadd.f32 0.0, %v1849
        %1851 = vmatprep.mubr.bf16.mxu0 0
        %1852 = vmatmul.mubr.bf16.gmra.mrb[0].mxu0 %v1787
        %v1853 = vpop.f32.mrb[0].mxu0
        %v1854 = vadd.f32 0.0, %v1853
        %v1855 = vpop.f32.mrb[0].mxu0
        %v1856 = vadd.f32 0.0, %v1855
        %v1857 = vpop.f32.mrb[0].mxu0
        %v1858 = vadd.f32 0.0, %v1857
        %v1859 = vpop.f32.mrb[0].mxu0
        %v1860 = vadd.f32 0.0, %v1859
        %1861 = vdwg.mxu0
        %v1866 = vunpack.c.l.b16 %v1249
        %v1867 = vunpack.c.h.b16 %v1249
        %v1868 = vunpack.c.l.b16 %v1250
        %v1869 = vunpack.c.h.b16 %v1250
        %v1870 = vunpack.c.l.b16 %v1251
        %v1871 = vunpack.c.h.b16 %v1251
        %v1872 = vunpack.c.l.b16 %v1252
        %v1873 = vunpack.c.h.b16 %v1252
        %v1874 = vpack.c.b16 %v1868, %v1866
        %v1875 = vpack.c.b16 %v1869, %v1867
        %v1876 = vpack.c.b16 %v1872, %v1870
        %v1877 = vpack.c.b16 %v1873, %v1871
        %v1883 = vsel %vm787, %v1245, 0
        %v1886 = vsel %vm787, %v1246, 0
        %v1889 = vsel %vm787, %v1247, 0
        %v1892 = vsel %vm787, %v1248, 0
        %1894 = vmatprep.subr.bf16.mxu0 %v1875
        %1895 = vmatpush1.bf16.msra.mxu0 %v1874
        %1896 = vmatprep.subr.bf16.mxu0 %v1877
        %1897 = vmatpush1.bf16.msra.mxu0 %v1876
        %1898 = vmatprep.subr.bf16.mxu0 0
        %1899 = vmatpush1.bf16.msra.mxu0 0
        %1900 = vmatprep.subr.bf16.mxu0 0
        %1901 = vmatpush1.bf16.msra.mxu0 0
        %1902 = vmatprep.subr.bf16.mxu0 0
        %1903 = vmatpush1.bf16.msra.mxu0 0
        %1904 = vmatprep.subr.bf16.mxu0 0
        %1905 = vmatpush1.bf16.msra.mxu0 0
        %1906 = vmatprep.subr.bf16.mxu0 0
        %1907 = vmatpush1.bf16.msra.mxu0 0
        %1908 = vmatprep.subr.bf16.mxu0 0
        %1909 = vmatpush1.bf16.msra.mxu0 0
        %1910 = vmatprep.subr.bf16.mxu0 0
        %1911 = vmatpush1.bf16.msra.mxu0 0
        %1912 = vmatprep.subr.bf16.mxu0 0
        %1913 = vmatpush1.bf16.msra.mxu0 0
        %1914 = vmatprep.subr.bf16.mxu0 0
        %1915 = vmatpush1.bf16.msra.mxu0 0
        %1916 = vmatprep.subr.bf16.mxu0 0
        %1917 = vmatpush1.bf16.msra.mxu0 0
        %1918 = vmatprep.subr.bf16.mxu0 0
        %1919 = vmatpush1.bf16.msra.mxu0 0
        %1920 = vmatprep.subr.bf16.mxu0 0
        %1921 = vmatpush1.bf16.msra.mxu0 0
        %1922 = vmatprep.subr.bf16.mxu0 0
        %1923 = vmatpush1.bf16.msra.mxu0 0
        %1924 = vmatprep.subr.bf16.mxu0 0
        %1925 = vmatpush1.bf16.msra.mxu0 0
        %1926 = vmatprep.mubr.bf16.mxu0 0
        %1927 = vmatmul.mubr.bf16.gmra.mrb[0].mxu0 %v1883
        %v1928 = vpop.f32.mrb[0].mxu0
        %v1929 = vadd.f32 %v1824, %v1928
        %v1930 = vpop.f32.mrb[0].mxu0
        %v1931 = vadd.f32 %v1826, %v1930
        %v1932 = vpop.f32.mrb[0].mxu0
        %v1933 = vadd.f32 %v1828, %v1932
        %v1934 = vpop.f32.mrb[0].mxu0
        %v1935 = vadd.f32 %v1830, %v1934
        %1936 = vmatprep.mubr.bf16.mxu0 0
        %1937 = vmatmul.mubr.bf16.gmra.mrb[0].mxu0 %v1886
        %v1938 = vpop.f32.mrb[0].mxu0
        %v1939 = vadd.f32 %v1834, %v1938
        %v1940 = vpop.f32.mrb[0].mxu0
        %v1941 = vadd.f32 %v1836, %v1940
        %v1942 = vpop.f32.mrb[0].mxu0
        %v1943 = vadd.f32 %v1838, %v1942
        %v1944 = vpop.f32.mrb[0].mxu0
        %v1945 = vadd.f32 %v1840, %v1944
        %1946 = vmatprep.mubr.bf16.mxu0 0
        %1947 = vmatmul.mubr.bf16.gmra.mrb[0].mxu0 %v1889
        %v1948 = vpop.f32.mrb[0].mxu0
        %v1949 = vadd.f32 %v1844, %v1948
        %v1950 = vpop.f32.mrb[0].mxu0
        %v1951 = vadd.f32 %v1846, %v1950
        %v1952 = vpop.f32.mrb[0].mxu0
        %v1953 = vadd.f32 %v1848, %v1952
        %v1954 = vpop.f32.mrb[0].mxu0
        %v1955 = vadd.f32 %v1850, %v1954
        %1956 = vmatprep.mubr.bf16.mxu0 0
        %1957 = vmatmul.mubr.bf16.gmra.mrb[0].mxu0 %v1892
        %v1958 = vpop.f32.mrb[0].mxu0
        %v1959 = vadd.f32 %v1854, %v1958
        %v1960 = vpop.f32.mrb[0].mxu0
        %v1961 = vadd.f32 %v1856, %v1960
        %v1962 = vpop.f32.mrb[0].mxu0
        %v1963 = vadd.f32 %v1858, %v1962
        %v1964 = vpop.f32.mrb[0].mxu0
        %v1965 = vadd.f32 %v1860, %v1964
        %1966 = vdwg.mxu0
        %1967 = vrot.lane.b32.xlu0 %v773, 64
        %v1968 = vpop.permute.xlu0 %1967
        %1969 = vrot.lane.b32.xlu0 %v774, 64
        %v1970 = vpop.permute.xlu0 %1969
        %v1972 = vsel %vm787, %v1968, 0
        %v1975 = vsel %vm787, %v1970, 0
        %1977 = vmatprep.subr.bf16.mxu0 0
        %1978 = vmatpush1.bf16.xpose.msra.mxu0 %v1975
        %1979 = vmatprep.subr.bf16.mxu0 0
        %1980 = vmatpush1.bf16.xpose.msra.mxu0 0
        %1981 = vmatprep.subr.bf16.mxu0 0
        %1982 = vmatpush1.bf16.xpose.msra.mxu0 0
        %1983 = vmatprep.subr.bf16.mxu0 0
        %1984 = vmatpush1.bf16.xpose.msra.mxu0 0
        %1985 = vmatprep.subr.bf16.mxu0 0
        %1986 = vmatpush1.bf16.xpose.msra.mxu0 0
        %1987 = vmatprep.subr.bf16.mxu0 0
        %1988 = vmatpush1.bf16.xpose.msra.mxu0 0
        %1989 = vmatprep.subr.bf16.mxu0 0
        %1990 = vmatpush1.bf16.xpose.msra.mxu0 0
        %1991 = vmatprep.subr.bf16.mxu0 0
        %1992 = vmatpush1.bf16.xpose.msra.mxu0 0
        %1993 = vmatprep.subr.bf16.mxu0 0
        %1994 = vmatpush1.bf16.xpose.msra.mxu0 0
        %1995 = vmatprep.subr.bf16.mxu0 0
        %1996 = vmatpush1.bf16.xpose.msra.mxu0 0
        %1997 = vmatprep.subr.bf16.mxu0 0
        %1998 = vmatpush1.bf16.xpose.msra.mxu0 0
        %1999 = vmatprep.subr.bf16.mxu0 0
        %2000 = vmatpush1.bf16.xpose.msra.mxu0 0
        %2001 = vmatprep.subr.bf16.mxu0 0
        %2002 = vmatpush1.bf16.xpose.msra.mxu0 0
        %2003 = vmatprep.subr.bf16.mxu0 0
        %2004 = vmatpush1.bf16.xpose.msra.mxu0 0
        %2005 = vmatprep.subr.bf16.mxu0 0
        %2006 = vmatpush1.bf16.xpose.msra.mxu0 0
        %2007 = vmatprep.subr.bf16.mxu0 0
        %2008 = vmatpush1.bf16.xpose.msra.mxu0 0
        %2009 = vmatprep.mubr.bf16.mxu0 0
        %2010 = vmatmul.mubr.bf16.gmra.mrb[0].mxu0 %v1972
        %v2011 = vpop.f32.mrb[0].mxu0
        %v2012 = vadd.f32 %v785, %v2011
        %v2013 = vpop.f32.mrb[0].mxu0
        %v2014 = vpop.f32.mrb[0].mxu0
        %v2015 = vadd.f32 %v786, %v2014
        %v2016 = vpop.f32.mrb[0].mxu0
        %2017 = vdwg.mxu0
        %2018 = vrot.lane.b32.xlu0 %v776, 64
        %v2019 = vpop.permute.xlu0 %2018
        %2020 = vrot.lane.b32.xlu0 %v777, 64
        %v2021 = vpop.permute.xlu0 %2020
        %v2023 = vsel %vm787, %v2019, 0
        %v2026 = vsel %vm787, %v2021, 0
        %2028 = vmatprep.subr.bf16.mxu0 0
        %2029 = vmatpush1.bf16.xpose.msra.mxu0 %v2026
        %2030 = vmatprep.subr.bf16.mxu0 0
        %2031 = vmatpush1.bf16.xpose.msra.mxu0 0
        %2032 = vmatprep.subr.bf16.mxu0 0
        %2033 = vmatpush1.bf16.xpose.msra.mxu0 0
        %2034 = vmatprep.subr.bf16.mxu0 0
        %2035 = vmatpush1.bf16.xpose.msra.mxu0 0
        %2036 = vmatprep.subr.bf16.mxu0 0
        %2037 = vmatpush1.bf16.xpose.msra.mxu0 0
        %2038 = vmatprep.subr.bf16.mxu0 0
        %2039 = vmatpush1.bf16.xpose.msra.mxu0 0
        %2040 = vmatprep.subr.bf16.mxu0 0
        %2041 = vmatpush1.bf16.xpose.msra.mxu0 0
        %2042 = vmatprep.subr.bf16.mxu0 0
        %2043 = vmatpush1.bf16.xpose.msra.mxu0 0
        %2044 = vmatprep.subr.bf16.mxu0 0
        %2045 = vmatpush1.bf16.xpose.msra.mxu0 0
        %2046 = vmatprep.subr.bf16.mxu0 0
        %2047 = vmatpush1.bf16.xpose.msra.mxu0 0
        %2048 = vmatprep.subr.bf16.mxu0 0
        %2049 = vmatpush1.bf16.xpose.msra.mxu0 0
        %2050 = vmatprep.subr.bf16.mxu0 0
        %2051 = vmatpush1.bf16.xpose.msra.mxu0 0
        %2052 = vmatprep.subr.bf16.mxu0 0
        %2053 = vmatpush1.bf16.xpose.msra.mxu0 0
        %2054 = vmatprep.subr.bf16.mxu0 0
        %2055 = vmatpush1.bf16.xpose.msra.mxu0 0
        %2056 = vmatprep.subr.bf16.mxu0 0
        %2057 = vmatpush1.bf16.xpose.msra.mxu0 0
        %2058 = vmatprep.subr.bf16.mxu0 0
        %2059 = vmatpush1.bf16.xpose.msra.mxu0 0
        %2060 = vmatprep.mubr.bf16.mxu0 0
        %2061 = vmatmul.mubr.bf16.gmra.mrb[0].mxu0 %v2023
        %v2062 = vpop.f32.mrb[0].mxu0
        %v2063 = vadd.f32 %v785, %v2062
        %v2064 = vpop.f32.mrb[0].mxu0
        %v2065 = vpop.f32.mrb[0].mxu0
        %v2066 = vadd.f32 %v786, %v2065
        %v2067 = vpop.f32.mrb[0].mxu0
        %2068 = vdwg.mxu0
        %2069 = vrot.lane.b32.xlu0 %v779, 64
        %v2070 = vpop.permute.xlu0 %2069
        %2071 = vrot.lane.b32.xlu0 %v780, 64
        %v2072 = vpop.permute.xlu0 %2071
        %v2074 = vsel %vm787, %v2070, 0
        %v2077 = vsel %vm787, %v2072, 0
        %2079 = vmatprep.subr.bf16.mxu0 0
        %2080 = vmatpush1.bf16.xpose.msra.mxu0 %v2077
        %2081 = vmatprep.subr.bf16.mxu0 0
        %2082 = vmatpush1.bf16.xpose.msra.mxu0 0
        %2083 = vmatprep.subr.bf16.mxu0 0
        %2084 = vmatpush1.bf16.xpose.msra.mxu0 0
        %2085 = vmatprep.subr.bf16.mxu0 0
        %2086 = vmatpush1.bf16.xpose.msra.mxu0 0
        %2087 = vmatprep.subr.bf16.mxu0 0
        %2088 = vmatpush1.bf16.xpose.msra.mxu0 0
        %2089 = vmatprep.subr.bf16.mxu0 0
        %2090 = vmatpush1.bf16.xpose.msra.mxu0 0
        %2091 = vmatprep.subr.bf16.mxu0 0
        %2092 = vmatpush1.bf16.xpose.msra.mxu0 0
        %2093 = vmatprep.subr.bf16.mxu0 0
        %2094 = vmatpush1.bf16.xpose.msra.mxu0 0
        %2095 = vmatprep.subr.bf16.mxu0 0
        %2096 = vmatpush1.bf16.xpose.msra.mxu0 0
        %2097 = vmatprep.subr.bf16.mxu0 0
        %2098 = vmatpush1.bf16.xpose.msra.mxu0 0
        %2099 = vmatprep.subr.bf16.mxu0 0
        %2100 = vmatpush1.bf16.xpose.msra.mxu0 0
        %2101 = vmatprep.subr.bf16.mxu0 0
        %2102 = vmatpush1.bf16.xpose.msra.mxu0 0
        %2103 = vmatprep.subr.bf16.mxu0 0
        %2104 = vmatpush1.bf16.xpose.msra.mxu0 0
        %2105 = vmatprep.subr.bf16.mxu0 0
        %2106 = vmatpush1.bf16.xpose.msra.mxu0 0
        %2107 = vmatprep.subr.bf16.mxu0 0
        %2108 = vmatpush1.bf16.xpose.msra.mxu0 0
        %2109 = vmatprep.subr.bf16.mxu0 0
        %2110 = vmatpush1.bf16.xpose.msra.mxu0 0
        %2111 = vmatprep.mubr.bf16.mxu0 0
        %2112 = vmatmul.mubr.bf16.gmra.mrb[0].mxu0 %v2074
        %v2113 = vpop.f32.mrb[0].mxu0
        %v2114 = vadd.f32 %v785, %v2113
        %v2115 = vpop.f32.mrb[0].mxu0
        %v2116 = vpop.f32.mrb[0].mxu0
        %v2117 = vadd.f32 %v786, %v2116
        %v2118 = vpop.f32.mrb[0].mxu0
        %2119 = vdwg.mxu0
        %2120 = vrot.lane.b32.xlu0 %v782, 64
        %v2121 = vpop.permute.xlu0 %2120
        %2122 = vrot.lane.b32.xlu0 %v783, 64
        %v2123 = vpop.permute.xlu0 %2122
        %v2125 = vsel %vm787, %v2121, 0
        %v2128 = vsel %vm787, %v2123, 0
        %2130 = vmatprep.subr.bf16.mxu0 0
        %2131 = vmatpush1.bf16.xpose.msra.mxu0 %v2128
        %2132 = vmatprep.subr.bf16.mxu0 0
        %2133 = vmatpush1.bf16.xpose.msra.mxu0 0
        %2134 = vmatprep.subr.bf16.mxu0 0
        %2135 = vmatpush1.bf16.xpose.msra.mxu0 0
        %2136 = vmatprep.subr.bf16.mxu0 0
        %2137 = vmatpush1.bf16.xpose.msra.mxu0 0
        %2138 = vmatprep.subr.bf16.mxu0 0
        %2139 = vmatpush1.bf16.xpose.msra.mxu0 0
        %2140 = vmatprep.subr.bf16.mxu0 0
        %2141 = vmatpush1.bf16.xpose.msra.mxu0 0
        %2142 = vmatprep.subr.bf16.mxu0 0
        %2143 = vmatpush1.bf16.xpose.msra.mxu0 0
        %2144 = vmatprep.subr.bf16.mxu0 0
        %2145 = vmatpush1.bf16.xpose.msra.mxu0 0
        %2146 = vmatprep.subr.bf16.mxu0 0
        %2147 = vmatpush1.bf16.xpose.msra.mxu0 0
        %2148 = vmatprep.subr.bf16.mxu0 0
        %2149 = vmatpush1.bf16.xpose.msra.mxu0 0
        %2150 = vmatprep.subr.bf16.mxu0 0
        %2151 = vmatpush1.bf16.xpose.msra.mxu0 0
        %2152 = vmatprep.subr.bf16.mxu0 0
        %2153 = vmatpush1.bf16.xpose.msra.mxu0 0
        %2154 = vmatprep.subr.bf16.mxu0 0
        %2155 = vmatpush1.bf16.xpose.msra.mxu0 0
        %2156 = vmatprep.subr.bf16.mxu0 0
        %2157 = vmatpush1.bf16.xpose.msra.mxu0 0
        %2158 = vmatprep.subr.bf16.mxu0 0
        %2159 = vmatpush1.bf16.xpose.msra.mxu0 0
        %2160 = vmatprep.subr.bf16.mxu0 0
        %2161 = vmatpush1.bf16.xpose.msra.mxu0 0
        %2162 = vmatprep.mubr.bf16.mxu0 0
        %2163 = vmatmul.mubr.bf16.gmra.mrb[0].mxu0 %v2125
        %v2164 = vpop.f32.mrb[0].mxu0
        %v2165 = vadd.f32 %v785, %v2164
        %v2166 = vpop.f32.mrb[0].mxu0
        %v2167 = vpop.f32.mrb[0].mxu0
        %v2168 = vadd.f32 %v786, %v2167
        %v2169 = vpop.f32.mrb[0].mxu0
        %2170 = vdwg.mxu0
        %v2171 = vsel %vm976, %v2012, -inf
        %2172 = vmax.xlane.f32.xlu0 %v2171
        %v2173 = vpop.xlane.xlu0 %2172
        %v2174 = vsel %vm976, %v2015, -inf
        %2175 = vmax.xlane.f32.xlu0 %v2174
        %v2176 = vpop.xlane.xlu0 %2175
        %v2177 = vsel %vm976, %v2063, -inf
        %2178 = vmax.xlane.f32.xlu0 %v2177
        %v2179 = vpop.xlane.xlu0 %2178
        %v2180 = vsel %vm976, %v2066, -inf
        %2181 = vmax.xlane.f32.xlu0 %v2180
        %v2182 = vpop.xlane.xlu0 %2181
        %v2183 = vsel %vm976, %v2114, -inf
        %2184 = vmax.xlane.f32.xlu0 %v2183
        %v2185 = vpop.xlane.xlu0 %2184
        %v2186 = vsel %vm976, %v2117, -inf
        %2187 = vmax.xlane.f32.xlu0 %v2186
        %v2188 = vpop.xlane.xlu0 %2187
        %v2189 = vsel %vm976, %v2165, -inf
        %2190 = vmax.xlane.f32.xlu0 %v2189
        %v2191 = vpop.xlane.xlu0 %2190
        %v2192 = vsel %vm976, %v2168, -inf
        %2193 = vmax.xlane.f32.xlu0 %v2192
        %v2194 = vpop.xlane.xlu0 %2193
        %v2195 = vsub.f32 %v2012, %v2173
        %v2196 = vsub.f32 %v2015, %v2176
        %v2197 = vsub.f32 %v2063, %v2179
        %v2198 = vsub.f32 %v2066, %v2182
        %v2199 = vsub.f32 %v2114, %v2185
        %v2200 = vsub.f32 %v2117, %v2188
        %v2201 = vsub.f32 %v2165, %v2191
        %v2202 = vsub.f32 %v2168, %v2194
        %v2203 = vmul.f32 %v2195, 1.442695
        %v2204 = vpow.pop %v2203
        %v2205 = vmul.f32 %v2196, 1.442695
        %v2206 = vpow.pop %v2205
        %v2207 = vmul.f32 %v2197, 1.442695
        %v2208 = vpow.pop %v2207
        %v2209 = vmul.f32 %v2198, 1.442695
        %v2210 = vpow.pop %v2209
        %v2211 = vmul.f32 %v2199, 1.442695
        %v2212 = vpow.pop %v2211
        %v2213 = vmul.f32 %v2200, 1.442695
        %v2214 = vpow.pop %v2213
        %v2215 = vmul.f32 %v2201, 1.442695
        %v2216 = vpow.pop %v2215
        %v2217 = vmul.f32 %v2202, 1.442695
        %v2218 = vpow.pop %v2217
        %v2219 = vsel %vm976, %v2204, 0.0
        %2220 = vadd.xlane.f32.xlu0 %v2219
        %v2221 = vpop.xlane.xlu0 %2220
        %v2222 = vsel %vm976, %v2206, 0.0
        %2223 = vadd.xlane.f32.xlu0 %v2222
        %v2224 = vpop.xlane.xlu0 %2223
        %v2225 = vsel %vm976, %v2208, 0.0
        %2226 = vadd.xlane.f32.xlu0 %v2225
        %v2227 = vpop.xlane.xlu0 %2226
        %v2228 = vsel %vm976, %v2210, 0.0
        %2229 = vadd.xlane.f32.xlu0 %v2228
        %v2230 = vpop.xlane.xlu0 %2229
        %v2231 = vsel %vm976, %v2212, 0.0
        %2232 = vadd.xlane.f32.xlu0 %v2231
        %v2233 = vpop.xlane.xlu0 %2232
        %v2234 = vsel %vm976, %v2214, 0.0
        %2235 = vadd.xlane.f32.xlu0 %v2234
        %v2236 = vpop.xlane.xlu0 %2235
        %v2237 = vsel %vm976, %v2216, 0.0
        %2238 = vadd.xlane.f32.xlu0 %v2237
        %v2239 = vpop.xlane.xlu0 %2238
        %v2240 = vsel %vm976, %v2218, 0.0
        %2241 = vadd.xlane.f32.xlu0 %v2240
        %v2242 = vpop.xlane.xlu0 %2241
        %v2243 = vrcp.pop %v2221
        %v2244 = vrcp.pop %v2224
        %v2245 = vrcp.pop %v2227
        %v2246 = vrcp.pop %v2230
        %v2247 = vrcp.pop %v2233
        %v2248 = vrcp.pop %v2236
        %v2249 = vrcp.pop %v2239
        %v2250 = vrcp.pop %v2242
        %v2251 = vmul.f32 %v2204, %v2243
        %v2252 = vmul.f32 %v2206, %v2244
        %v2253 = vmul.f32 %v2208, %v2245
        %v2254 = vmul.f32 %v2210, %v2246
        %v2255 = vmul.f32 %v2212, %v2247
        %v2256 = vmul.f32 %v2214, %v2248
        %v2257 = vmul.f32 %v2216, %v2249
        %v2258 = vmul.f32 %v2218, %v2250
        %v2259 = vpack.c.bf16 %v2252, %v2251
        %v2260 = vpack.c.bf16 %v2254, %v2253
        %v2261 = vpack.c.bf16 %v2256, %v2255
        %v2262 = vpack.c.bf16 %v2258, %v2257
        %2263 = vrot.lane.b32.xlu0 %v775, 64
        %v2264 = vpop.permute.xlu0 %2263
        %v2267 = vsel %vm976, %v2259, 0
        %2269 = vmatprep.subr.bf16.mxu0 0
        %2270 = vmatpush1.bf16.msra.mxu0 %v2264
        %2271 = vmatprep.subr.bf16.mxu0 0
        %2272 = vmatpush1.bf16.msra.mxu0 0
        %2273 = vmatprep.subr.bf16.mxu0 0
        %2274 = vmatpush1.bf16.msra.mxu0 0
        %2275 = vmatprep.subr.bf16.mxu0 0
        %2276 = vmatpush1.bf16.msra.mxu0 0
        %2277 = vmatprep.subr.bf16.mxu0 0
        %2278 = vmatpush1.bf16.msra.mxu0 0
        %2279 = vmatprep.subr.bf16.mxu0 0
        %2280 = vmatpush1.bf16.msra.mxu0 0
        %2281 = vmatprep.subr.bf16.mxu0 0
        %2282 = vmatpush1.bf16.msra.mxu0 0
        %2283 = vmatprep.subr.bf16.mxu0 0
        %2284 = vmatpush1.bf16.msra.mxu0 0
        %2285 = vmatprep.subr.bf16.mxu0 0
        %2286 = vmatpush1.bf16.msra.mxu0 0
        %2287 = vmatprep.subr.bf16.mxu0 0
        %2288 = vmatpush1.bf16.msra.mxu0 0
        %2289 = vmatprep.subr.bf16.mxu0 0
        %2290 = vmatpush1.bf16.msra.mxu0 0
        %2291 = vmatprep.subr.bf16.mxu0 0
        %2292 = vmatpush1.bf16.msra.mxu0 0
        %2293 = vmatprep.subr.bf16.mxu0 0
        %2294 = vmatpush1.bf16.msra.mxu0 0
        %2295 = vmatprep.subr.bf16.mxu0 0
        %2296 = vmatpush1.bf16.msra.mxu0 0
        %2297 = vmatprep.subr.bf16.mxu0 0
        %2298 = vmatpush1.bf16.msra.mxu0 0
        %2299 = vmatprep.subr.bf16.mxu0 0
        %2300 = vmatpush1.bf16.msra.mxu0 0
        %2301 = vmatprep.mubr.bf16.mxu0 0
        %2302 = vmatmul.mubr.bf16.gmra.mrb[0].mxu0 %v2267
        %v2303 = vpop.f32.mrb[0].mxu0
        %v2304 = vadd.f32 0.0, %v2303
        %v2305 = vpop.f32.mrb[0].mxu0
        %v2306 = vpop.f32.mrb[0].mxu0
        %v2307 = vadd.f32 0.0, %v2306
        %v2308 = vpop.f32.mrb[0].mxu0
        %2309 = vdwg.mxu0
        %2310 = vrot.lane.b32.xlu0 %v778, 64
        %v2311 = vpop.permute.xlu0 %2310
        %v2314 = vsel %vm976, %v2260, 0
        %2316 = vmatprep.subr.bf16.mxu0 0
        %2317 = vmatpush1.bf16.msra.mxu0 %v2311
        %2318 = vmatprep.subr.bf16.mxu0 0
        %2319 = vmatpush1.bf16.msra.mxu0 0
        %2320 = vmatprep.subr.bf16.mxu0 0
        %2321 = vmatpush1.bf16.msra.mxu0 0
        %2322 = vmatprep.subr.bf16.mxu0 0
        %2323 = vmatpush1.bf16.msra.mxu0 0
        %2324 = vmatprep.subr.bf16.mxu0 0
        %2325 = vmatpush1.bf16.msra.mxu0 0
        %2326 = vmatprep.subr.bf16.mxu0 0
        %2327 = vmatpush1.bf16.msra.mxu0 0
        %2328 = vmatprep.subr.bf16.mxu0 0
        %2329 = vmatpush1.bf16.msra.mxu0 0
        %2330 = vmatprep.subr.bf16.mxu0 0
        %2331 = vmatpush1.bf16.msra.mxu0 0
        %2332 = vmatprep.subr.bf16.mxu0 0
        %2333 = vmatpush1.bf16.msra.mxu0 0
        %2334 = vmatprep.subr.bf16.mxu0 0
        %2335 = vmatpush1.bf16.msra.mxu0 0
        %2336 = vmatprep.subr.bf16.mxu0 0
        %2337 = vmatpush1.bf16.msra.mxu0 0
        %2338 = vmatprep.subr.bf16.mxu0 0
        %2339 = vmatpush1.bf16.msra.mxu0 0
        %2340 = vmatprep.subr.bf16.mxu0 0
        %2341 = vmatpush1.bf16.msra.mxu0 0
        %2342 = vmatprep.subr.bf16.mxu0 0
        %2343 = vmatpush1.bf16.msra.mxu0 0
        %2344 = vmatprep.subr.bf16.mxu0 0
        %2345 = vmatpush1.bf16.msra.mxu0 0
        %2346 = vmatprep.subr.bf16.mxu0 0
        %2347 = vmatpush1.bf16.msra.mxu0 0
        %2348 = vmatprep.mubr.bf16.mxu0 0
        %2349 = vmatmul.mubr.bf16.gmra.mrb[0].mxu0 %v2314
        %v2350 = vpop.f32.mrb[0].mxu0
        %v2351 = vadd.f32 0.0, %v2350
        %v2352 = vpop.f32.mrb[0].mxu0
        %v2353 = vpop.f32.mrb[0].mxu0
        %v2354 = vadd.f32 0.0, %v2353
        %v2355 = vpop.f32.mrb[0].mxu0
        %2356 = vdwg.mxu0
        %2357 = vrot.lane.b32.xlu0 %v781, 64
        %v2358 = vpop.permute.xlu0 %2357
        %v2361 = vsel %vm976, %v2261, 0
        %2363 = vmatprep.subr.bf16.mxu0 0
        %2364 = vmatpush1.bf16.msra.mxu0 %v2358
        %2365 = vmatprep.subr.bf16.mxu0 0
        %2366 = vmatpush1.bf16.msra.mxu0 0
        %2367 = vmatprep.subr.bf16.mxu0 0
        %2368 = vmatpush1.bf16.msra.mxu0 0
        %2369 = vmatprep.subr.bf16.mxu0 0
        %2370 = vmatpush1.bf16.msra.mxu0 0
        %2371 = vmatprep.subr.bf16.mxu0 0
        %2372 = vmatpush1.bf16.msra.mxu0 0
        %2373 = vmatprep.subr.bf16.mxu0 0
        %2374 = vmatpush1.bf16.msra.mxu0 0
        %2375 = vmatprep.subr.bf16.mxu0 0
        %2376 = vmatpush1.bf16.msra.mxu0 0
        %2377 = vmatprep.subr.bf16.mxu0 0
        %2378 = vmatpush1.bf16.msra.mxu0 0
        %2379 = vmatprep.subr.bf16.mxu0 0
        %2380 = vmatpush1.bf16.msra.mxu0 0
        %2381 = vmatprep.subr.bf16.mxu0 0
        %2382 = vmatpush1.bf16.msra.mxu0 0
        %2383 = vmatprep.subr.bf16.mxu0 0
        %2384 = vmatpush1.bf16.msra.mxu0 0
        %2385 = vmatprep.subr.bf16.mxu0 0
        %2386 = vmatpush1.bf16.msra.mxu0 0
        %2387 = vmatprep.subr.bf16.mxu0 0
        %2388 = vmatpush1.bf16.msra.mxu0 0
        %2389 = vmatprep.subr.bf16.mxu0 0
        %2390 = vmatpush1.bf16.msra.mxu0 0
        %2391 = vmatprep.subr.bf16.mxu0 0
        %2392 = vmatpush1.bf16.msra.mxu0 0
        %2393 = vmatprep.subr.bf16.mxu0 0
        %2394 = vmatpush1.bf16.msra.mxu0 0
        %2395 = vmatprep.mubr.bf16.mxu0 0
        %2396 = vmatmul.mubr.bf16.gmra.mrb[0].mxu0 %v2361
        %v2397 = vpop.f32.mrb[0].mxu0
        %v2398 = vadd.f32 0.0, %v2397
        %v2399 = vpop.f32.mrb[0].mxu0
        %v2400 = vpop.f32.mrb[0].mxu0
        %v2401 = vadd.f32 0.0, %v2400
        %v2402 = vpop.f32.mrb[0].mxu0
        %2403 = vdwg.mxu0
        %2404 = vrot.lane.b32.xlu0 %v784, 64
        %v2405 = vpop.permute.xlu0 %2404
        %v2408 = vsel %vm976, %v2262, 0
        %2410 = vmatprep.subr.bf16.mxu0 0
        %2411 = vmatpush1.bf16.msra.mxu0 %v2405
        %2412 = vmatprep.subr.bf16.mxu0 0
        %2413 = vmatpush1.bf16.msra.mxu0 0
        %2414 = vmatprep.subr.bf16.mxu0 0
        %2415 = vmatpush1.bf16.msra.mxu0 0
        %2416 = vmatprep.subr.bf16.mxu0 0
        %2417 = vmatpush1.bf16.msra.mxu0 0
        %2418 = vmatprep.subr.bf16.mxu0 0
        %2419 = vmatpush1.bf16.msra.mxu0 0
        %2420 = vmatprep.subr.bf16.mxu0 0
        %2421 = vmatpush1.bf16.msra.mxu0 0
        %2422 = vmatprep.subr.bf16.mxu0 0
        %2423 = vmatpush1.bf16.msra.mxu0 0
        %2424 = vmatprep.subr.bf16.mxu0 0
        %2425 = vmatpush1.bf16.msra.mxu0 0
        %2426 = vmatprep.subr.bf16.mxu0 0
        %2427 = vmatpush1.bf16.msra.mxu0 0
        %2428 = vmatprep.subr.bf16.mxu0 0
        %2429 = vmatpush1.bf16.msra.mxu0 0
        %2430 = vmatprep.subr.bf16.mxu0 0
        %2431 = vmatpush1.bf16.msra.mxu0 0
        %2432 = vmatprep.subr.bf16.mxu0 0
        %2433 = vmatpush1.bf16.msra.mxu0 0
        %2434 = vmatprep.subr.bf16.mxu0 0
        %2435 = vmatpush1.bf16.msra.mxu0 0
        %2436 = vmatprep.subr.bf16.mxu0 0
        %2437 = vmatpush1.bf16.msra.mxu0 0
        %2438 = vmatprep.subr.bf16.mxu0 0
        %2439 = vmatpush1.bf16.msra.mxu0 0
        %2440 = vmatprep.subr.bf16.mxu0 0
        %2441 = vmatpush1.bf16.msra.mxu0 0
        %2442 = vmatprep.mubr.bf16.mxu0 0
        %2443 = vmatmul.mubr.bf16.gmra.mrb[0].mxu0 %v2408
        %v2444 = vpop.f32.mrb[0].mxu0
        %v2445 = vadd.f32 0.0, %v2444
        %v2446 = vpop.f32.mrb[0].mxu0
        %v2447 = vpop.f32.mrb[0].mxu0
        %v2448 = vadd.f32 0.0, %v2447
        %v2449 = vpop.f32.mrb[0].mxu0
        %2450 = vdwg.mxu0
        %v2451 = vpack.c.bf16 %v2307, %v2304
        %v2452 = vpack.c.bf16 %v2354, %v2351
        %v2453 = vpack.c.bf16 %v2401, %v2398
        %v2454 = vpack.c.bf16 %v2448, %v2445
        %v2455 = vld [vmem:[%s4 + $0x40] sm:$0xff]
        %v2456 = vld [vmem:[%s4 + $0x48] sm:$0xff]
        %v2457 = vld [vmem:[%s4 + $0x50] sm:$0xff]
        %v2458 = vld [vmem:[%s4 + $0x58] sm:$0xff]
        %v2463 = vunpack.c.l.b16 %v2455
        %v2464 = vunpack.c.h.b16 %v2455
        %v2465 = vunpack.c.l.b16 %v2456
        %v2466 = vunpack.c.h.b16 %v2456
        %v2467 = vunpack.c.l.b16 %v2457
        %v2468 = vunpack.c.h.b16 %v2457
        %v2469 = vunpack.c.l.b16 %v2458
        %v2470 = vunpack.c.h.b16 %v2458
        %v2471 = vpack.c.b16 %v2465, %v2463
        %v2472 = vpack.c.b16 %v2466, %v2464
        %v2473 = vpack.c.b16 %v2469, %v2467
        %v2474 = vpack.c.b16 %v2470, %v2468
        %v2480 = vsel %vm787, %v2451, 0
        %v2483 = vsel %vm787, %v2452, 0
        %v2486 = vsel %vm787, %v2453, 0
        %v2489 = vsel %vm787, %v2454, 0
        %2491 = vmatprep.subr.bf16.mxu0 %v2472
        %2492 = vmatpush1.bf16.msra.mxu0 %v2471
        %2493 = vmatprep.subr.bf16.mxu0 %v2474
        %2494 = vmatpush1.bf16.msra.mxu0 %v2473
        %2495 = vmatprep.subr.bf16.mxu0 0
        %2496 = vmatpush1.bf16.msra.mxu0 0
        %2497 = vmatprep.subr.bf16.mxu0 0
        %2498 = vmatpush1.bf16.msra.mxu0 0
        %2499 = vmatprep.subr.bf16.mxu0 0
        %2500 = vmatpush1.bf16.msra.mxu0 0
        %2501 = vmatprep.subr.bf16.mxu0 0
        %2502 = vmatpush1.bf16.msra.mxu0 0
        %2503 = vmatprep.subr.bf16.mxu0 0
        %2504 = vmatpush1.bf16.msra.mxu0 0
        %2505 = vmatprep.subr.bf16.mxu0 0
        %2506 = vmatpush1.bf16.msra.mxu0 0
        %2507 = vmatprep.subr.bf16.mxu0 0
        %2508 = vmatpush1.bf16.msra.mxu0 0
        %2509 = vmatprep.subr.bf16.mxu0 0
        %2510 = vmatpush1.bf16.msra.mxu0 0
        %2511 = vmatprep.subr.bf16.mxu0 0
        %2512 = vmatpush1.bf16.msra.mxu0 0
        %2513 = vmatprep.subr.bf16.mxu0 0
        %2514 = vmatpush1.bf16.msra.mxu0 0
        %2515 = vmatprep.subr.bf16.mxu0 0
        %2516 = vmatpush1.bf16.msra.mxu0 0
        %2517 = vmatprep.subr.bf16.mxu0 0
        %2518 = vmatpush1.bf16.msra.mxu0 0
        %2519 = vmatprep.subr.bf16.mxu0 0
        %2520 = vmatpush1.bf16.msra.mxu0 0
        %2521 = vmatprep.subr.bf16.mxu0 0
        %2522 = vmatpush1.bf16.msra.mxu0 0
        %2523 = vmatprep.mubr.bf16.mxu0 0
        %2524 = vmatmul.mubr.bf16.gmra.mrb[0].mxu0 %v2480
        %v2525 = vpop.f32.mrb[0].mxu0
        %v2526 = vadd.f32 0.0, %v2525
        %v2527 = vpop.f32.mrb[0].mxu0
        %v2528 = vadd.f32 0.0, %v2527
        %v2529 = vpop.f32.mrb[0].mxu0
        %v2530 = vadd.f32 0.0, %v2529
        %v2531 = vpop.f32.mrb[0].mxu0
        %v2532 = vadd.f32 0.0, %v2531
        %2533 = vmatprep.mubr.bf16.mxu0 0
        %2534 = vmatmul.mubr.bf16.gmra.mrb[0].mxu0 %v2483
        %v2535 = vpop.f32.mrb[0].mxu0
        %v2536 = vadd.f32 0.0, %v2535
        %v2537 = vpop.f32.mrb[0].mxu0
        %v2538 = vadd.f32 0.0, %v2537
        %v2539 = vpop.f32.mrb[0].mxu0
        %v2540 = vadd.f32 0.0, %v2539
        %v2541 = vpop.f32.mrb[0].mxu0
        %v2542 = vadd.f32 0.0, %v2541
        %2543 = vmatprep.mubr.bf16.mxu0 0
        %2544 = vmatmul.mubr.bf16.gmra.mrb[0].mxu0 %v2486
        %v2545 = vpop.f32.mrb[0].mxu0
        %v2546 = vadd.f32 0.0, %v2545
        %v2547 = vpop.f32.mrb[0].mxu0
        %v2548 = vadd.f32 0.0, %v2547
        %v2549 = vpop.f32.mrb[0].mxu0
        %v2550 = vadd.f32 0.0, %v2549
        %v2551 = vpop.f32.mrb[0].mxu0
        %v2552 = vadd.f32 0.0, %v2551
        %2553 = vmatprep.mubr.bf16.mxu0 0
        %2554 = vmatmul.mubr.bf16.gmra.mrb[0].mxu0 %v2489
        %v2555 = vpop.f32.mrb[0].mxu0
        %v2556 = vadd.f32 0.0, %v2555
        %v2557 = vpop.f32.mrb[0].mxu0
        %v2558 = vadd.f32 0.0, %v2557
        %v2559 = vpop.f32.mrb[0].mxu0
        %v2560 = vadd.f32 0.0, %v2559
        %v2561 = vpop.f32.mrb[0].mxu0
        %v2562 = vadd.f32 0.0, %v2561
        %2563 = vdwg.mxu0
        %v2564 = vadd.f32 %v1929, %v2526
        %v2565 = vadd.f32 %v1931, %v2528
        %v2566 = vadd.f32 %v1933, %v2530
        %v2567 = vadd.f32 %v1935, %v2532
        %v2568 = vadd.f32 %v1939, %v2536
        %v2569 = vadd.f32 %v1941, %v2538
        %v2570 = vadd.f32 %v1943, %v2540
        %v2571 = vadd.f32 %v1945, %v2542
        %v2572 = vadd.f32 %v1949, %v2546
        %v2573 = vadd.f32 %v1951, %v2548
        %v2574 = vadd.f32 %v1953, %v2550
        %v2575 = vadd.f32 %v1955, %v2552
        %v2576 = vadd.f32 %v1959, %v2556
        %v2577 = vadd.f32 %v1961, %v2558
        %v2578 = vadd.f32 %v1963, %v2560
        %v2579 = vadd.f32 %v1965, %v2562
        %2580 = vrot.lane.b32.xlu0 %v773, 32
        %v2581 = vpop.permute.xlu0 %2580
        %2582 = vrot.lane.b32.xlu0 %v774, 32
        %v2583 = vpop.permute.xlu0 %2582
        %v2585 = vsel %vm787, %v2581, 0
        %v2588 = vsel %vm787, %v2583, 0
        %2590 = vmatprep.subr.bf16.mxu0 0
        %2591 = vmatpush1.bf16.xpose.msra.mxu0 %v2588
        %2592 = vmatprep.subr.bf16.mxu0 0
        %2593 = vmatpush1.bf16.xpose.msra.mxu0 0
        %2594 = vmatprep.subr.bf16.mxu0 0
        %2595 = vmatpush1.bf16.xpose.msra.mxu0 0
        %2596 = vmatprep.subr.bf16.mxu0 0
        %2597 = vmatpush1.bf16.xpose.msra.mxu0 0
        %2598 = vmatprep.subr.bf16.mxu0 0
        %2599 = vmatpush1.bf16.xpose.msra.mxu0 0
        %2600 = vmatprep.subr.bf16.mxu0 0
        %2601 = vmatpush1.bf16.xpose.msra.mxu0 0
        %2602 = vmatprep.subr.bf16.mxu0 0
        %2603 = vmatpush1.bf16.xpose.msra.mxu0 0
        %2604 = vmatprep.subr.bf16.mxu0 0
        %2605 = vmatpush1.bf16.xpose.msra.mxu0 0
        %2606 = vmatprep.subr.bf16.mxu0 0
        %2607 = vmatpush1.bf16.xpose.msra.mxu0 0
        %2608 = vmatprep.subr.bf16.mxu0 0
        %2609 = vmatpush1.bf16.xpose.msra.mxu0 0
        %2610 = vmatprep.subr.bf16.mxu0 0
        %2611 = vmatpush1.bf16.xpose.msra.mxu0 0
        %2612 = vmatprep.subr.bf16.mxu0 0
        %2613 = vmatpush1.bf16.xpose.msra.mxu0 0
        %2614 = vmatprep.subr.bf16.mxu0 0
        %2615 = vmatpush1.bf16.xpose.msra.mxu0 0
        %2616 = vmatprep.subr.bf16.mxu0 0
        %2617 = vmatpush1.bf16.xpose.msra.mxu0 0
        %2618 = vmatprep.subr.bf16.mxu0 0
        %2619 = vmatpush1.bf16.xpose.msra.mxu0 0
        %2620 = vmatprep.subr.bf16.mxu0 0
        %2621 = vmatpush1.bf16.xpose.msra.mxu0 0
        %2622 = vmatprep.mubr.bf16.mxu0 0
        %2623 = vmatmul.mubr.bf16.gmra.mrb[0].mxu0 %v2585
        %v2624 = vpop.f32.mrb[0].mxu0
        %v2625 = vadd.f32 %v785, %v2624
        %v2626 = vpop.f32.mrb[0].mxu0
        %v2627 = vpop.f32.mrb[0].mxu0
        %v2628 = vadd.f32 %v786, %v2627
        %v2629 = vpop.f32.mrb[0].mxu0
        %2630 = vdwg.mxu0
        %2631 = vrot.lane.b32.xlu0 %v776, 32
        %v2632 = vpop.permute.xlu0 %2631
        %2633 = vrot.lane.b32.xlu0 %v777, 32
        %v2634 = vpop.permute.xlu0 %2633
        %v2636 = vsel %vm787, %v2632, 0
        %v2639 = vsel %vm787, %v2634, 0
        %2641 = vmatprep.subr.bf16.mxu0 0
        %2642 = vmatpush1.bf16.xpose.msra.mxu0 %v2639
        %2643 = vmatprep.subr.bf16.mxu0 0
        %2644 = vmatpush1.bf16.xpose.msra.mxu0 0
        %2645 = vmatprep.subr.bf16.mxu0 0
        %2646 = vmatpush1.bf16.xpose.msra.mxu0 0
        %2647 = vmatprep.subr.bf16.mxu0 0
        %2648 = vmatpush1.bf16.xpose.msra.mxu0 0
        %2649 = vmatprep.subr.bf16.mxu0 0
        %2650 = vmatpush1.bf16.xpose.msra.mxu0 0
        %2651 = vmatprep.subr.bf16.mxu0 0
        %2652 = vmatpush1.bf16.xpose.msra.mxu0 0
        %2653 = vmatprep.subr.bf16.mxu0 0
        %2654 = vmatpush1.bf16.xpose.msra.mxu0 0
        %2655 = vmatprep.subr.bf16.mxu0 0
        %2656 = vmatpush1.bf16.xpose.msra.mxu0 0
        %2657 = vmatprep.subr.bf16.mxu0 0
        %2658 = vmatpush1.bf16.xpose.msra.mxu0 0
        %2659 = vmatprep.subr.bf16.mxu0 0
        %2660 = vmatpush1.bf16.xpose.msra.mxu0 0
        %2661 = vmatprep.subr.bf16.mxu0 0
        %2662 = vmatpush1.bf16.xpose.msra.mxu0 0
        %2663 = vmatprep.subr.bf16.mxu0 0
        %2664 = vmatpush1.bf16.xpose.msra.mxu0 0
        %2665 = vmatprep.subr.bf16.mxu0 0
        %2666 = vmatpush1.bf16.xpose.msra.mxu0 0
        %2667 = vmatprep.subr.bf16.mxu0 0
        %2668 = vmatpush1.bf16.xpose.msra.mxu0 0
        %2669 = vmatprep.subr.bf16.mxu0 0
        %2670 = vmatpush1.bf16.xpose.msra.mxu0 0
        %2671 = vmatprep.subr.bf16.mxu0 0
        %2672 = vmatpush1.bf16.xpose.msra.mxu0 0
        %2673 = vmatprep.mubr.bf16.mxu0 0
        %2674 = vmatmul.mubr.bf16.gmra.mrb[0].mxu0 %v2636
        %v2675 = vpop.f32.mrb[0].mxu0
        %v2676 = vadd.f32 %v785, %v2675
        %v2677 = vpop.f32.mrb[0].mxu0
        %v2678 = vpop.f32.mrb[0].mxu0
        %v2679 = vadd.f32 %v786, %v2678
        %v2680 = vpop.f32.mrb[0].mxu0
        %2681 = vdwg.mxu0
        %2682 = vrot.lane.b32.xlu0 %v779, 32
        %v2683 = vpop.permute.xlu0 %2682
        %2684 = vrot.lane.b32.xlu0 %v780, 32
        %v2685 = vpop.permute.xlu0 %2684
        %v2687 = vsel %vm787, %v2683, 0
        %v2690 = vsel %vm787, %v2685, 0
        %2692 = vmatprep.subr.bf16.mxu0 0
        %2693 = vmatpush1.bf16.xpose.msra.mxu0 %v2690
        %2694 = vmatprep.subr.bf16.mxu0 0
        %2695 = vmatpush1.bf16.xpose.msra.mxu0 0
        %2696 = vmatprep.subr.bf16.mxu0 0
        %2697 = vmatpush1.bf16.xpose.msra.mxu0 0
        %2698 = vmatprep.subr.bf16.mxu0 0
        %2699 = vmatpush1.bf16.xpose.msra.mxu0 0
        %2700 = vmatprep.subr.bf16.mxu0 0
        %2701 = vmatpush1.bf16.xpose.msra.mxu0 0
        %2702 = vmatprep.subr.bf16.mxu0 0
        %2703 = vmatpush1.bf16.xpose.msra.mxu0 0
        %2704 = vmatprep.subr.bf16.mxu0 0
        %2705 = vmatpush1.bf16.xpose.msra.mxu0 0
        %2706 = vmatprep.subr.bf16.mxu0 0
        %2707 = vmatpush1.bf16.xpose.msra.mxu0 0
        %2708 = vmatprep.subr.bf16.mxu0 0
        %2709 = vmatpush1.bf16.xpose.msra.mxu0 0
        %2710 = vmatprep.subr.bf16.mxu0 0
        %2711 = vmatpush1.bf16.xpose.msra.mxu0 0
        %2712 = vmatprep.subr.bf16.mxu0 0
        %2713 = vmatpush1.bf16.xpose.msra.mxu0 0
        %2714 = vmatprep.subr.bf16.mxu0 0
        %2715 = vmatpush1.bf16.xpose.msra.mxu0 0
        %2716 = vmatprep.subr.bf16.mxu0 0
        %2717 = vmatpush1.bf16.xpose.msra.mxu0 0
        %2718 = vmatprep.subr.bf16.mxu0 0
        %2719 = vmatpush1.bf16.xpose.msra.mxu0 0
        %2720 = vmatprep.subr.bf16.mxu0 0
        %2721 = vmatpush1.bf16.xpose.msra.mxu0 0
        %2722 = vmatprep.subr.bf16.mxu0 0
        %2723 = vmatpush1.bf16.xpose.msra.mxu0 0
        %2724 = vmatprep.mubr.bf16.mxu0 0
        %2725 = vmatmul.mubr.bf16.gmra.mrb[0].mxu0 %v2687
        %v2726 = vpop.f32.mrb[0].mxu0
        %v2727 = vadd.f32 %v785, %v2726
        %v2728 = vpop.f32.mrb[0].mxu0
        %v2729 = vpop.f32.mrb[0].mxu0
        %v2730 = vadd.f32 %v786, %v2729
        %v2731 = vpop.f32.mrb[0].mxu0
        %2732 = vdwg.mxu0
        %2733 = vrot.lane.b32.xlu0 %v782, 32
        %v2734 = vpop.permute.xlu0 %2733
        %2735 = vrot.lane.b32.xlu0 %v783, 32
        %v2736 = vpop.permute.xlu0 %2735
        %v2738 = vsel %vm787, %v2734, 0
        %v2741 = vsel %vm787, %v2736, 0
        %2743 = vmatprep.subr.bf16.mxu0 0
        %2744 = vmatpush1.bf16.xpose.msra.mxu0 %v2741
        %2745 = vmatprep.subr.bf16.mxu0 0
        %2746 = vmatpush1.bf16.xpose.msra.mxu0 0
        %2747 = vmatprep.subr.bf16.mxu0 0
        %2748 = vmatpush1.bf16.xpose.msra.mxu0 0
        %2749 = vmatprep.subr.bf16.mxu0 0
        %2750 = vmatpush1.bf16.xpose.msra.mxu0 0
        %2751 = vmatprep.subr.bf16.mxu0 0
        %2752 = vmatpush1.bf16.xpose.msra.mxu0 0
        %2753 = vmatprep.subr.bf16.mxu0 0
        %2754 = vmatpush1.bf16.xpose.msra.mxu0 0
        %2755 = vmatprep.subr.bf16.mxu0 0
        %2756 = vmatpush1.bf16.xpose.msra.mxu0 0
        %2757 = vmatprep.subr.bf16.mxu0 0
        %2758 = vmatpush1.bf16.xpose.msra.mxu0 0
        %2759 = vmatprep.subr.bf16.mxu0 0
        %2760 = vmatpush1.bf16.xpose.msra.mxu0 0
        %2761 = vmatprep.subr.bf16.mxu0 0
        %2762 = vmatpush1.bf16.xpose.msra.mxu0 0
        %2763 = vmatprep.subr.bf16.mxu0 0
        %2764 = vmatpush1.bf16.xpose.msra.mxu0 0
        %2765 = vmatprep.subr.bf16.mxu0 0
        %2766 = vmatpush1.bf16.xpose.msra.mxu0 0
        %2767 = vmatprep.subr.bf16.mxu0 0
        %2768 = vmatpush1.bf16.xpose.msra.mxu0 0
        %2769 = vmatprep.subr.bf16.mxu0 0
        %2770 = vmatpush1.bf16.xpose.msra.mxu0 0
        %2771 = vmatprep.subr.bf16.mxu0 0
        %2772 = vmatpush1.bf16.xpose.msra.mxu0 0
        %2773 = vmatprep.subr.bf16.mxu0 0
        %2774 = vmatpush1.bf16.xpose.msra.mxu0 0
        %2775 = vmatprep.mubr.bf16.mxu0 0
        %2776 = vmatmul.mubr.bf16.gmra.mrb[0].mxu0 %v2738
        %v2777 = vpop.f32.mrb[0].mxu0
        %v2778 = vadd.f32 %v785, %v2777
        %v2779 = vpop.f32.mrb[0].mxu0
        %v2780 = vpop.f32.mrb[0].mxu0
        %v2781 = vadd.f32 %v786, %v2780
        %v2782 = vpop.f32.mrb[0].mxu0
        %2783 = vdwg.mxu0
        %v2784 = vsel %vm976, %v2625, -inf
        %2785 = vmax.xlane.f32.xlu0 %v2784
        %v2786 = vpop.xlane.xlu0 %2785
        %v2787 = vsel %vm976, %v2628, -inf
        %2788 = vmax.xlane.f32.xlu0 %v2787
        %v2789 = vpop.xlane.xlu0 %2788
        %v2790 = vsel %vm976, %v2676, -inf
        %2791 = vmax.xlane.f32.xlu0 %v2790
        %v2792 = vpop.xlane.xlu0 %2791
        %v2793 = vsel %vm976, %v2679, -inf
        %2794 = vmax.xlane.f32.xlu0 %v2793
        %v2795 = vpop.xlane.xlu0 %2794
        %v2796 = vsel %vm976, %v2727, -inf
        %2797 = vmax.xlane.f32.xlu0 %v2796
        %v2798 = vpop.xlane.xlu0 %2797
        %v2799 = vsel %vm976, %v2730, -inf
        %2800 = vmax.xlane.f32.xlu0 %v2799
        %v2801 = vpop.xlane.xlu0 %2800
        %v2802 = vsel %vm976, %v2778, -inf
        %2803 = vmax.xlane.f32.xlu0 %v2802
        %v2804 = vpop.xlane.xlu0 %2803
        %v2805 = vsel %vm976, %v2781, -inf
        %2806 = vmax.xlane.f32.xlu0 %v2805
        %v2807 = vpop.xlane.xlu0 %2806
        %v2808 = vsub.f32 %v2625, %v2786
        %v2809 = vsub.f32 %v2628, %v2789
        %v2810 = vsub.f32 %v2676, %v2792
        %v2811 = vsub.f32 %v2679, %v2795
        %v2812 = vsub.f32 %v2727, %v2798
        %v2813 = vsub.f32 %v2730, %v2801
        %v2814 = vsub.f32 %v2778, %v2804
        %v2815 = vsub.f32 %v2781, %v2807
        %v2816 = vmul.f32 %v2808, 1.442695
        %v2817 = vpow.pop %v2816
        %v2818 = vmul.f32 %v2809, 1.442695
        %v2819 = vpow.pop %v2818
        %v2820 = vmul.f32 %v2810, 1.442695
        %v2821 = vpow.pop %v2820
        %v2822 = vmul.f32 %v2811, 1.442695
        %v2823 = vpow.pop %v2822
        %v2824 = vmul.f32 %v2812, 1.442695
        %v2825 = vpow.pop %v2824
        %v2826 = vmul.f32 %v2813, 1.442695
        %v2827 = vpow.pop %v2826
        %v2828 = vmul.f32 %v2814, 1.442695
        %v2829 = vpow.pop %v2828
        %v2830 = vmul.f32 %v2815, 1.442695
        %v2831 = vpow.pop %v2830
        %v2832 = vsel %vm976, %v2817, 0.0
        %2833 = vadd.xlane.f32.xlu0 %v2832
        %v2834 = vpop.xlane.xlu0 %2833
        %v2835 = vsel %vm976, %v2819, 0.0
        %2836 = vadd.xlane.f32.xlu0 %v2835
        %v2837 = vpop.xlane.xlu0 %2836
        %v2838 = vsel %vm976, %v2821, 0.0
        %2839 = vadd.xlane.f32.xlu0 %v2838
        %v2840 = vpop.xlane.xlu0 %2839
        %v2841 = vsel %vm976, %v2823, 0.0
        %2842 = vadd.xlane.f32.xlu0 %v2841
        %v2843 = vpop.xlane.xlu0 %2842
        %v2844 = vsel %vm976, %v2825, 0.0
        %2845 = vadd.xlane.f32.xlu0 %v2844
        %v2846 = vpop.xlane.xlu0 %2845
        %v2847 = vsel %vm976, %v2827, 0.0
        %2848 = vadd.xlane.f32.xlu0 %v2847
        %v2849 = vpop.xlane.xlu0 %2848
        %v2850 = vsel %vm976, %v2829, 0.0
        %2851 = vadd.xlane.f32.xlu0 %v2850
        %v2852 = vpop.xlane.xlu0 %2851
        %v2853 = vsel %vm976, %v2831, 0.0
        %2854 = vadd.xlane.f32.xlu0 %v2853
        %v2855 = vpop.xlane.xlu0 %2854
        %v2856 = vrcp.pop %v2834
        %v2857 = vrcp.pop %v2837
        %v2858 = vrcp.pop %v2840
        %v2859 = vrcp.pop %v2843
        %v2860 = vrcp.pop %v2846
        %v2861 = vrcp.pop %v2849
        %v2862 = vrcp.pop %v2852
        %v2863 = vrcp.pop %v2855
        %v2864 = vmul.f32 %v2817, %v2856
        %v2865 = vmul.f32 %v2819, %v2857
        %v2866 = vmul.f32 %v2821, %v2858
        %v2867 = vmul.f32 %v2823, %v2859
        %v2868 = vmul.f32 %v2825, %v2860
        %v2869 = vmul.f32 %v2827, %v2861
        %v2870 = vmul.f32 %v2829, %v2862
        %v2871 = vmul.f32 %v2831, %v2863
        %v2872 = vpack.c.bf16 %v2865, %v2864
        %v2873 = vpack.c.bf16 %v2867, %v2866
        %v2874 = vpack.c.bf16 %v2869, %v2868
        %v2875 = vpack.c.bf16 %v2871, %v2870
        %2876 = vrot.lane.b32.xlu0 %v775, 32
        %v2877 = vpop.permute.xlu0 %2876
        %v2880 = vsel %vm976, %v2872, 0
        %2882 = vmatprep.subr.bf16.mxu0 0
        %2883 = vmatpush1.bf16.msra.mxu0 %v2877
        %2884 = vmatprep.subr.bf16.mxu0 0
        %2885 = vmatpush1.bf16.msra.mxu0 0
        %2886 = vmatprep.subr.bf16.mxu0 0
        %2887 = vmatpush1.bf16.msra.mxu0 0
        %2888 = vmatprep.subr.bf16.mxu0 0
        %2889 = vmatpush1.bf16.msra.mxu0 0
        %2890 = vmatprep.subr.bf16.mxu0 0
        %2891 = vmatpush1.bf16.msra.mxu0 0
        %2892 = vmatprep.subr.bf16.mxu0 0
        %2893 = vmatpush1.bf16.msra.mxu0 0
        %2894 = vmatprep.subr.bf16.mxu0 0
        %2895 = vmatpush1.bf16.msra.mxu0 0
        %2896 = vmatprep.subr.bf16.mxu0 0
        %2897 = vmatpush1.bf16.msra.mxu0 0
        %2898 = vmatprep.subr.bf16.mxu0 0
        %2899 = vmatpush1.bf16.msra.mxu0 0
        %2900 = vmatprep.subr.bf16.mxu0 0
        %2901 = vmatpush1.bf16.msra.mxu0 0
        %2902 = vmatprep.subr.bf16.mxu0 0
        %2903 = vmatpush1.bf16.msra.mxu0 0
        %2904 = vmatprep.subr.bf16.mxu0 0
        %2905 = vmatpush1.bf16.msra.mxu0 0
        %2906 = vmatprep.subr.bf16.mxu0 0
        %2907 = vmatpush1.bf16.msra.mxu0 0
        %2908 = vmatprep.subr.bf16.mxu0 0
        %2909 = vmatpush1.bf16.msra.mxu0 0
        %2910 = vmatprep.subr.bf16.mxu0 0
        %2911 = vmatpush1.bf16.msra.mxu0 0
        %2912 = vmatprep.subr.bf16.mxu0 0
        %2913 = vmatpush1.bf16.msra.mxu0 0
        %2914 = vmatprep.mubr.bf16.mxu0 0
        %2915 = vmatmul.mubr.bf16.gmra.mrb[0].mxu0 %v2880
        %v2916 = vpop.f32.mrb[0].mxu0
        %v2917 = vadd.f32 0.0, %v2916
        %v2918 = vpop.f32.mrb[0].mxu0
        %v2919 = vpop.f32.mrb[0].mxu0
        %v2920 = vadd.f32 0.0, %v2919
        %v2921 = vpop.f32.mrb[0].mxu0
        %2922 = vdwg.mxu0
        %2923 = vrot.lane.b32.xlu0 %v778, 32
        %v2924 = vpop.permute.xlu0 %2923
        %v2927 = vsel %vm976, %v2873, 0
        %2929 = vmatprep.subr.bf16.mxu0 0
        %2930 = vmatpush1.bf16.msra.mxu0 %v2924
        %2931 = vmatprep.subr.bf16.mxu0 0
        %2932 = vmatpush1.bf16.msra.mxu0 0
        %2933 = vmatprep.subr.bf16.mxu0 0
        %2934 = vmatpush1.bf16.msra.mxu0 0
        %2935 = vmatprep.subr.bf16.mxu0 0
        %2936 = vmatpush1.bf16.msra.mxu0 0
        %2937 = vmatprep.subr.bf16.mxu0 0
        %2938 = vmatpush1.bf16.msra.mxu0 0
        %2939 = vmatprep.subr.bf16.mxu0 0
        %2940 = vmatpush1.bf16.msra.mxu0 0
        %2941 = vmatprep.subr.bf16.mxu0 0
        %2942 = vmatpush1.bf16.msra.mxu0 0
        %2943 = vmatprep.subr.bf16.mxu0 0
        %2944 = vmatpush1.bf16.msra.mxu0 0
        %2945 = vmatprep.subr.bf16.mxu0 0
        %2946 = vmatpush1.bf16.msra.mxu0 0
        %2947 = vmatprep.subr.bf16.mxu0 0
        %2948 = vmatpush1.bf16.msra.mxu0 0
        %2949 = vmatprep.subr.bf16.mxu0 0
        %2950 = vmatpush1.bf16.msra.mxu0 0
        %2951 = vmatprep.subr.bf16.mxu0 0
        %2952 = vmatpush1.bf16.msra.mxu0 0
        %2953 = vmatprep.subr.bf16.mxu0 0
        %2954 = vmatpush1.bf16.msra.mxu0 0
        %2955 = vmatprep.subr.bf16.mxu0 0
        %2956 = vmatpush1.bf16.msra.mxu0 0
        %2957 = vmatprep.subr.bf16.mxu0 0
        %2958 = vmatpush1.bf16.msra.mxu0 0
        %2959 = vmatprep.subr.bf16.mxu0 0
        %2960 = vmatpush1.bf16.msra.mxu0 0
        %2961 = vmatprep.mubr.bf16.mxu0 0
        %2962 = vmatmul.mubr.bf16.gmra.mrb[0].mxu0 %v2927
        %v2963 = vpop.f32.mrb[0].mxu0
        %v2964 = vadd.f32 0.0, %v2963
        %v2965 = vpop.f32.mrb[0].mxu0
        %v2966 = vpop.f32.mrb[0].mxu0
        %v2967 = vadd.f32 0.0, %v2966
        %v2968 = vpop.f32.mrb[0].mxu0
        %2969 = vdwg.mxu0
        %2970 = vrot.lane.b32.xlu0 %v781, 32
        %v2971 = vpop.permute.xlu0 %2970
        %v2974 = vsel %vm976, %v2874, 0
        %2976 = vmatprep.subr.bf16.mxu0 0
        %2977 = vmatpush1.bf16.msra.mxu0 %v2971
        %2978 = vmatprep.subr.bf16.mxu0 0
        %2979 = vmatpush1.bf16.msra.mxu0 0
        %2980 = vmatprep.subr.bf16.mxu0 0
        %2981 = vmatpush1.bf16.msra.mxu0 0
        %2982 = vmatprep.subr.bf16.mxu0 0
        %2983 = vmatpush1.bf16.msra.mxu0 0
        %2984 = vmatprep.subr.bf16.mxu0 0
        %2985 = vmatpush1.bf16.msra.mxu0 0
        %2986 = vmatprep.subr.bf16.mxu0 0
        %2987 = vmatpush1.bf16.msra.mxu0 0
        %2988 = vmatprep.subr.bf16.mxu0 0
        %2989 = vmatpush1.bf16.msra.mxu0 0
        %2990 = vmatprep.subr.bf16.mxu0 0
        %2991 = vmatpush1.bf16.msra.mxu0 0
        %2992 = vmatprep.subr.bf16.mxu0 0
        %2993 = vmatpush1.bf16.msra.mxu0 0
        %2994 = vmatprep.subr.bf16.mxu0 0
        %2995 = vmatpush1.bf16.msra.mxu0 0
        %2996 = vmatprep.subr.bf16.mxu0 0
        %2997 = vmatpush1.bf16.msra.mxu0 0
        %2998 = vmatprep.subr.bf16.mxu0 0
        %2999 = vmatpush1.bf16.msra.mxu0 0
        %3000 = vmatprep.subr.bf16.mxu0 0
        %3001 = vmatpush1.bf16.msra.mxu0 0
        %3002 = vmatprep.subr.bf16.mxu0 0
        %3003 = vmatpush1.bf16.msra.mxu0 0
        %3004 = vmatprep.subr.bf16.mxu0 0
        %3005 = vmatpush1.bf16.msra.mxu0 0
        %3006 = vmatprep.subr.bf16.mxu0 0
        %3007 = vmatpush1.bf16.msra.mxu0 0
        %3008 = vmatprep.mubr.bf16.mxu0 0
        %3009 = vmatmul.mubr.bf16.gmra.mrb[0].mxu0 %v2974
        %v3010 = vpop.f32.mrb[0].mxu0
        %v3011 = vadd.f32 0.0, %v3010
        %v3012 = vpop.f32.mrb[0].mxu0
        %v3013 = vpop.f32.mrb[0].mxu0
        %v3014 = vadd.f32 0.0, %v3013
        %v3015 = vpop.f32.mrb[0].mxu0
        %3016 = vdwg.mxu0
        %3017 = vrot.lane.b32.xlu0 %v784, 32
        %v3018 = vpop.permute.xlu0 %3017
        %v3021 = vsel %vm976, %v2875, 0
        %3023 = vmatprep.subr.bf16.mxu0 0
        %3024 = vmatpush1.bf16.msra.mxu0 %v3018
        %3025 = vmatprep.subr.bf16.mxu0 0
        %3026 = vmatpush1.bf16.msra.mxu0 0
        %3027 = vmatprep.subr.bf16.mxu0 0
        %3028 = vmatpush1.bf16.msra.mxu0 0
        %3029 = vmatprep.subr.bf16.mxu0 0
        %3030 = vmatpush1.bf16.msra.mxu0 0
        %3031 = vmatprep.subr.bf16.mxu0 0
        %3032 = vmatpush1.bf16.msra.mxu0 0
        %3033 = vmatprep.subr.bf16.mxu0 0
        %3034 = vmatpush1.bf16.msra.mxu0 0
        %3035 = vmatprep.subr.bf16.mxu0 0
        %3036 = vmatpush1.bf16.msra.mxu0 0
        %3037 = vmatprep.subr.bf16.mxu0 0
        %3038 = vmatpush1.bf16.msra.mxu0 0
        %3039 = vmatprep.subr.bf16.mxu0 0
        %3040 = vmatpush1.bf16.msra.mxu0 0
        %3041 = vmatprep.subr.bf16.mxu0 0
        %3042 = vmatpush1.bf16.msra.mxu0 0
        %3043 = vmatprep.subr.bf16.mxu0 0
        %3044 = vmatpush1.bf16.msra.mxu0 0
        %3045 = vmatprep.subr.bf16.mxu0 0
        %3046 = vmatpush1.bf16.msra.mxu0 0
        %3047 = vmatprep.subr.bf16.mxu0 0
        %3048 = vmatpush1.bf16.msra.mxu0 0
        %3049 = vmatprep.subr.bf16.mxu0 0
        %3050 = vmatpush1.bf16.msra.mxu0 0
        %3051 = vmatprep.subr.bf16.mxu0 0
        %3052 = vmatpush1.bf16.msra.mxu0 0
        %3053 = vmatprep.subr.bf16.mxu0 0
        %3054 = vmatpush1.bf16.msra.mxu0 0
        %3055 = vmatprep.mubr.bf16.mxu0 0
        %3056 = vmatmul.mubr.bf16.gmra.mrb[0].mxu0 %v3021
        %v3057 = vpop.f32.mrb[0].mxu0
        %v3058 = vadd.f32 0.0, %v3057
        %v3059 = vpop.f32.mrb[0].mxu0
        %v3060 = vpop.f32.mrb[0].mxu0
        %v3061 = vadd.f32 0.0, %v3060
        %v3062 = vpop.f32.mrb[0].mxu0
        %3063 = vdwg.mxu0
        %v3064 = vpack.c.bf16 %v2920, %v2917
        %v3065 = vpack.c.bf16 %v2967, %v2964
        %v3066 = vpack.c.bf16 %v3014, %v3011
        %v3067 = vpack.c.bf16 %v3061, %v3058
        %v3068 = vld [vmem:[%s4 + $0x60] sm:$0xff]
        %v3069 = vld [vmem:[%s4 + $0x68] sm:$0xff]
        %v3070 = vld [vmem:[%s4 + $0x70] sm:$0xff]
        %v3071 = vld [vmem:[%s4 + $0x78] sm:$0xff]
        %v3076 = vunpack.c.l.b16 %v3068
        %v3077 = vunpack.c.h.b16 %v3068
        %v3078 = vunpack.c.l.b16 %v3069
        %v3079 = vunpack.c.h.b16 %v3069
        %v3080 = vunpack.c.l.b16 %v3070
        %v3081 = vunpack.c.h.b16 %v3070
        %v3082 = vunpack.c.l.b16 %v3071
        %v3083 = vunpack.c.h.b16 %v3071
        %v3084 = vpack.c.b16 %v3078, %v3076
        %v3085 = vpack.c.b16 %v3079, %v3077
        %v3086 = vpack.c.b16 %v3082, %v3080
        %v3087 = vpack.c.b16 %v3083, %v3081
        %v3093 = vsel %vm787, %v3064, 0
        %v3096 = vsel %vm787, %v3065, 0
        %v3099 = vsel %vm787, %v3066, 0
        %v3102 = vsel %vm787, %v3067, 0
        %3104 = vmatprep.subr.bf16.mxu0 %v3085
        %3105 = vmatpush1.bf16.msra.mxu0 %v3084
        %3106 = vmatprep.subr.bf16.mxu0 %v3087
        %3107 = vmatpush1.bf16.msra.mxu0 %v3086
        %3108 = vmatprep.subr.bf16.mxu0 0
        %3109 = vmatpush1.bf16.msra.mxu0 0
        %3110 = vmatprep.subr.bf16.mxu0 0
        %3111 = vmatpush1.bf16.msra.mxu0 0
        %3112 = vmatprep.subr.bf16.mxu0 0
        %3113 = vmatpush1.bf16.msra.mxu0 0
        %3114 = vmatprep.subr.bf16.mxu0 0
        %3115 = vmatpush1.bf16.msra.mxu0 0
        %3116 = vmatprep.subr.bf16.mxu0 0
        %3117 = vmatpush1.bf16.msra.mxu0 0
        %3118 = vmatprep.subr.bf16.mxu0 0
        %3119 = vmatpush1.bf16.msra.mxu0 0
        %3120 = vmatprep.subr.bf16.mxu0 0
        %3121 = vmatpush1.bf16.msra.mxu0 0
        %3122 = vmatprep.subr.bf16.mxu0 0
        %3123 = vmatpush1.bf16.msra.mxu0 0
        %3124 = vmatprep.subr.bf16.mxu0 0
        %3125 = vmatpush1.bf16.msra.mxu0 0
        %3126 = vmatprep.subr.bf16.mxu0 0
        %3127 = vmatpush1.bf16.msra.mxu0 0
        %3128 = vmatprep.subr.bf16.mxu0 0
        %3129 = vmatpush1.bf16.msra.mxu0 0
        %3130 = vmatprep.subr.bf16.mxu0 0
        %3131 = vmatpush1.bf16.msra.mxu0 0
        %3132 = vmatprep.subr.bf16.mxu0 0
        %3133 = vmatpush1.bf16.msra.mxu0 0
        %3134 = vmatprep.subr.bf16.mxu0 0
        %3135 = vmatpush1.bf16.msra.mxu0 0
        %3136 = vmatprep.mubr.bf16.mxu0 0
        %3137 = vmatmul.mubr.bf16.gmra.mrb[0].mxu0 %v3093
        %v3138 = vpop.f32.mrb[0].mxu0
        %v3139 = vadd.f32 0.0, %v3138
        %v3140 = vpop.f32.mrb[0].mxu0
        %v3141 = vadd.f32 0.0, %v3140
        %v3142 = vpop.f32.mrb[0].mxu0
        %v3143 = vadd.f32 0.0, %v3142
        %v3144 = vpop.f32.mrb[0].mxu0
        %v3145 = vadd.f32 0.0, %v3144
        %3146 = vmatprep.mubr.bf16.mxu0 0
        %3147 = vmatmul.mubr.bf16.gmra.mrb[0].mxu0 %v3096
        %v3148 = vpop.f32.mrb[0].mxu0
        %v3149 = vadd.f32 0.0, %v3148
        %v3150 = vpop.f32.mrb[0].mxu0
        %v3151 = vadd.f32 0.0, %v3150
        %v3152 = vpop.f32.mrb[0].mxu0
        %v3153 = vadd.f32 0.0, %v3152
        %v3154 = vpop.f32.mrb[0].mxu0
        %v3155 = vadd.f32 0.0, %v3154
        %3156 = vmatprep.mubr.bf16.mxu0 0
        %3157 = vmatmul.mubr.bf16.gmra.mrb[0].mxu0 %v3099
        %v3158 = vpop.f32.mrb[0].mxu0
        %v3159 = vadd.f32 0.0, %v3158
        %v3160 = vpop.f32.mrb[0].mxu0
        %v3161 = vadd.f32 0.0, %v3160
        %v3162 = vpop.f32.mrb[0].mxu0
        %v3163 = vadd.f32 0.0, %v3162
        %v3164 = vpop.f32.mrb[0].mxu0
        %v3165 = vadd.f32 0.0, %v3164
        %3166 = vmatprep.mubr.bf16.mxu0 0
        %3167 = vmatmul.mubr.bf16.gmra.mrb[0].mxu0 %v3102
        %v3168 = vpop.f32.mrb[0].mxu0
        %v3169 = vadd.f32 0.0, %v3168
        %v3170 = vpop.f32.mrb[0].mxu0
        %v3171 = vadd.f32 0.0, %v3170
        %v3172 = vpop.f32.mrb[0].mxu0
        %v3173 = vadd.f32 0.0, %v3172
        %v3174 = vpop.f32.mrb[0].mxu0
        %v3175 = vadd.f32 0.0, %v3174
        %3176 = vdwg.mxu0
        %v3177 = vadd.f32 %v2564, %v3139
        %v3178 = vadd.f32 %v2565, %v3141
        %v3179 = vadd.f32 %v2566, %v3143
        %v3180 = vadd.f32 %v2567, %v3145
        %v3181 = vadd.f32 %v2568, %v3149
        %v3182 = vadd.f32 %v2569, %v3151
        %v3183 = vadd.f32 %v2570, %v3153
        %v3184 = vadd.f32 %v2571, %v3155
        %v3185 = vadd.f32 %v2572, %v3159
        %v3186 = vadd.f32 %v2573, %v3161
        %v3187 = vadd.f32 %v2574, %v3163
        %v3188 = vadd.f32 %v2575, %v3165
        %v3189 = vadd.f32 %v2576, %v3169
        %v3190 = vadd.f32 %v2577, %v3171
        %v3191 = vadd.f32 %v2578, %v3173
        %v3192 = vadd.f32 %v2579, %v3175
        %v3209 = vcombine.low %v3177, %v3178
        %v3210 = vcombine.high %v3177, %v3178
        %v3211 = vcombine.low %v3179, %v3180
        %v3212 = vcombine.high %v3179, %v3180
        %v3213 = vcombine.low %v3181, %v3182
        %v3214 = vcombine.high %v3181, %v3182
        %v3215 = vcombine.low %v3183, %v3184
        %v3216 = vcombine.high %v3183, %v3184
        %v3217 = vcombine.low %v3185, %v3186
        %v3218 = vcombine.high %v3185, %v3186
        %v3219 = vcombine.low %v3187, %v3188
        %v3220 = vcombine.high %v3187, %v3188
        %v3221 = vcombine.low %v3189, %v3190
        %v3222 = vcombine.high %v3189, %v3190
        %v3223 = vcombine.low %v3191, %v3192
        %v3224 = vcombine.high %v3191, %v3192
        %v3241 = vld [vmem:[%s5] sm:$0x3]
        %v3243 = vlaneseq
        %v3244 = vshrl.u32 %v3243, 7
        %v3245 = vsub.s32 0, %v3244
        %v3246 = vrot.slane %v3241, %v3245
        %v3247 = vlaneseq
        %v3248 = vshrl.u32 %v3247, 7
        %v3249 = vsub.s32 1, %v3248
        %v3250 = vrot.slane %v3241, %v3249
        %v3251 = vcombine.low %v3246, %v3250
        %v3252 = vcombine.high %v3246, %v3250
        %v3255 = vadd.f32 %v3209, %v3251
        %v3256 = vadd.f32 %v3213, %v3252
        %v3257 = vadd.f32 %v3217, %v3251
        %v3258 = vadd.f32 %v3221, %v3252
        %v3259 = vadd.f32 %v3210, %v3251
        %v3260 = vadd.f32 %v3214, %v3252
        %v3261 = vadd.f32 %v3218, %v3251
        %v3262 = vadd.f32 %v3222, %v3252
        %v3263 = vadd.f32 %v3211, %v3251
        %v3264 = vadd.f32 %v3215, %v3252
        %v3265 = vadd.f32 %v3219, %v3251
        %v3266 = vadd.f32 %v3223, %v3252
        %v3267 = vadd.f32 %v3212, %v3251
        %v3268 = vadd.f32 %v3216, %v3252
        %v3269 = vadd.f32 %v3220, %v3251
        %v3270 = vadd.f32 %v3224, %v3252
        %v3271 = vld [vmem:[%s302] sm:$0xff]
        %v3272 = vld [vmem:[%s302 + $0x8] sm:$0xff]
        %v3273 = vld [vmem:[%s302 + $0x10] sm:$0xff]
        %v3274 = vld [vmem:[%s302 + $0x18] sm:$0xff]
        %v3275 = vld [vmem:[%s302 + $0x20] sm:$0xff]
        %v3276 = vld [vmem:[%s302 + $0x28] sm:$0xff]
        %v3277 = vld [vmem:[%s302 + $0x30] sm:$0xff]
        %v3278 = vld [vmem:[%s302 + $0x38] sm:$0xff]
        %v3279 = vld [vmem:[%s302 + $0x40] sm:$0xff]
        %v3280 = vld [vmem:[%s302 + $0x48] sm:$0xff]
        %v3281 = vld [vmem:[%s302 + $0x50] sm:$0xff]
        %v3282 = vld [vmem:[%s302 + $0x58] sm:$0xff]
        %v3283 = vld [vmem:[%s302 + $0x60] sm:$0xff]
        %v3284 = vld [vmem:[%s302 + $0x68] sm:$0xff]
        %v3285 = vld [vmem:[%s302 + $0x70] sm:$0xff]
        %v3286 = vld [vmem:[%s302 + $0x78] sm:$0xff]
        %v3303 = vcombine.low %v3271, %v3272
        %v3304 = vcombine.high %v3271, %v3272
        %v3305 = vcombine.low %v3273, %v3274
        %v3306 = vcombine.high %v3273, %v3274
        %v3307 = vcombine.low %v3275, %v3276
        %v3308 = vcombine.high %v3275, %v3276
        %v3309 = vcombine.low %v3277, %v3278
        %v3310 = vcombine.high %v3277, %v3278
        %v3311 = vcombine.low %v3279, %v3280
        %v3312 = vcombine.high %v3279, %v3280
        %v3313 = vcombine.low %v3281, %v3282
        %v3314 = vcombine.high %v3281, %v3282
        %v3315 = vcombine.low %v3283, %v3284
        %v3316 = vcombine.high %v3283, %v3284
        %v3317 = vcombine.low %v3285, %v3286
        %v3318 = vcombine.high %v3285, %v3286
        %v3335 = vadd.f32 %v3255, %v3303
        %v3336 = vadd.f32 %v3256, %v3304
        %v3337 = vadd.f32 %v3257, %v3305
        %v3338 = vadd.f32 %v3258, %v3306
        %v3339 = vadd.f32 %v3259, %v3307
        %v3340 = vadd.f32 %v3260, %v3308
        %v3341 = vadd.f32 %v3261, %v3309
        %v3342 = vadd.f32 %v3262, %v3310
        %v3343 = vadd.f32 %v3263, %v3311
        %v3344 = vadd.f32 %v3264, %v3312
        %v3345 = vadd.f32 %v3265, %v3313
        %v3346 = vadd.f32 %v3266, %v3314
        %v3347 = vadd.f32 %v3267, %v3315
        %v3348 = vadd.f32 %v3268, %v3316
        %v3349 = vadd.f32 %v3269, %v3317
        %v3350 = vadd.f32 %v3270, %v3318
        %v3367 = vcombine.low %v3335, %v3336
        %v3368 = vcombine.high %v3335, %v3336
        %v3369 = vcombine.low %v3337, %v3338
        %v3370 = vcombine.high %v3337, %v3338
        %v3371 = vcombine.low %v3339, %v3340
        %v3372 = vcombine.high %v3339, %v3340
        %v3373 = vcombine.low %v3341, %v3342
        %v3374 = vcombine.high %v3341, %v3342
        %v3375 = vcombine.low %v3343, %v3344
        %v3376 = vcombine.high %v3343, %v3344
        %v3377 = vcombine.low %v3345, %v3346
        %v3378 = vcombine.high %v3345, %v3346
        %v3379 = vcombine.low %v3347, %v3348
        %v3380 = vcombine.high %v3347, %v3348
        %v3381 = vcombine.low %v3349, %v3350
        %v3382 = vcombine.high %v3349, %v3350
        %3399 = vst [vmem:[%s290] sm:$0xff] %v3367
        %3400 = vst [vmem:[%s290 + $0x8] sm:$0xff] %v3368
        %3401 = vst [vmem:[%s290 + $0x10] sm:$0xff] %v3369
        %3402 = vst [vmem:[%s290 + $0x18] sm:$0xff] %v3370
        %3403 = vst [vmem:[%s290 + $0x20] sm:$0xff] %v3371
        %3404 = vst [vmem:[%s290 + $0x28] sm:$0xff] %v3372
        %3405 = vst [vmem:[%s290 + $0x30] sm:$0xff] %v3373
        %3406 = vst [vmem:[%s290 + $0x38] sm:$0xff] %v3374
        %3407 = vst [vmem:[%s290 + $0x40] sm:$0xff] %v3375
        %3408 = vst [vmem:[%s290 + $0x48] sm:$0xff] %v3376
        %3409 = vst [vmem:[%s290 + $0x50] sm:$0xff] %v3377
        %3410 = vst [vmem:[%s290 + $0x58] sm:$0xff] %v3378
        %3411 = vst [vmem:[%s290 + $0x60] sm:$0xff] %v3379
        %3412 = vst [vmem:[%s290 + $0x68] sm:$0xff] %v3380
        %3413 = vst [vmem:[%s290 + $0x70] sm:$0xff] %v3381
        %3414 = vst [vmem:[%s290 + $0x78] sm:$0xff] %v3382
        %s3415 = sand.u32 %s186, 1
        %s3416 = scalar_lea.sflag [#allocation3], %s3415
        %s3417 = sand.u32 %s186, 1
        %s3418 = smul.addr %s3417, 128
        %s3419 = scalar_lea.vmem [#allocation2], %s3418
        // Predicated region
        $region49: #{attention_block_b_forward.5} parent=47 // pred_check
          %p3420 = pneg %p196
        $region50: #{attention_block_b_forward.5} parent=47 // pred_check_branch
          %3422 = sbr.rel (%p3420) target = $region52
        $region51: #{attention_block_b_forward.5} parent=47 // pred_region
          %s3423 = smul.u32 8, %s21
          %s3425 = ssub.s32 2048, 2048
          %3426 = vsyncadd %s3416, %s3425
          %s3427 = smul.addr %s3423, 2
          %s3428 = smul.addr %s3427, 128
          %s3429 = scalar_lea.hbm %s7, %s3428
          %s3430 = sshll.u32 %s3419, 4
          %s3431 = int_to_ptr.vmem [resolvable:$true] %s3430
          %3436 = dma.vmem_to_hbm [thread:$0]  %s3431, 2048, %s3429, %s3416, 256, 256, 16
        $region52: #{attention_block_b_forward.5} parent=47 // pred_fallthru
          _
      $region48: #{attention_block_b_forward.5} parent=5 // pred_fallthru
        _
      %p3437 = scmp.le.s32.totalorder 2, %s16
      // Predicated region
      $region53: #{attention_block_b_forward.5} parent=5 // pred_check
        %p3438 = pneg %p3437
      $region54: #{attention_block_b_forward.5} parent=5 // pred_check_branch
        %3440 = sbr.rel (%p3438) target = $region56
      $region55: #{attention_block_b_forward.5} parent=5 // pred_region
        %s3441 = ssub.s32 %s16, 2
        // Predicated region
        $region57: #{attention_block_b_forward.5} parent=55 // pred_check
          %p3442 = pneg %p202
        $region58: #{attention_block_b_forward.5} parent=55 // pred_check_branch
          %3444 = sbr.rel (%p3442) target = $region60
        $region59: #{attention_block_b_forward.5} parent=55 // pred_region
          %s3445 = sand.u32 %s187, 1
          %s3446 = scalar_lea.sflag [#allocation3], %s3445
          %s3447 = sand.u32 %s187, 1
          %s3448 = smul.addr %s3447, 128
          %s3449 = scalar_lea.vmem [#allocation2], %s3448
          %3450 = dma.done %s3446, 2048
        $region60: #{attention_block_b_forward.5} parent=55 // pred_fallthru
          _
      $region56: #{attention_block_b_forward.5} parent=5 // pred_fallthru
        _
    $region6: #{attention_block_b_forward.5} parent=1 // loop_footer
      %s20 = sadd.s32 1, %s16
    $region7: #{attention_block_b_forward.5} parent=1 // loop_footer_branch
      %15 = sbr.rel target = $region3
    $region8: #{attention_block_b_forward.5} parent=1 // loop_exit
      _
    %3451 = vsyncpa [#allocation3], 1
    %s3452 = scalar_lea.sflag [#allocation3], 1
    %3453 = vsyncpa %s3452, 1

</llo_original>
